<compile_context>
chip_gen: v7x
topology: tpu7x:2x2x1
jax: 0.10.0
libtpu: 0.0.40
codegen_flags: <defaults>
</compile_context>

<pallas_src>
import functools

import jax
import jax.numpy as jnp
from jax.experimental import pallas as pl
from jax.experimental.pallas import tpu as pltpu

# MXU operand dtype; accumulation is f32 via preferred_element_type, softmax math
# stays f32 (also right for v5e, which has no bf16 VPU/EUP path).
MXU_DTYPE = jnp.bfloat16


@functools.lru_cache(maxsize=1)
def _vmem_limit_bytes():
    """Scoped-VMEM limit: above the 16/32 MiB defaults, below physical VMEM.

    Generation-aware: v5e/v6e have 128 MiB physical, v7x only 64 MiB.
    """
    try:
        cap = int(pltpu.get_tpu_info().vmem_capacity_bytes)
    except Exception:
        cap = 64 << 20
    return int(max(32 << 20, min(cap - (16 << 20), 100 << 20)))


def _dilated_mha_kernel(*refs, num_heads, head_dim, seg_len, n_seg_block,
                        d_model, accumulate):
    """Fused dilated multi-head self-attention for one block of TG segments.

    refs = (x_ref, wqkv_ref, bqkv_ref, wo_ref, bo_ref, [acc_ref,] o_ref,
            qkv_scratch, attn_scratch)

      x_ref   : (TG*L, D) dilated rows (strided view)  -- or (TG*L, dilation*D)
                packed rows in the fallback path (dilated row = first D lanes).
      wqkv_ref: (D, 3D) bf16, Q columns pre-scaled by 1/sqrt(dh)
      bqkv_ref: (1, 3D) f32, Q part pre-scaled
      wo_ref  : (D, D)  bf16
      bo_ref  : (1, D)  f32
      acc_ref : (TG*L, D) f32 running LongNet layer sum (optional, aliased)
      o_ref   : (TG*L, D) f32
      qkv_scratch : (TG*L, 3D) bf16 VMEM
      attn_scratch: (TG*L, D)  f32  VMEM (heads concatenated on lanes)
    """
    if accumulate:
        (x_ref, wqkv_ref, bqkv_ref, wo_ref, bo_ref, acc_ref, o_ref,
         qkv_ref, attn_ref) = refs
    else:
        (x_ref, wqkv_ref, bqkv_ref, wo_ref, bo_ref, o_ref,
         qkv_ref, attn_ref) = refs
        acc_ref = None

    dh = head_dim
    L = seg_len

    # Strided view already delivers only the dilated rows; in the fallback the
    # dilated row is the first d_model lanes of each packed row.
    x = x_ref[...] if x_ref.shape[-1] == d_model else x_ref[:, 0:d_model]

    # Fused QKV projection for all heads: one (tm, D) @ (D, 3D) MXU matmul
    # (full MXU column utilization instead of per-head dh-wide pushes).
    qkv_ref[...] = (jnp.dot(x, wqkv_ref[...],
                            preferred_element_type=jnp.float32)
                    + bqkv_ref[...]).astype(qkv_ref.dtype)

    # Block-diagonal attention: per (head, segment) (L, L) problem — no dense
    # (tm, tm) score matrix, no segment mask.  Static loops: head/segment
    # counts are small and static offsets give the best codegen.
    for h in range(num_heads):
        cq = h * dh
        ck = d_model + h * dh
        cv = 2 * d_model + h * dh
        for g in range(n_seg_block):
            r0 = g * L
            qs = qkv_ref[r0:r0 + L, cq:cq + dh]          # (L, dh) bf16, pre-scaled
            ks = qkv_ref[r0:r0 + L, ck:ck + dh]
            vs = qkv_ref[r0:r0 + L, cv:cv + dh]
            s = jnp.einsum('md,nd->mn', qs, ks,
                           preferred_element_type=jnp.float32)   # (L, L) f32
            s = s - jnp.max(s, axis=-1, keepdims=True)
            p = jnp.exp(s)
            denom = jnp.sum(p, axis=-1, keepdims=True)
            # Deferred normalization: scale the (L, dh) PV result instead of the
            # (L, L) probabilities; the reciprocal runs on the EUP slot.
            attn = jnp.dot(p.astype(vs.dtype), vs,
                           preferred_element_type=jnp.float32)   # (L, dh) f32
            attn = attn * pl.reciprocal(denom, approx=True)
            attn_ref[r0:r0 + L, cq:cq + dh] = attn

    # Single full-K output projection (tm, D) @ (D, D) == concat(heads) @ Wo.
    out = jnp.dot(attn_ref[...].astype(MXU_DTYPE), wo_ref[...],
                  preferred_element_type=jnp.float32) + bo_ref[...]
    if accumulate:
        out = out + acc_ref[...]                    # fused LongNet layer sum
    o_ref[...] = out.astype(o_ref.dtype)


def _pick_segments_per_block(n_seg_total, seg_len, *, target_rows=128,
                             max_rows=512):
    """Segments per grid step.

    Prefer sublane-aligned blocks, then stop growing once ~target_rows is
    reached (attention work is linear in TG after the block-diagonal fix, so
    bigger tiles only cost VMEM), prefer >=2 and even grid steps (megacore).
    """
    divisors = [t for t in range(1, n_seg_total + 1) if n_seg_total % t == 0]
    cands = [t for t in divisors if t * seg_len <= max_rows] or [1]

    def key(t):
        rows = t * seg_len
        grid = n_seg_total // t
        aligned = rows % 8 == 0
        reaches = rows >= target_rows
        return (aligned, reaches, grid >= 2, grid % 2 == 0,
                -rows if reaches else rows)

    best = max(cands, key=key)
    # Legality guard: second-to-last block dim must be a multiple of 8 or equal
    # to the full array extent.
    if (best * seg_len) % 8 != 0 and best != n_seg_total:
        best = n_seg_total
    return best


def dilated_attention_layer(x_bf16, kparams, acc, *, d_model, num_heads,
                            dilation, segment_size, batch, seq_len):
    """One DilatedAttention layer fused into a single pallas_call.

    x_bf16: (batch*seq_len, d_model) bf16 (shared, undilated input)
    acc:    (batch*seq_len//dilation, d_model) f32 running sum, or None
    returns acc + layer_output, shape (batch*seq_len//dilation, d_model) f32
    """
    assert segment_size % dilation == 0, "segment_size must be divisible by dilation_rate"
    assert seq_len % segment_size == 0, "seq_len must be divisible by segment_size"
    head_dim = d_model // num_heads
    seg_len = segment_size // dilation              # dilated rows per segment
    n_seg_total = batch * (seq_len // segment_size)
    m_out = n_seg_total * seg_len

    # Pack `dilation` consecutive rows into the lane axis (metadata-only
    # reshape).  The dilated rows are exactly the first D lanes of each packed
    # row, so a (tm, D) block over this view is a row-strided DMA that reads
    # ONLY the dilated rows, with full BlockSpec auto-pipelining.
    x_packed = x_bf16.reshape(m_out, dilation * d_model)

    tg = _pick_segments_per_block(n_seg_total, seg_len)
    tm = tg * seg_len
    grid = (n_seg_total // tg,)

    # The strided view needs a 128-aligned last block dim; otherwise fall back
    # to DMAing the full packed row and lane-slicing in the kernel.
    strided_ok = (dilation == 1) or (d_model % 128 == 0)
    x_cols = d_model if strided_ok else dilation * d_model

    wqkv, bqkv, wo, bo = kparams

    kernel = functools.partial(
        _dilated_mha_kernel, num_heads=num_heads, head_dim=head_dim,
        seg_len=seg_len, n_seg_block=tg, d_model=d_model,
        accumulate=acc is not None)

    # TODO(synk): the constant weight operands could use
    # pipeline_mode=pl.Buffered(1) to drop their dead second pipeline buffer
    # (halves their VMEM footprint on v7x); omitted for compatibility with
    # older Pallas releases.
    in_specs = [
        pl.BlockSpec((tm, x_cols), lambda i: (i, 0)),                 # x (strided)
        pl.BlockSpec((d_model, 3 * d_model), lambda i: (0, 0)),       # wqkv
        pl.BlockSpec((1, 3 * d_model), lambda i: (0, 0)),             # bqkv
        pl.BlockSpec((d_model, d_model), lambda i: (0, 0)),           # wo
        pl.BlockSpec((1, d_model), lambda i: (0, 0)),                 # bo
    ]
    inputs = [x_packed, wqkv, bqkv, wo, bo]
    call_kwargs = {}
    if acc is not None:
        in_specs.append(pl.BlockSpec((tm, d_model), lambda i: (i, 0)))  # acc
        inputs.append(acc)
        # Accumulate the layer sum in place (P8 accumulate-into-existing).
        call_kwargs["input_output_aliases"] = {len(inputs) - 1: 0}

    return pl.pallas_call(
        kernel,
        out_shape=jax.ShapeDtypeStruct((m_out, d_model), jnp.float32),
        grid=grid,
        in_specs=in_specs,
        out_specs=pl.BlockSpec((tm, d_model), lambda i: (i, 0)),
        scratch_shapes=[
            pltpu.VMEM((tm, 3 * d_model), MXU_DTYPE),   # fused QKV (bf16)
            pltpu.VMEM((tm, d_model), jnp.float32),     # concat(heads) attention
        ],
        compiler_params=pltpu.CompilerParams(
            dimension_semantics=("parallel",),
            vmem_limit_bytes=_vmem_limit_bytes()),
        **call_kwargs,
    )(*inputs)


def _split_layer_params(params, d_model, num_heads):
    """Packed FlashMHA-style params -> kernel layout.

    Keeps Wqkv packed as (D, 3D) (one fused projection matmul), folds the
    1/sqrt(head_dim) attention scale into the Q columns and bias, and casts
    weights to the MXU dtype.
    """
    wqkv, bqkv, wo, bo = params
    dh = d_model // num_heads
    scale = 1.0 / (dh ** 0.5)
    col_scale = jnp.concatenate([
        jnp.full((d_model,), scale, jnp.float32),
        jnp.ones((2 * d_model,), jnp.float32)])
    wqkv_s = (wqkv.astype(jnp.float32) * col_scale[None, :]).astype(MXU_DTYPE)
    bqkv_s = (bqkv.astype(jnp.float32) * col_scale).reshape(1, 3 * d_model)
    wo_c = wo.astype(MXU_DTYPE)
    bo_c = bo.astype(jnp.float32).reshape(1, d_model)
    return wqkv_s, bqkv_s, wo_c, bo_c


@functools.partial(jax.jit, static_argnames=("d_model", "num_heads",
                                             "dilation_rates", "segment_sizes"))
def longnet_transformer_forward(x, layer_params, *, d_model, num_heads,
                                dilation_rates, segment_sizes):
    """torch: output = sum_i DilatedAttention_i(x)."""
    B, S, D = x.shape
    assert D == d_model
    out_lens = {S // r for r in dilation_rates}
    assert len(out_lens) == 1, "layer outputs must have equal length to be summed"
    s_out = out_lens.pop()

    # x feeds bf16 MXU matmuls in every layer: cast once, halving x HBM traffic.
    x_flat = x.reshape(B * S, D).astype(MXU_DTYPE)
    running = None
    for params, r, seg in zip(layer_params, dilation_rates, segment_sizes):
        kparams = _split_layer_params(params, d_model, num_heads)
        running = dilated_attention_layer(
            x_flat, kparams, running, d_model=d_model, num_heads=num_heads,
            dilation=r, segment_size=seg, batch=B, seq_len=S)
    return running.reshape(B, s_out, D)


def reference_forward(x, layer_params, dilation_rates, segment_sizes, *,
                      d_model, num_heads):
    """Pure-JAX f32 reference mirroring the PyTorch module's forward."""
    B, S, D = x.shape
    H, dh = num_heads, d_model // num_heads
    outs = []
    for (wqkv, bqkv, wo, bo), r, seg in zip(layer_params, dilation_rates,
                                            segment_sizes):
        n_seg = S // seg
        xs = x.reshape(B, n_seg, seg, D)[:, :, ::r, :]
        L = xs.shape[2]
        xs = xs.reshape(B * n_seg, L, D)
        qkv = xs @ wqkv + bqkv
        q, k, v = (t.reshape(B * n_seg, L, H, dh).transpose(0, 2, 1, 3)
                   for t in (qkv[..., :D], qkv[..., D:2 * D], qkv[..., 2 * D:]))
        s = jnp.einsum('ghqd,ghkd->ghqk', q, k) * (1.0 / dh ** 0.5)
        s = s - jnp.max(s, axis=-1, keepdims=True)
        p = jnp.exp(s)
        p = p / jnp.sum(p, axis=-1, keepdims=True)
        a = jnp.einsum('ghqk,ghkd->ghqd', p, v)
        a = a.transpose(0, 2, 1, 3).reshape(B * n_seg, L, D)
        o = a @ wo + bo
        outs.append(o.reshape(B, n_seg * L, D))
    return jnp.sum(jnp.stack(outs, axis=0), axis=0)


def init_layer_params(key, d_model):
    """FlashMHA-style params: packed Wqkv (D,3D)+bias(3D,), out_proj (D,D)+bias(D,)."""
    k1, k2 = jax.random.split(key)
    wqkv = 0.02 * jax.random.normal(k1, (d_model, 3 * d_model), jnp.float32)
    bqkv = jnp.zeros((3 * d_model,), jnp.float32)
    wo = 0.02 * jax.random.normal(k2, (d_model, d_model), jnp.float32)
    bo = jnp.zeros((d_model,), jnp.float32)
    return (wqkv, bqkv, wo, bo)


if __name__ == "__main__":
    # Small but lane-dense config: d_model is a multiple of 128 so the strided
    # x DMA, lane-dense out_spec, and aligned attention tiles are exercised.
    d_model = 128
    num_heads = 4
    batch = 2
    seq_len = 32
    # seq_len // dilation must match across layers so per-layer outputs sum
    # (same implicit constraint as the PyTorch module).
    dilation_rates = (2, 2)
    segment_sizes = (16, 32)

    key = jax.random.PRNGKey(0)
    key, xk = jax.random.split(key)
    x = jax.random.normal(xk, (batch, seq_len, d_model), jnp.float32)

    layer_params = []
    for _ in range(len(dilation_rates)):
        key, lk = jax.random.split(key)
        layer_params.append(init_layer_params(lk, d_model))

    out = longnet_transformer_forward(
        x, layer_params, d_model=d_model, num_heads=num_heads,
        dilation_rates=dilation_rates, segment_sizes=segment_sizes)
    out = jax.block_until_ready(out)

    assert out.shape == (batch, seq_len // dilation_rates[0], d_model), out.shape
    assert bool(jnp.all(jnp.isfinite(out)))

    # Pure-JAX f32 reference; kernel matmuls run in bf16 with an approximate
    # reciprocal, so compare with a loose tolerance.
    ref = reference_forward(x, layer_params, dilation_rates, segment_sizes,
                            d_model=d_model, num_heads=num_heads)
    assert bool(jnp.allclose(out, ref, rtol=0.15, atol=1e-2)), \
        float(jnp.max(jnp.abs(out - ref)))

    print("KERNEL_OK")
</pallas_src>

<mosaic_0001>
module attributes {stable_mosaic.version = 11 : i64} {
  func.func @_dilated_mha_kernel(%arg0: i32, %arg1: memref<16x128xbf16, #tpu.memory_space<vmem>>, %arg2: memref<128x384xbf16, #tpu.memory_space<vmem>>, %arg3: memref<1x384xf32, #tpu.memory_space<vmem>>, %arg4: memref<128x128xbf16, #tpu.memory_space<vmem>>, %arg5: memref<1x128xf32, #tpu.memory_space<vmem>>, %arg6: memref<16x128xf32, #tpu.memory_space<vmem>>, %arg7: memref<16x128xf32, #tpu.memory_space<vmem>>, %arg8: memref<16x384xbf16, #tpu.memory_space<vmem>>, %arg9: memref<16x128xf32, #tpu.memory_space<vmem>>) attributes {dimension_semantics = [#tpu.dimension_semantics<parallel>], iteration_bounds = array<i64: 2>, scalar_prefetch = 0 : i64, scratch_operands = 2 : i64, tpu.core_type = #tpu.core_type<tc>, window_params = [{transform_indices = @transform_0, window_bounds = array<i64: 16, 128>}, {pipeline_mode = #tpu.pipeline_mode<synchronous>, transform_indices = @transform_1, window_bounds = array<i64: 128, 384>}, {pipeline_mode = #tpu.pipeline_mode<synchronous>, transform_indices = @transform_2, window_bounds = array<i64: 1, 384>}, {pipeline_mode = #tpu.pipeline_mode<synchronous>, transform_indices = @transform_3, window_bounds = array<i64: 128, 128>}, {pipeline_mode = #tpu.pipeline_mode<synchronous>, transform_indices = @transform_4, window_bounds = array<i64: 1, 128>}, {transform_indices = @transform_5, window_bounds = array<i64: 16, 128>}, {transform_indices = @transform_6, window_bounds = array<i64: 16, 128>}]} {
    %c0 = arith.constant 0 : index
    %c0_0 = arith.constant 0 : index
    %0 = vector.load %arg1[%c0, %c0_0] : memref<16x128xbf16, #tpu.memory_space<vmem>>, vector<16x128xbf16>
    %c0_1 = arith.constant 0 : index
    %c0_2 = arith.constant 0 : index
    %1 = vector.load %arg2[%c0_1, %c0_2] : memref<128x384xbf16, #tpu.memory_space<vmem>>, vector<128x384xbf16>
    %cst = arith.constant dense<0.000000e+00> : vector<16x384xf32>
    %2 = tpu.matmul %0, %1, %cst {dimension_numbers = #tpu.dot_dimension_numbers<[1], [0], [0], [1], [0, 0, 1, 1], [], []>} : vector<16x128xbf16>, vector<128x384xbf16>, vector<16x384xf32> -> vector<16x384xf32>
    %c0_3 = arith.constant 0 : index
    %c0_4 = arith.constant 0 : index
    %3 = vector.load %arg3[%c0_3, %c0_4] : memref<1x384xf32, #tpu.memory_space<vmem>>, vector<1x384xf32>
    %4 = vector.broadcast %3 : vector<1x384xf32> to vector<16x384xf32>
    %5 = arith.addf %2, %4 : vector<16x384xf32>
    %6 = arith.truncf %5 : vector<16x384xf32> to vector<16x384xbf16>
    %c0_5 = arith.constant 0 : index
    %c0_6 = arith.constant 0 : index
    %7 = vector.load %arg8[%c0_5, %c0_6] : memref<16x384xbf16, #tpu.memory_space<vmem>>, vector<16x384xbf16>
    tpu.vector_store %arg8[%c0_5, %c0_6], %6 {strides = array<i32>} : memref<16x384xbf16, #tpu.memory_space<vmem>>, vector<16x384xbf16>,
    %c0_7 = arith.constant 0 : index
    %c0_8 = arith.constant 0 : index
    %8 = vector.load %arg8[%c0_7, %c0_8] : memref<16x384xbf16, #tpu.memory_space<vmem>>, vector<16x32xbf16>
    %c0_9 = arith.constant 0 : index
    %c128 = arith.constant 128 : index
    %9 = vector.load %arg8[%c0_9, %c128] : memref<16x384xbf16, #tpu.memory_space<vmem>>, vector<16x32xbf16>
    %c0_10 = arith.constant 0 : index
    %c256 = arith.constant 256 : index
    %10 = vector.load %arg8[%c0_10, %c256] : memref<16x384xbf16, #tpu.memory_space<vmem>>, vector<16x32xbf16>
    "tpu.trace_start"() <{level = 10 : i32, message = "md,nd->mn"}> : () -> ()
    %cst_11 = arith.constant dense<0.000000e+00> : vector<16x16xf32>
    %11 = tpu.matmul %8, %9, %cst_11 {dimension_numbers = #tpu.dot_dimension_numbers<[1], [1], [0], [0], [0, 0, 1, 0], [], []>} : vector<16x32xbf16>, vector<16x32xbf16>, vector<16x16xf32> -> vector<16x16xf32>
    "tpu.trace_stop"() : () -> ()
    %cst_12 = arith.constant dense<0xFF800000> : vector<16xf32>
    %12 = vector.multi_reduction <maximumf>, %11, %cst_12 [1] : vector<16x16xf32> to vector<16xf32>
    %13 = vector.shape_cast %12 : vector<16xf32> to vector<16x1xf32>
    %14 = vector.broadcast %13 : vector<16x1xf32> to vector<16x16xf32>
    %15 = arith.subf %11, %14 : vector<16x16xf32>
    %16 = math.exp %15 : vector<16x16xf32>
    %cst_13 = arith.constant dense<0.000000e+00> : vector<16xf32>
    %17 = vector.multi_reduction <add>, %16, %cst_13 [1] : vector<16x16xf32> to vector<16xf32>
    %18 = vector.shape_cast %17 : vector<16xf32> to vector<16x1xf32>
    %19 = arith.truncf %16 : vector<16x16xf32> to vector<16x16xbf16>
    %cst_14 = arith.constant dense<0.000000e+00> : vector<16x32xf32>
    %20 = tpu.matmul %19, %10, %cst_14 {dimension_numbers = #tpu.dot_dimension_numbers<[1], [0], [0], [1], [0, 0, 1, 1], [], []>} : vector<16x16xbf16>, vector<16x32xbf16>, vector<16x32xf32> -> vector<16x32xf32>
    %21 = tpu.reciprocal %18 {approx = true} : vector<16x1xf32> -> vector<16x1xf32>
    %22 = vector.broadcast %21 : vector<16x1xf32> to vector<16x32xf32>
    %23 = arith.mulf %20, %22 : vector<16x32xf32>
    %c0_15 = arith.constant 0 : index
    %c0_16 = arith.constant 0 : index
    %24 = vector.load %arg9[%c0_15, %c0_16] : memref<16x128xf32, #tpu.memory_space<vmem>>, vector<16x32xf32>
    tpu.vector_store %arg9[%c0_15, %c0_16], %23 {strides = array<i32>} : memref<16x128xf32, #tpu.memory_space<vmem>>, vector<16x32xf32>,
    %c0_17 = arith.constant 0 : index
    %c32 = arith.constant 32 : index
    %25 = vector.load %arg8[%c0_17, %c32] : memref<16x384xbf16, #tpu.memory_space<vmem>>, vector<16x32xbf16>
    %c0_18 = arith.constant 0 : index
    %c160 = arith.constant 160 : index
    %26 = vector.load %arg8[%c0_18, %c160] : memref<16x384xbf16, #tpu.memory_space<vmem>>, vector<16x32xbf16>
    %c0_19 = arith.constant 0 : index
    %c288 = arith.constant 288 : index
    %27 = vector.load %arg8[%c0_19, %c288] : memref<16x384xbf16, #tpu.memory_space<vmem>>, vector<16x32xbf16>
    "tpu.trace_start"() <{level = 10 : i32, message = "md,nd->mn"}> : () -> ()
    %cst_20 = arith.constant dense<0.000000e+00> : vector<16x16xf32>
    %28 = tpu.matmul %25, %26, %cst_20 {dimension_numbers = #tpu.dot_dimension_numbers<[1], [1], [0], [0], [0, 0, 1, 0], [], []>} : vector<16x32xbf16>, vector<16x32xbf16>, vector<16x16xf32> -> vector<16x16xf32>
    "tpu.trace_stop"() : () -> ()
    %cst_21 = arith.constant dense<0xFF800000> : vector<16xf32>
    %29 = vector.multi_reduction <maximumf>, %28, %cst_21 [1] : vector<16x16xf32> to vector<16xf32>
    %30 = vector.shape_cast %29 : vector<16xf32> to vector<16x1xf32>
    %31 = vector.broadcast %30 : vector<16x1xf32> to vector<16x16xf32>
    %32 = arith.subf %28, %31 : vector<16x16xf32>
    %33 = math.exp %32 : vector<16x16xf32>
    %cst_22 = arith.constant dense<0.000000e+00> : vector<16xf32>
    %34 = vector.multi_reduction <add>, %33, %cst_22 [1] : vector<16x16xf32> to vector<16xf32>
    %35 = vector.shape_cast %34 : vector<16xf32> to vector<16x1xf32>
    %36 = arith.truncf %33 : vector<16x16xf32> to vector<16x16xbf16>
    %cst_23 = arith.constant dense<0.000000e+00> : vector<16x32xf32>
    %37 = tpu.matmul %36, %27, %cst_23 {dimension_numbers = #tpu.dot_dimension_numbers<[1], [0], [0], [1], [0, 0, 1, 1], [], []>} : vector<16x16xbf16>, vector<16x32xbf16>, vector<16x32xf32> -> vector<16x32xf32>
    %38 = tpu.reciprocal %35 {approx = true} : vector<16x1xf32> -> vector<16x1xf32>
    %39 = vector.broadcast %38 : vector<16x1xf32> to vector<16x32xf32>
    %40 = arith.mulf %37, %39 : vector<16x32xf32>
    %c0_24 = arith.constant 0 : index
    %c32_25 = arith.constant 32 : index
    %41 = vector.load %arg9[%c0_24, %c32_25] : memref<16x128xf32, #tpu.memory_space<vmem>>, vector<16x32xf32>
    tpu.vector_store %arg9[%c0_24, %c32_25], %40 {strides = array<i32>} : memref<16x128xf32, #tpu.memory_space<vmem>>, vector<16x32xf32>,
    %c0_26 = arith.constant 0 : index
    %c64 = arith.constant 64 : index
    %42 = vector.load %arg8[%c0_26, %c64] : memref<16x384xbf16, #tpu.memory_space<vmem>>, vector<16x32xbf16>
    %c0_27 = arith.constant 0 : index
    %c192 = arith.constant 192 : index
    %43 = vector.load %arg8[%c0_27, %c192] : memref<16x384xbf16, #tpu.memory_space<vmem>>, vector<16x32xbf16>
    %c0_28 = arith.constant 0 : index
    %c320 = arith.constant 320 : index
    %44 = vector.load %arg8[%c0_28, %c320] : memref<16x384xbf16, #tpu.memory_space<vmem>>, vector<16x32xbf16>
    "tpu.trace_start"() <{level = 10 : i32, message = "md,nd->mn"}> : () -> ()
    %cst_29 = arith.constant dense<0.000000e+00> : vector<16x16xf32>
    %45 = tpu.matmul %42, %43, %cst_29 {dimension_numbers = #tpu.dot_dimension_numbers<[1], [1], [0], [0], [0, 0, 1, 0], [], []>} : vector<16x32xbf16>, vector<16x32xbf16>, vector<16x16xf32> -> vector<16x16xf32>
    "tpu.trace_stop"() : () -> ()
    %cst_30 = arith.constant dense<0xFF800000> : vector<16xf32>
    %46 = vector.multi_reduction <maximumf>, %45, %cst_30 [1] : vector<16x16xf32> to vector<16xf32>
    %47 = vector.shape_cast %46 : vector<16xf32> to vector<16x1xf32>
    %48 = vector.broadcast %47 : vector<16x1xf32> to vector<16x16xf32>
    %49 = arith.subf %45, %48 : vector<16x16xf32>
    %50 = math.exp %49 : vector<16x16xf32>
    %cst_31 = arith.constant dense<0.000000e+00> : vector<16xf32>
    %51 = vector.multi_reduction <add>, %50, %cst_31 [1] : vector<16x16xf32> to vector<16xf32>
    %52 = vector.shape_cast %51 : vector<16xf32> to vector<16x1xf32>
    %53 = arith.truncf %50 : vector<16x16xf32> to vector<16x16xbf16>
    %cst_32 = arith.constant dense<0.000000e+00> : vector<16x32xf32>
    %54 = tpu.matmul %53, %44, %cst_32 {dimension_numbers = #tpu.dot_dimension_numbers<[1], [0], [0], [1], [0, 0, 1, 1], [], []>} : vector<16x16xbf16>, vector<16x32xbf16>, vector<16x32xf32> -> vector<16x32xf32>
    %55 = tpu.reciprocal %52 {approx = true} : vector<16x1xf32> -> vector<16x1xf32>
    %56 = vector.broadcast %55 : vector<16x1xf32> to vector<16x32xf32>
    %57 = arith.mulf %54, %56 : vector<16x32xf32>
    %c0_33 = arith.constant 0 : index
    %c64_34 = arith.constant 64 : index
    %58 = vector.load %arg9[%c0_33, %c64_34] : memref<16x128xf32, #tpu.memory_space<vmem>>, vector<16x32xf32>
    tpu.vector_store %arg9[%c0_33, %c64_34], %57 {strides = array<i32>} : memref<16x128xf32, #tpu.memory_space<vmem>>, vector<16x32xf32>,
    %c0_35 = arith.constant 0 : index
    %c96 = arith.constant 96 : index
    %59 = vector.load %arg8[%c0_35, %c96] : memref<16x384xbf16, #tpu.memory_space<vmem>>, vector<16x32xbf16>
    %c0_36 = arith.constant 0 : index
    %c224 = arith.constant 224 : index
    %60 = vector.load %arg8[%c0_36, %c224] : memref<16x384xbf16, #tpu.memory_space<vmem>>, vector<16x32xbf16>
    %c0_37 = arith.constant 0 : index
    %c352 = arith.constant 352 : index
    %61 = vector.load %arg8[%c0_37, %c352] : memref<16x384xbf16, #tpu.memory_space<vmem>>, vector<16x32xbf16>
    "tpu.trace_start"() <{level = 10 : i32, message = "md,nd->mn"}> : () -> ()
    %cst_38 = arith.constant dense<0.000000e+00> : vector<16x16xf32>
    %62 = tpu.matmul %59, %60, %cst_38 {dimension_numbers = #tpu.dot_dimension_numbers<[1], [1], [0], [0], [0, 0, 1, 0], [], []>} : vector<16x32xbf16>, vector<16x32xbf16>, vector<16x16xf32> -> vector<16x16xf32>
    "tpu.trace_stop"() : () -> ()
    %cst_39 = arith.constant dense<0xFF800000> : vector<16xf32>
    %63 = vector.multi_reduction <maximumf>, %62, %cst_39 [1] : vector<16x16xf32> to vector<16xf32>
    %64 = vector.shape_cast %63 : vector<16xf32> to vector<16x1xf32>
    %65 = vector.broadcast %64 : vector<16x1xf32> to vector<16x16xf32>
    %66 = arith.subf %62, %65 : vector<16x16xf32>
    %67 = math.exp %66 : vector<16x16xf32>
    %cst_40 = arith.constant dense<0.000000e+00> : vector<16xf32>
    %68 = vector.multi_reduction <add>, %67, %cst_40 [1] : vector<16x16xf32> to vector<16xf32>
    %69 = vector.shape_cast %68 : vector<16xf32> to vector<16x1xf32>
    %70 = arith.truncf %67 : vector<16x16xf32> to vector<16x16xbf16>
    %cst_41 = arith.constant dense<0.000000e+00> : vector<16x32xf32>
    %71 = tpu.matmul %70, %61, %cst_41 {dimension_numbers = #tpu.dot_dimension_numbers<[1], [0], [0], [1], [0, 0, 1, 1], [], []>} : vector<16x16xbf16>, vector<16x32xbf16>, vector<16x32xf32> -> vector<16x32xf32>
    %72 = tpu.reciprocal %69 {approx = true} : vector<16x1xf32> -> vector<16x1xf32>
    %73 = vector.broadcast %72 : vector<16x1xf32> to vector<16x32xf32>
    %74 = arith.mulf %71, %73 : vector<16x32xf32>
    %c0_42 = arith.constant 0 : index
    %c96_43 = arith.constant 96 : index
    %75 = vector.load %arg9[%c0_42, %c96_43] : memref<16x128xf32, #tpu.memory_space<vmem>>, vector<16x32xf32>
    tpu.vector_store %arg9[%c0_42, %c96_43], %74 {strides = array<i32>} : memref<16x128xf32, #tpu.memory_space<vmem>>, vector<16x32xf32>,
    %c0_44 = arith.constant 0 : index
    %c0_45 = arith.constant 0 : index
    %76 = vector.load %arg9[%c0_44, %c0_45] : memref<16x128xf32, #tpu.memory_space<vmem>>, vector<16x128xf32>
    %77 = arith.truncf %76 : vector<16x128xf32> to vector<16x128xbf16>
    %c0_46 = arith.constant 0 : index
    %c0_47 = arith.constant 0 : index
    %78 = vector.load %arg4[%c0_46, %c0_47] : memref<128x128xbf16, #tpu.memory_space<vmem>>, vector<128x128xbf16>
    %cst_48 = arith.constant dense<0.000000e+00> : vector<16x128xf32>
    %79 = tpu.matmul %77, %78, %cst_48 {dimension_numbers = #tpu.dot_dimension_numbers<[1], [0], [0], [1], [0, 0, 1, 1], [], []>} : vector<16x128xbf16>, vector<128x128xbf16>, vector<16x128xf32> -> vector<16x128xf32>
    %c0_49 = arith.constant 0 : index
    %c0_50 = arith.constant 0 : index
    %80 = vector.load %arg5[%c0_49, %c0_50] : memref<1x128xf32, #tpu.memory_space<vmem>>, vector<1x128xf32>
    %81 = vector.broadcast %80 : vector<1x128xf32> to vector<16x128xf32>
    %82 = arith.addf %79, %81 : vector<16x128xf32>
    %c0_51 = arith.constant 0 : index
    %c0_52 = arith.constant 0 : index
    %83 = vector.load %arg6[%c0_51, %c0_52] : memref<16x128xf32, #tpu.memory_space<vmem>>, vector<16x128xf32>
    %84 = arith.addf %82, %83 : vector<16x128xf32>
    %c0_53 = arith.constant 0 : index
    %c0_54 = arith.constant 0 : index
    %85 = vector.load %arg7[%c0_53, %c0_54] : memref<16x128xf32, #tpu.memory_space<vmem>>, vector<16x128xf32>
    tpu.vector_store %arg7[%c0_53, %c0_54], %84 {strides = array<i32>} : memref<16x128xf32, #tpu.memory_space<vmem>>, vector<16x128xf32>,
    return
  }
  func.func @transform_0(%arg0: i32) -> (i32, i32) {
    %c0_i32 = arith.constant 0 : i32
    %c0_i32_0 = arith.constant 0 : i32
    return %arg0, %c0_i32 : i32, i32
  }
  func.func @transform_1(%arg0: i32) -> (i32, i32) {
    %c0_i32 = arith.constant 0 : i32
    %c0_i32_0 = arith.constant 0 : i32
    %c0_i32_1 = arith.constant 0 : i32
    return %c0_i32, %c0_i32_0 : i32, i32
  }
  func.func @transform_2(%arg0: i32) -> (i32, i32) {
    %c0_i32 = arith.constant 0 : i32
    %c0_i32_0 = arith.constant 0 : i32
    %c0_i32_1 = arith.constant 0 : i32
    return %c0_i32, %c0_i32_0 : i32, i32
  }
  func.func @transform_3(%arg0: i32) -> (i32, i32) {
    %c0_i32 = arith.constant 0 : i32
    %c0_i32_0 = arith.constant 0 : i32
    %c0_i32_1 = arith.constant 0 : i32
    return %c0_i32, %c0_i32_0 : i32, i32
  }
  func.func @transform_4(%arg0: i32) -> (i32, i32) {
    %c0_i32 = arith.constant 0 : i32
    %c0_i32_0 = arith.constant 0 : i32
    %c0_i32_1 = arith.constant 0 : i32
    return %c0_i32, %c0_i32_0 : i32, i32
  }
  func.func @transform_5(%arg0: i32) -> (i32, i32) {
    %c0_i32 = arith.constant 0 : i32
    %c0_i32_0 = arith.constant 0 : i32
    return %arg0, %c0_i32 : i32, i32
  }
  func.func @transform_6(%arg0: i32) -> (i32, i32) {
    %c0_i32 = arith.constant 0 : i32
    %c0_i32_0 = arith.constant 0 : i32
    return %arg0, %c0_i32 : i32, i32
  }
}

module attributes {stable_mosaic.version = 11 : i64} {
  func.func @_dilated_mha_kernel(%arg0: i32, %arg1: memref<16x128xbf16, #tpu.memory_space<vmem>>, %arg2: memref<128x384xbf16, #tpu.memory_space<vmem>>, %arg3: memref<1x384xf32, #tpu.memory_space<vmem>>, %arg4: memref<128x128xbf16, #tpu.memory_space<vmem>>, %arg5: memref<1x128xf32, #tpu.memory_space<vmem>>, %arg6: memref<16x128xf32, #tpu.memory_space<vmem>>, %arg7: memref<16x384xbf16, #tpu.memory_space<vmem>>, %arg8: memref<16x128xf32, #tpu.memory_space<vmem>>) attributes {dimension_semantics = [#tpu.dimension_semantics<parallel>], iteration_bounds = array<i64: 2>, scalar_prefetch = 0 : i64, scratch_operands = 2 : i64, tpu.core_type = #tpu.core_type<tc>, window_params = [{transform_indices = @transform_0, window_bounds = array<i64: 16, 128>}, {pipeline_mode = #tpu.pipeline_mode<synchronous>, transform_indices = @transform_1, window_bounds = array<i64: 128, 384>}, {pipeline_mode = #tpu.pipeline_mode<synchronous>, transform_indices = @transform_2, window_bounds = array<i64: 1, 384>}, {pipeline_mode = #tpu.pipeline_mode<synchronous>, transform_indices = @transform_3, window_bounds = array<i64: 128, 128>}, {pipeline_mode = #tpu.pipeline_mode<synchronous>, transform_indices = @transform_4, window_bounds = array<i64: 1, 128>}, {transform_indices = @transform_5, window_bounds = array<i64: 16, 128>}]} {
    %c0 = arith.constant 0 : index
    %c0_0 = arith.constant 0 : index
    %0 = vector.load %arg1[%c0, %c0_0] : memref<16x128xbf16, #tpu.memory_space<vmem>>, vector<16x128xbf16>
    %c0_1 = arith.constant 0 : index
    %c0_2 = arith.constant 0 : index
    %1 = vector.load %arg2[%c0_1, %c0_2] : memref<128x384xbf16, #tpu.memory_space<vmem>>, vector<128x384xbf16>
    %cst = arith.constant dense<0.000000e+00> : vector<16x384xf32>
    %2 = tpu.matmul %0, %1, %cst {dimension_numbers = #tpu.dot_dimension_numbers<[1], [0], [0], [1], [0, 0, 1, 1], [], []>} : vector<16x128xbf16>, vector<128x384xbf16>, vector<16x384xf32> -> vector<16x384xf32>
    %c0_3 = arith.constant 0 : index
    %c0_4 = arith.constant 0 : index
    %3 = vector.load %arg3[%c0_3, %c0_4] : memref<1x384xf32, #tpu.memory_space<vmem>>, vector<1x384xf32>
    %4 = vector.broadcast %3 : vector<1x384xf32> to vector<16x384xf32>
    %5 = arith.addf %2, %4 : vector<16x384xf32>
    %6 = arith.truncf %5 : vector<16x384xf32> to vector<16x384xbf16>
    %c0_5 = arith.constant 0 : index
    %c0_6 = arith.constant 0 : index
    %7 = vector.load %arg7[%c0_5, %c0_6] : memref<16x384xbf16, #tpu.memory_space<vmem>>, vector<16x384xbf16>
    tpu.vector_store %arg7[%c0_5, %c0_6], %6 {strides = array<i32>} : memref<16x384xbf16, #tpu.memory_space<vmem>>, vector<16x384xbf16>,
    %c0_7 = arith.constant 0 : index
    %c0_8 = arith.constant 0 : index
    %8 = vector.load %arg7[%c0_7, %c0_8] : memref<16x384xbf16, #tpu.memory_space<vmem>>, vector<8x32xbf16>
    %c0_9 = arith.constant 0 : index
    %c128 = arith.constant 128 : index
    %9 = vector.load %arg7[%c0_9, %c128] : memref<16x384xbf16, #tpu.memory_space<vmem>>, vector<8x32xbf16>
    %c0_10 = arith.constant 0 : index
    %c256 = arith.constant 256 : index
    %10 = vector.load %arg7[%c0_10, %c256] : memref<16x384xbf16, #tpu.memory_space<vmem>>, vector<8x32xbf16>
    "tpu.trace_start"() <{level = 10 : i32, message = "md,nd->mn"}> : () -> ()
    %cst_11 = arith.constant dense<0.000000e+00> : vector<8x8xf32>
    %11 = tpu.matmul %8, %9, %cst_11 {dimension_numbers = #tpu.dot_dimension_numbers<[1], [1], [0], [0], [0, 0, 1, 0], [], []>} : vector<8x32xbf16>, vector<8x32xbf16>, vector<8x8xf32> -> vector<8x8xf32>
    "tpu.trace_stop"() : () -> ()
    %cst_12 = arith.constant dense<0xFF800000> : vector<8xf32>
    %12 = vector.multi_reduction <maximumf>, %11, %cst_12 [1] : vector<8x8xf32> to vector<8xf32>
    %13 = vector.shape_cast %12 : vector<8xf32> to vector<8x1xf32>
    %14 = vector.broadcast %13 : vector<8x1xf32> to vector<8x8xf32>
    %15 = arith.subf %11, %14 : vector<8x8xf32>
    %16 = math.exp %15 : vector<8x8xf32>
    %cst_13 = arith.constant dense<0.000000e+00> : vector<8xf32>
    %17 = vector.multi_reduction <add>, %16, %cst_13 [1] : vector<8x8xf32> to vector<8xf32>
    %18 = vector.shape_cast %17 : vector<8xf32> to vector<8x1xf32>
    %19 = arith.truncf %16 : vector<8x8xf32> to vector<8x8xbf16>
    %cst_14 = arith.constant dense<0.000000e+00> : vector<8x32xf32>
    %20 = tpu.matmul %19, %10, %cst_14 {dimension_numbers = #tpu.dot_dimension_numbers<[1], [0], [0], [1], [0, 0, 1, 1], [], []>} : vector<8x8xbf16>, vector<8x32xbf16>, vector<8x32xf32> -> vector<8x32xf32>
    %21 = tpu.reciprocal %18 {approx = true} : vector<8x1xf32> -> vector<8x1xf32>
    %22 = vector.broadcast %21 : vector<8x1xf32> to vector<8x32xf32>
    %23 = arith.mulf %20, %22 : vector<8x32xf32>
    %c0_15 = arith.constant 0 : index
    %c0_16 = arith.constant 0 : index
    %24 = vector.load %arg8[%c0_15, %c0_16] : memref<16x128xf32, #tpu.memory_space<vmem>>, vector<8x32xf32>
    tpu.vector_store %arg8[%c0_15, %c0_16], %23 {strides = array<i32>} : memref<16x128xf32, #tpu.memory_space<vmem>>, vector<8x32xf32>,
    %c8 = arith.constant 8 : index
    %c0_17 = arith.constant 0 : index
    %25 = vector.load %arg7[%c8, %c0_17] : memref<16x384xbf16, #tpu.memory_space<vmem>>, vector<8x32xbf16>
    %c8_18 = arith.constant 8 : index
    %c128_19 = arith.constant 128 : index
    %26 = vector.load %arg7[%c8_18, %c128_19] : memref<16x384xbf16, #tpu.memory_space<vmem>>, vector<8x32xbf16>
    %c8_20 = arith.constant 8 : index
    %c256_21 = arith.constant 256 : index
    %27 = vector.load %arg7[%c8_20, %c256_21] : memref<16x384xbf16, #tpu.memory_space<vmem>>, vector<8x32xbf16>
    "tpu.trace_start"() <{level = 10 : i32, message = "md,nd->mn"}> : () -> ()
    %cst_22 = arith.constant dense<0.000000e+00> : vector<8x8xf32>
    %28 = tpu.matmul %25, %26, %cst_22 {dimension_numbers = #tpu.dot_dimension_numbers<[1], [1], [0], [0], [0, 0, 1, 0], [], []>} : vector<8x32xbf16>, vector<8x32xbf16>, vector<8x8xf32> -> vector<8x8xf32>
    "tpu.trace_stop"() : () -> ()
    %cst_23 = arith.constant dense<0xFF800000> : vector<8xf32>
    %29 = vector.multi_reduction <maximumf>, %28, %cst_23 [1] : vector<8x8xf32> to vector<8xf32>
    %30 = vector.shape_cast %29 : vector<8xf32> to vector<8x1xf32>
    %31 = vector.broadcast %30 : vector<8x1xf32> to vector<8x8xf32>
    %32 = arith.subf %28, %31 : vector<8x8xf32>
    %33 = math.exp %32 : vector<8x8xf32>
    %cst_24 = arith.constant dense<0.000000e+00> : vector<8xf32>
    %34 = vector.multi_reduction <add>, %33, %cst_24 [1] : vector<8x8xf32> to vector<8xf32>
    %35 = vector.shape_cast %34 : vector<8xf32> to vector<8x1xf32>
    %36 = arith.truncf %33 : vector<8x8xf32> to vector<8x8xbf16>
    %cst_25 = arith.constant dense<0.000000e+00> : vector<8x32xf32>
    %37 = tpu.matmul %36, %27, %cst_25 {dimension_numbers = #tpu.dot_dimension_numbers<[1], [0], [0], [1], [0, 0, 1, 1], [], []>} : vector<8x8xbf16>, vector<8x32xbf16>, vector<8x32xf32> -> vector<8x32xf32>
    %38 = tpu.reciprocal %35 {approx = true} : vector<8x1xf32> -> vector<8x1xf32>
    %39 = vector.broadcast %38 : vector<8x1xf32> to vector<8x32xf32>
    %40 = arith.mulf %37, %39 : vector<8x32xf32>
    %c8_26 = arith.constant 8 : index
    %c0_27 = arith.constant 0 : index
    %41 = vector.load %arg8[%c8_26, %c0_27] : memref<16x128xf32, #tpu.memory_space<vmem>>, vector<8x32xf32>
    tpu.vector_store %arg8[%c8_26, %c0_27], %40 {strides = array<i32>} : memref<16x128xf32, #tpu.memory_space<vmem>>, vector<8x32xf32>,
    %c0_28 = arith.constant 0 : index
    %c32 = arith.constant 32 : index
    %42 = vector.load %arg7[%c0_28, %c32] : memref<16x384xbf16, #tpu.memory_space<vmem>>, vector<8x32xbf16>
    %c0_29 = arith.constant 0 : index
    %c160 = arith.constant 160 : index
    %43 = vector.load %arg7[%c0_29, %c160] : memref<16x384xbf16, #tpu.memory_space<vmem>>, vector<8x32xbf16>
    %c0_30 = arith.constant 0 : index
    %c288 = arith.constant 288 : index
    %44 = vector.load %arg7[%c0_30, %c288] : memref<16x384xbf16, #tpu.memory_space<vmem>>, vector<8x32xbf16>
    "tpu.trace_start"() <{level = 10 : i32, message = "md,nd->mn"}> : () -> ()
    %cst_31 = arith.constant dense<0.000000e+00> : vector<8x8xf32>
    %45 = tpu.matmul %42, %43, %cst_31 {dimension_numbers = #tpu.dot_dimension_numbers<[1], [1], [0], [0], [0, 0, 1, 0], [], []>} : vector<8x32xbf16>, vector<8x32xbf16>, vector<8x8xf32> -> vector<8x8xf32>
    "tpu.trace_stop"() : () -> ()
    %cst_32 = arith.constant dense<0xFF800000> : vector<8xf32>
    %46 = vector.multi_reduction <maximumf>, %45, %cst_32 [1] : vector<8x8xf32> to vector<8xf32>
    %47 = vector.shape_cast %46 : vector<8xf32> to vector<8x1xf32>
    %48 = vector.broadcast %47 : vector<8x1xf32> to vector<8x8xf32>
    %49 = arith.subf %45, %48 : vector<8x8xf32>
    %50 = math.exp %49 : vector<8x8xf32>
    %cst_33 = arith.constant dense<0.000000e+00> : vector<8xf32>
    %51 = vector.multi_reduction <add>, %50, %cst_33 [1] : vector<8x8xf32> to vector<8xf32>
    %52 = vector.shape_cast %51 : vector<8xf32> to vector<8x1xf32>
    %53 = arith.truncf %50 : vector<8x8xf32> to vector<8x8xbf16>
    %cst_34 = arith.constant dense<0.000000e+00> : vector<8x32xf32>
    %54 = tpu.matmul %53, %44, %cst_34 {dimension_numbers = #tpu.dot_dimension_numbers<[1], [0], [0], [1], [0, 0, 1, 1], [], []>} : vector<8x8xbf16>, vector<8x32xbf16>, vector<8x32xf32> -> vector<8x32xf32>
    %55 = tpu.reciprocal %52 {approx = true} : vector<8x1xf32> -> vector<8x1xf32>
    %56 = vector.broadcast %55 : vector<8x1xf32> to vector<8x32xf32>
    %57 = arith.mulf %54, %56 : vector<8x32xf32>
    %c0_35 = arith.constant 0 : index
    %c32_36 = arith.constant 32 : index
    %58 = vector.load %arg8[%c0_35, %c32_36] : memref<16x128xf32, #tpu.memory_space<vmem>>, vector<8x32xf32>
    tpu.vector_store %arg8[%c0_35, %c32_36], %57 {strides = array<i32>} : memref<16x128xf32, #tpu.memory_space<vmem>>, vector<8x32xf32>,
    %c8_37 = arith.constant 8 : index
    %c32_38 = arith.constant 32 : index
    %59 = vector.load %arg7[%c8_37, %c32_38] : memref<16x384xbf16, #tpu.memory_space<vmem>>, vector<8x32xbf16>
    %c8_39 = arith.constant 8 : index
    %c160_40 = arith.constant 160 : index
    %60 = vector.load %arg7[%c8_39, %c160_40] : memref<16x384xbf16, #tpu.memory_space<vmem>>, vector<8x32xbf16>
    %c8_41 = arith.constant 8 : index
    %c288_42 = arith.constant 288 : index
    %61 = vector.load %arg7[%c8_41, %c288_42] : memref<16x384xbf16, #tpu.memory_space<vmem>>, vector<8x32xbf16>
    "tpu.trace_start"() <{level = 10 : i32, message = "md,nd->mn"}> : () -> ()
    %cst_43 = arith.constant dense<0.000000e+00> : vector<8x8xf32>
    %62 = tpu.matmul %59, %60, %cst_43 {dimension_numbers = #tpu.dot_dimension_numbers<[1], [1], [0], [0], [0, 0, 1, 0], [], []>} : vector<8x32xbf16>, vector<8x32xbf16>, vector<8x8xf32> -> vector<8x8xf32>
    "tpu.trace_stop"() : () -> ()
    %cst_44 = arith.constant dense<0xFF800000> : vector<8xf32>
    %63 = vector.multi_reduction <maximumf>, %62, %cst_44 [1] : vector<8x8xf32> to vector<8xf32>
    %64 = vector.shape_cast %63 : vector<8xf32> to vector<8x1xf32>
    %65 = vector.broadcast %64 : vector<8x1xf32> to vector<8x8xf32>
    %66 = arith.subf %62, %65 : vector<8x8xf32>
    %67 = math.exp %66 : vector<8x8xf32>
    %cst_45 = arith.constant dense<0.000000e+00> : vector<8xf32>
    %68 = vector.multi_reduction <add>, %67, %cst_45 [1] : vector<8x8xf32> to vector<8xf32>
    %69 = vector.shape_cast %68 : vector<8xf32> to vector<8x1xf32>
    %70 = arith.truncf %67 : vector<8x8xf32> to vector<8x8xbf16>
    %cst_46 = arith.constant dense<0.000000e+00> : vector<8x32xf32>
    %71 = tpu.matmul %70, %61, %cst_46 {dimension_numbers = #tpu.dot_dimension_numbers<[1], [0], [0], [1], [0, 0, 1, 1], [], []>} : vector<8x8xbf16>, vector<8x32xbf16>, vector<8x32xf32> -> vector<8x32xf32>
    %72 = tpu.reciprocal %69 {approx = true} : vector<8x1xf32> -> vector<8x1xf32>
    %73 = vector.broadcast %72 : vector<8x1xf32> to vector<8x32xf32>
    %74 = arith.mulf %71, %73 : vector<8x32xf32>
    %c8_47 = arith.constant 8 : index
    %c32_48 = arith.constant 32 : index
    %75 = vector.load %arg8[%c8_47, %c32_48] : memref<16x128xf32, #tpu.memory_space<vmem>>, vector<8x32xf32>
    tpu.vector_store %arg8[%c8_47, %c32_48], %74 {strides = array<i32>} : memref<16x128xf32, #tpu.memory_space<vmem>>, vector<8x32xf32>,
    %c0_49 = arith.constant 0 : index
    %c64 = arith.constant 64 : index
    %76 = vector.load %arg7[%c0_49, %c64] : memref<16x384xbf16, #tpu.memory_space<vmem>>, vector<8x32xbf16>
    %c0_50 = arith.constant 0 : index
    %c192 = arith.constant 192 : index
    %77 = vector.load %arg7[%c0_50, %c192] : memref<16x384xbf16, #tpu.memory_space<vmem>>, vector<8x32xbf16>
    %c0_51 = arith.constant 0 : index
    %c320 = arith.constant 320 : index
    %78 = vector.load %arg7[%c0_51, %c320] : memref<16x384xbf16, #tpu.memory_space<vmem>>, vector<8x32xbf16>
    "tpu.trace_start"() <{level = 10 : i32, message = "md,nd->mn"}> : () -> ()
    %cst_52 = arith.constant dense<0.000000e+00> : vector<8x8xf32>
    %79 = tpu.matmul %76, %77, %cst_52 {dimension_numbers = #tpu.dot_dimension_numbers<[1], [1], [0], [0], [0, 0, 1, 0], [], []>} : vector<8x32xbf16>, vector<8x32xbf16>, vector<8x8xf32> -> vector<8x8xf32>
    "tpu.trace_stop"() : () -> ()
    %cst_53 = arith.constant dense<0xFF800000> : vector<8xf32>
    %80 = vector.multi_reduction <maximumf>, %79, %cst_53 [1] : vector<8x8xf32> to vector<8xf32>
    %81 = vector.shape_cast %80 : vector<8xf32> to vector<8x1xf32>
    %82 = vector.broadcast %81 : vector<8x1xf32> to vector<8x8xf32>
    %83 = arith.subf %79, %82 : vector<8x8xf32>
    %84 = math.exp %83 : vector<8x8xf32>
    %cst_54 = arith.constant dense<0.000000e+00> : vector<8xf32>
    %85 = vector.multi_reduction <add>, %84, %cst_54 [1] : vector<8x8xf32> to vector<8xf32>
    %86 = vector.shape_cast %85 : vector<8xf32> to vector<8x1xf32>
    %87 = arith.truncf %84 : vector<8x8xf32> to vector<8x8xbf16>
    %cst_55 = arith.constant dense<0.000000e+00> : vector<8x32xf32>
    %88 = tpu.matmul %87, %78, %cst_55 {dimension_numbers = #tpu.dot_dimension_numbers<[1], [0], [0], [1], [0, 0, 1, 1], [], []>} : vector<8x8xbf16>, vector<8x32xbf16>, vector<8x32xf32> -> vector<8x32xf32>
    %89 = tpu.reciprocal %86 {approx = true} : vector<8x1xf32> -> vector<8x1xf32>
    %90 = vector.broadcast %89 : vector<8x1xf32> to vector<8x32xf32>
    %91 = arith.mulf %88, %90 : vector<8x32xf32>
    %c0_56 = arith.constant 0 : index
    %c64_57 = arith.constant 64 : index
    %92 = vector.load %arg8[%c0_56, %c64_57] : memref<16x128xf32, #tpu.memory_space<vmem>>, vector<8x32xf32>
    tpu.vector_store %arg8[%c0_56, %c64_57], %91 {strides = array<i32>} : memref<16x128xf32, #tpu.memory_space<vmem>>, vector<8x32xf32>,
    %c8_58 = arith.constant 8 : index
    %c64_59 = arith.constant 64 : index
    %93 = vector.load %arg7[%c8_58, %c64_59] : memref<16x384xbf16, #tpu.memory_space<vmem>>, vector<8x32xbf16>
    %c8_60 = arith.constant 8 : index
    %c192_61 = arith.constant 192 : index
    %94 = vector.load %arg7[%c8_60, %c192_61] : memref<16x384xbf16, #tpu.memory_space<vmem>>, vector<8x32xbf16>
    %c8_62 = arith.constant 8 : index
    %c320_63 = arith.constant 320 : index
    %95 = vector.load %arg7[%c8_62, %c320_63] : memref<16x384xbf16, #tpu.memory_space<vmem>>, vector<8x32xbf16>
    "tpu.trace_start"() <{level = 10 : i32, message = "md,nd->mn"}> : () -> ()
    %cst_64 = arith.constant dense<0.000000e+00> : vector<8x8xf32>
    %96 = tpu.matmul %93, %94, %cst_64 {dimension_numbers = #tpu.dot_dimension_numbers<[1], [1], [0], [0], [0, 0, 1, 0], [], []>} : vector<8x32xbf16>, vector<8x32xbf16>, vector<8x8xf32> -> vector<8x8xf32>
    "tpu.trace_stop"() : () -> ()
    %cst_65 = arith.constant dense<0xFF800000> : vector<8xf32>
    %97 = vector.multi_reduction <maximumf>, %96, %cst_65 [1] : vector<8x8xf32> to vector<8xf32>
    %98 = vector.shape_cast %97 : vector<8xf32> to vector<8x1xf32>
    %99 = vector.broadcast %98 : vector<8x1xf32> to vector<8x8xf32>
    %100 = arith.subf %96, %99 : vector<8x8xf32>
    %101 = math.exp %100 : vector<8x8xf32>
    %cst_66 = arith.constant dense<0.000000e+00> : vector<8xf32>
    %102 = vector.multi_reduction <add>, %101, %cst_66 [1] : vector<8x8xf32> to vector<8xf32>
    %103 = vector.shape_cast %102 : vector<8xf32> to vector<8x1xf32>
    %104 = arith.truncf %101 : vector<8x8xf32> to vector<8x8xbf16>
    %cst_67 = arith.constant dense<0.000000e+00> : vector<8x32xf32>
    %105 = tpu.matmul %104, %95, %cst_67 {dimension_numbers = #tpu.dot_dimension_numbers<[1], [0], [0], [1], [0, 0, 1, 1], [], []>} : vector<8x8xbf16>, vector<8x32xbf16>, vector<8x32xf32> -> vector<8x32xf32>
    %106 = tpu.reciprocal %103 {approx = true} : vector<8x1xf32> -> vector<8x1xf32>
    %107 = vector.broadcast %106 : vector<8x1xf32> to vector<8x32xf32>
    %108 = arith.mulf %105, %107 : vector<8x32xf32>
    %c8_68 = arith.constant 8 : index
    %c64_69 = arith.constant 64 : index
    %109 = vector.load %arg8[%c8_68, %c64_69] : memref<16x128xf32, #tpu.memory_space<vmem>>, vector<8x32xf32>
    tpu.vector_store %arg8[%c8_68, %c64_69], %108 {strides = array<i32>} : memref<16x128xf32, #tpu.memory_space<vmem>>, vector<8x32xf32>,
    %c0_70 = arith.constant 0 : index
    %c96 = arith.constant 96 : index
    %110 = vector.load %arg7[%c0_70, %c96] : memref<16x384xbf16, #tpu.memory_space<vmem>>, vector<8x32xbf16>
    %c0_71 = arith.constant 0 : index
    %c224 = arith.constant 224 : index
    %111 = vector.load %arg7[%c0_71, %c224] : memref<16x384xbf16, #tpu.memory_space<vmem>>, vector<8x32xbf16>
    %c0_72 = arith.constant 0 : index
    %c352 = arith.constant 352 : index
    %112 = vector.load %arg7[%c0_72, %c352] : memref<16x384xbf16, #tpu.memory_space<vmem>>, vector<8x32xbf16>
    "tpu.trace_start"() <{level = 10 : i32, message = "md,nd->mn"}> : () -> ()
    %cst_73 = arith.constant dense<0.000000e+00> : vector<8x8xf32>
    %113 = tpu.matmul %110, %111, %cst_73 {dimension_numbers = #tpu.dot_dimension_numbers<[1], [1], [0], [0], [0, 0, 1, 0], [], []>} : vector<8x32xbf16>, vector<8x32xbf16>, vector<8x8xf32> -> vector<8x8xf32>
    "tpu.trace_stop"() : () -> ()
    %cst_74 = arith.constant dense<0xFF800000> : vector<8xf32>
    %114 = vector.multi_reduction <maximumf>, %113, %cst_74 [1] : vector<8x8xf32> to vector<8xf32>
    %115 = vector.shape_cast %114 : vector<8xf32> to vector<8x1xf32>
    %116 = vector.broadcast %115 : vector<8x1xf32> to vector<8x8xf32>
    %117 = arith.subf %113, %116 : vector<8x8xf32>
    %118 = math.exp %117 : vector<8x8xf32>
    %cst_75 = arith.constant dense<0.000000e+00> : vector<8xf32>
    %119 = vector.multi_reduction <add>, %118, %cst_75 [1] : vector<8x8xf32> to vector<8xf32>
    %120 = vector.shape_cast %119 : vector<8xf32> to vector<8x1xf32>
    %121 = arith.truncf %118 : vector<8x8xf32> to vector<8x8xbf16>
    %cst_76 = arith.constant dense<0.000000e+00> : vector<8x32xf32>
    %122 = tpu.matmul %121, %112, %cst_76 {dimension_numbers = #tpu.dot_dimension_numbers<[1], [0], [0], [1], [0, 0, 1, 1], [], []>} : vector<8x8xbf16>, vector<8x32xbf16>, vector<8x32xf32> -> vector<8x32xf32>
    %123 = tpu.reciprocal %120 {approx = true} : vector<8x1xf32> -> vector<8x1xf32>
    %124 = vector.broadcast %123 : vector<8x1xf32> to vector<8x32xf32>
    %125 = arith.mulf %122, %124 : vector<8x32xf32>
    %c0_77 = arith.constant 0 : index
    %c96_78 = arith.constant 96 : index
    %126 = vector.load %arg8[%c0_77, %c96_78] : memref<16x128xf32, #tpu.memory_space<vmem>>, vector<8x32xf32>
    tpu.vector_store %arg8[%c0_77, %c96_78], %125 {strides = array<i32>} : memref<16x128xf32, #tpu.memory_space<vmem>>, vector<8x32xf32>,
    %c8_79 = arith.constant 8 : index
    %c96_80 = arith.constant 96 : index
    %127 = vector.load %arg7[%c8_79, %c96_80] : memref<16x384xbf16, #tpu.memory_space<vmem>>, vector<8x32xbf16>
    %c8_81 = arith.constant 8 : index
    %c224_82 = arith.constant 224 : index
    %128 = vector.load %arg7[%c8_81, %c224_82] : memref<16x384xbf16, #tpu.memory_space<vmem>>, vector<8x32xbf16>
    %c8_83 = arith.constant 8 : index
    %c352_84 = arith.constant 352 : index
    %129 = vector.load %arg7[%c8_83, %c352_84] : memref<16x384xbf16, #tpu.memory_space<vmem>>, vector<8x32xbf16>
    "tpu.trace_start"() <{level = 10 : i32, message = "md,nd->mn"}> : () -> ()
    %cst_85 = arith.constant dense<0.000000e+00> : vector<8x8xf32>
    %130 = tpu.matmul %127, %128, %cst_85 {dimension_numbers = #tpu.dot_dimension_numbers<[1], [1], [0], [0], [0, 0, 1, 0], [], []>} : vector<8x32xbf16>, vector<8x32xbf16>, vector<8x8xf32> -> vector<8x8xf32>
    "tpu.trace_stop"() : () -> ()
    %cst_86 = arith.constant dense<0xFF800000> : vector<8xf32>
    %131 = vector.multi_reduction <maximumf>, %130, %cst_86 [1] : vector<8x8xf32> to vector<8xf32>
    %132 = vector.shape_cast %131 : vector<8xf32> to vector<8x1xf32>
    %133 = vector.broadcast %132 : vector<8x1xf32> to vector<8x8xf32>
    %134 = arith.subf %130, %133 : vector<8x8xf32>
    %135 = math.exp %134 : vector<8x8xf32>
    %cst_87 = arith.constant dense<0.000000e+00> : vector<8xf32>
    %136 = vector.multi_reduction <add>, %135, %cst_87 [1] : vector<8x8xf32> to vector<8xf32>
    %137 = vector.shape_cast %136 : vector<8xf32> to vector<8x1xf32>
    %138 = arith.truncf %135 : vector<8x8xf32> to vector<8x8xbf16>
    %cst_88 = arith.constant dense<0.000000e+00> : vector<8x32xf32>
    %139 = tpu.matmul %138, %129, %cst_88 {dimension_numbers = #tpu.dot_dimension_numbers<[1], [0], [0], [1], [0, 0, 1, 1], [], []>} : vector<8x8xbf16>, vector<8x32xbf16>, vector<8x32xf32> -> vector<8x32xf32>
    %140 = tpu.reciprocal %137 {approx = true} : vector<8x1xf32> -> vector<8x1xf32>
    %141 = vector.broadcast %140 : vector<8x1xf32> to vector<8x32xf32>
    %142 = arith.mulf %139, %141 : vector<8x32xf32>
    %c8_89 = arith.constant 8 : index
    %c96_90 = arith.constant 96 : index
    %143 = vector.load %arg8[%c8_89, %c96_90] : memref<16x128xf32, #tpu.memory_space<vmem>>, vector<8x32xf32>
    tpu.vector_store %arg8[%c8_89, %c96_90], %142 {strides = array<i32>} : memref<16x128xf32, #tpu.memory_space<vmem>>, vector<8x32xf32>,
    %c0_91 = arith.constant 0 : index
    %c0_92 = arith.constant 0 : index
    %144 = vector.load %arg8[%c0_91, %c0_92] : memref<16x128xf32, #tpu.memory_space<vmem>>, vector<16x128xf32>
    %145 = arith.truncf %144 : vector<16x128xf32> to vector<16x128xbf16>
    %c0_93 = arith.constant 0 : index
    %c0_94 = arith.constant 0 : index
    %146 = vector.load %arg4[%c0_93, %c0_94] : memref<128x128xbf16, #tpu.memory_space<vmem>>, vector<128x128xbf16>
    %cst_95 = arith.constant dense<0.000000e+00> : vector<16x128xf32>
    %147 = tpu.matmul %145, %146, %cst_95 {dimension_numbers = #tpu.dot_dimension_numbers<[1], [0], [0], [1], [0, 0, 1, 1], [], []>} : vector<16x128xbf16>, vector<128x128xbf16>, vector<16x128xf32> -> vector<16x128xf32>
    %c0_96 = arith.constant 0 : index
    %c0_97 = arith.constant 0 : index
    %148 = vector.load %arg5[%c0_96, %c0_97] : memref<1x128xf32, #tpu.memory_space<vmem>>, vector<1x128xf32>
    %149 = vector.broadcast %148 : vector<1x128xf32> to vector<16x128xf32>
    %150 = arith.addf %147, %149 : vector<16x128xf32>
    %c0_98 = arith.constant 0 : index
    %c0_99 = arith.constant 0 : index
    %151 = vector.load %arg6[%c0_98, %c0_99] : memref<16x128xf32, #tpu.memory_space<vmem>>, vector<16x128xf32>
    tpu.vector_store %arg6[%c0_98, %c0_99], %150 {strides = array<i32>} : memref<16x128xf32, #tpu.memory_space<vmem>>, vector<16x128xf32>,
    return
  }
  func.func @transform_0(%arg0: i32) -> (i32, i32) {
    %c0_i32 = arith.constant 0 : i32
    %c0_i32_0 = arith.constant 0 : i32
    return %arg0, %c0_i32 : i32, i32
  }
  func.func @transform_1(%arg0: i32) -> (i32, i32) {
    %c0_i32 = arith.constant 0 : i32
    %c0_i32_0 = arith.constant 0 : i32
    %c0_i32_1 = arith.constant 0 : i32
    return %c0_i32, %c0_i32_0 : i32, i32
  }
  func.func @transform_2(%arg0: i32) -> (i32, i32) {
    %c0_i32 = arith.constant 0 : i32
    %c0_i32_0 = arith.constant 0 : i32
    %c0_i32_1 = arith.constant 0 : i32
    return %c0_i32, %c0_i32_0 : i32, i32
  }
  func.func @transform_3(%arg0: i32) -> (i32, i32) {
    %c0_i32 = arith.constant 0 : i32
    %c0_i32_0 = arith.constant 0 : i32
    %c0_i32_1 = arith.constant 0 : i32
    return %c0_i32, %c0_i32_0 : i32, i32
  }
  func.func @transform_4(%arg0: i32) -> (i32, i32) {
    %c0_i32 = arith.constant 0 : i32
    %c0_i32_0 = arith.constant 0 : i32
    %c0_i32_1 = arith.constant 0 : i32
    return %c0_i32, %c0_i32_0 : i32, i32
  }
  func.func @transform_5(%arg0: i32) -> (i32, i32) {
    %c0_i32 = arith.constant 0 : i32
    %c0_i32_0 = arith.constant 0 : i32
    return %arg0, %c0_i32 : i32, i32
  }
}

</mosaic_0001>

<llo_original>
// kernel: longnet_transformer_forward.3
$region0: #{longnet_transformer_forward.3}
  #allocation0 [shape = 'u32[]', space=smem, size = 0x4, offset = 0x4, fixed_abs, tag = 'smem constant byte address 0x4 - core index']
  #allocation1 [shape = 'u32[144,128]{1,0:T(1,128)}', space=vmem, size = 0x12000, scoped, tag = 'internal scratch']
  #allocation2 [shape = 'bf16[16,384]{1,0:T(16,128)(2,1)}', space=vmem, size = 0x3000, scoped, tag = 'scratch operand']
  #allocation3 [shape = 'f32[16,128]{1,0:T(8,128)}', space=vmem, size = 0x2000, scoped, tag = 'scratch operand']
  %s0 = inlined_call_operand.vmem [shape: bf16[32,256], index: 0, kind: input, shape index: {}]
  %s1 = inlined_call_operand.vmem [shape: bf16[128,384], index: 1, kind: input, shape index: {}]
  %s2 = inlined_call_operand.vmem [shape: f32[1,384], index: 2, kind: input, shape index: {}]
  %s3 = inlined_call_operand.vmem [shape: bf16[128,128], index: 3, kind: input, shape index: {}]
  %s4 = inlined_call_operand.vmem [shape: f32[1,128], index: 4, kind: input, shape index: {}]
  %s5 = inlined_call_operand.vmem [shape: f32[32,128], index: 5, kind: input, shape index: {}, may-alias: {5,6}]
  %s6 = inlined_call_operand.vmem [shape: f32[32,128], index: 6, kind: output, shape index: {}, may-alias: {5,6}]
  %s7 = sld [smem:[#allocation0]]
  $region98: #{longnet_transformer_forward.3} parent=0
    _
  %s9 = ssub.s32 1, %s7
  %s10 = scalar_select 0, %s9, %s7
  $region1: #{longnet_transformer_forward.3} parent=0
    #allocation4 [shape = 'u8[8192]{0}', space=vmem, size = 0x2000, scoped, tag = 'input window, operand 0']
    loop: start=0, step=1, limit=4
    $region2: #{longnet_transformer_forward.3} parent=1 // loop_pre_header
      _
    $region3: #{longnet_transformer_forward.3} parent=1 // loop_header
      %s12 = sphi 0, %s16
      %p13 = scmp.ge.s32.totalorder %s12, 4
      %s22 = sphi 0, %s24
      %s25 = sphi 0, %s22
      %s26 = sphi 0, %s25
      %s42 = sphi 0, %s26
      %s46 = sphi 0, %s46
      %s48 = sphi 0, %s46
      %s49 = sphi 0, %s48
      %s63 = sphi 0, %s49
      %s67 = sphi 0, %s67
      %s69 = sphi 0, %s67
      %s70 = sphi 0, %s69
      %s84 = sphi 0, %s70
      %s88 = sphi 0, %s88
      %s90 = sphi 0, %s88
      %s91 = sphi 0, %s90
      %s105 = sphi 0, %s91
      %s109 = sphi 0, %s109
      %s111 = sphi 0, %s109
      %s112 = sphi 0, %s111
      %s126 = sphi 0, %s112
      %s132 = sphi 0, %s134
      %s135 = sphi 0, %s132
      %s136 = sphi 0, %s135
      %s152 = sphi 0, %s136
      %s158 = sphi 0, %s160
      %s161 = sphi 0, %s158
      %s162 = sphi 0, %s161
      %s178 = sphi 0, %s162
    $region4: #{longnet_transformer_forward.3} parent=1 // loop_header_branch
      %15 = sbr.rel (%p13) target = $region8
    $region5: #{longnet_transformer_forward.3} parent=1 // loop_body
      %s17 = ssub.s32 %s12, 1
      %s18 = ssub.s32 %s12, 2
      %s19 = sadd.s32 %s12, 1
      %s20 = ssub.s32 %s12, %s19
      %p21 = scmp.eq.s32.totalorder %s20, 0
      %s23 = sadd.s32 %s22, 1
      %s24 = scalar_select %p21, %s22, %s23
      %p27 = pneg %p21
      %p28 = scmp.eq.s32.totalorder %s12, 1
      %p29 = por %p27, %p28
      %p30 = scmp.ne.s32.totalorder %s22, %s25
      %p31 = scmp.eq.s32.totalorder %s12, 0
      %p32 = por %p30, %p31
      %p33 = scmp.ne.s32.totalorder %s22, %s25
      %p34 = scmp.eq.s32.totalorder %s17, 1
      %p35 = por %p33, %p34
      %p36 = scmp.ne.s32.totalorder %s25, %s26
      %p37 = scmp.eq.s32.totalorder %s17, 0
      %p38 = por %p36, %p37
      %p39 = scmp.ne.s32.totalorder %s25, %s26
      %p40 = scmp.eq.s32.totalorder %s18, 1
      %p41 = por %p39, %p40
      %p43 = scmp.ne.s32.totalorder %s26, %s42
      %p44 = scmp.eq.s32.totalorder %s18, 0
      %p45 = por %p43, %p44
      %s47 = sadd.s32 %s46, 1
      %p50 = scmp.eq.s32.totalorder %s12, 1
      %p51 = scmp.ne.s32.totalorder %s46, %s48
      %p52 = scmp.eq.s32.totalorder %s12, 0
      %p53 = por %p51, %p52
      %p54 = scmp.ne.s32.totalorder %s46, %s48
      %p55 = scmp.eq.s32.totalorder %s17, 1
      %p56 = por %p54, %p55
      %p57 = scmp.ne.s32.totalorder %s48, %s49
      %p58 = scmp.eq.s32.totalorder %s17, 0
      %p59 = por %p57, %p58
      %p60 = scmp.ne.s32.totalorder %s48, %s49
      %p61 = scmp.eq.s32.totalorder %s18, 1
      %p62 = por %p60, %p61
      %p64 = scmp.ne.s32.totalorder %s49, %s63
      %p65 = scmp.eq.s32.totalorder %s18, 0
      %p66 = por %p64, %p65
      %s68 = sadd.s32 %s67, 1
      %p71 = scmp.eq.s32.totalorder %s12, 1
      %p72 = scmp.ne.s32.totalorder %s67, %s69
      %p73 = scmp.eq.s32.totalorder %s12, 0
      %p74 = por %p72, %p73
      %p75 = scmp.ne.s32.totalorder %s67, %s69
      %p76 = scmp.eq.s32.totalorder %s17, 1
      %p77 = por %p75, %p76
      %p78 = scmp.ne.s32.totalorder %s69, %s70
      %p79 = scmp.eq.s32.totalorder %s17, 0
      %p80 = por %p78, %p79
      %p81 = scmp.ne.s32.totalorder %s69, %s70
      %p82 = scmp.eq.s32.totalorder %s18, 1
      %p83 = por %p81, %p82
      %p85 = scmp.ne.s32.totalorder %s70, %s84
      %p86 = scmp.eq.s32.totalorder %s18, 0
      %p87 = por %p85, %p86
      %s89 = sadd.s32 %s88, 1
      %p92 = scmp.eq.s32.totalorder %s12, 1
      %p93 = scmp.ne.s32.totalorder %s88, %s90
      %p94 = scmp.eq.s32.totalorder %s12, 0
      %p95 = por %p93, %p94
      %p96 = scmp.ne.s32.totalorder %s88, %s90
      %p97 = scmp.eq.s32.totalorder %s17, 1
      %p98 = por %p96, %p97
      %p99 = scmp.ne.s32.totalorder %s90, %s91
      %p100 = scmp.eq.s32.totalorder %s17, 0
      %p101 = por %p99, %p100
      %p102 = scmp.ne.s32.totalorder %s90, %s91
      %p103 = scmp.eq.s32.totalorder %s18, 1
      %p104 = por %p102, %p103
      %p106 = scmp.ne.s32.totalorder %s91, %s105
      %p107 = scmp.eq.s32.totalorder %s18, 0
      %p108 = por %p106, %p107
      %s110 = sadd.s32 %s109, 1
      %p113 = scmp.eq.s32.totalorder %s12, 1
      %p114 = scmp.ne.s32.totalorder %s109, %s111
      %p115 = scmp.eq.s32.totalorder %s12, 0
      %p116 = por %p114, %p115
      %p117 = scmp.ne.s32.totalorder %s109, %s111
      %p118 = scmp.eq.s32.totalorder %s17, 1
      %p119 = por %p117, %p118
      %p120 = scmp.ne.s32.totalorder %s111, %s112
      %p121 = scmp.eq.s32.totalorder %s17, 0
      %p122 = por %p120, %p121
      %p123 = scmp.ne.s32.totalorder %s111, %s112
      %p124 = scmp.eq.s32.totalorder %s18, 1
      %p125 = por %p123, %p124
      %p127 = scmp.ne.s32.totalorder %s112, %s126
      %p128 = scmp.eq.s32.totalorder %s18, 0
      %p129 = por %p127, %p128
      %s130 = ssub.s32 %s12, %s19
      %p131 = scmp.eq.s32.totalorder %s130, 0
      %s133 = sadd.s32 %s132, 1
      %s134 = scalar_select %p131, %s132, %s133
      %p137 = pneg %p131
      %p138 = scmp.eq.s32.totalorder %s12, 1
      %p139 = por %p137, %p138
      %p140 = scmp.ne.s32.totalorder %s132, %s135
      %p141 = scmp.eq.s32.totalorder %s12, 0
      %p142 = por %p140, %p141
      %p143 = scmp.ne.s32.totalorder %s132, %s135
      %p144 = scmp.eq.s32.totalorder %s17, 1
      %p145 = por %p143, %p144
      %p146 = scmp.ne.s32.totalorder %s135, %s136
      %p147 = scmp.eq.s32.totalorder %s17, 0
      %p148 = por %p146, %p147
      %p149 = scmp.ne.s32.totalorder %s135, %s136
      %p150 = scmp.eq.s32.totalorder %s18, 1
      %p151 = por %p149, %p150
      %p153 = scmp.ne.s32.totalorder %s136, %s152
      %p154 = scmp.eq.s32.totalorder %s18, 0
      %p155 = por %p153, %p154
      %s156 = ssub.s32 %s12, %s19
      %p157 = scmp.eq.s32.totalorder %s156, 0
      %s159 = sadd.s32 %s158, 1
      %s160 = scalar_select %p157, %s158, %s159
      %p163 = pneg %p157
      %p164 = scmp.eq.s32.totalorder %s12, 1
      %p165 = por %p163, %p164
      %p166 = scmp.ne.s32.totalorder %s158, %s161
      %p167 = scmp.eq.s32.totalorder %s12, 0
      %p168 = por %p166, %p167
      %p169 = scmp.ne.s32.totalorder %s158, %s161
      %p170 = scmp.eq.s32.totalorder %s17, 1
      %p171 = por %p169, %p170
      %p172 = scmp.ne.s32.totalorder %s161, %s162
      %p173 = scmp.eq.s32.totalorder %s17, 0
      %p174 = por %p172, %p173
      %p175 = scmp.ne.s32.totalorder %s161, %s162
      %p176 = scmp.eq.s32.totalorder %s18, 1
      %p177 = por %p175, %p176
      %p179 = scmp.ne.s32.totalorder %s162, %s178
      %p180 = scmp.eq.s32.totalorder %s18, 0
      %p181 = por %p179, %p180
      %p182 = scmp.le.s32.totalorder 1, %s12
      %p183 = scmp.lt.s32.totalorder %s12, 3
      %p184 = pnand %p182, %p183
      %p185 = pneg %p184
      // Predicated region
      $region9: #{longnet_transformer_forward.3} parent=5 // pred_check
        _
      $region10: #{longnet_transformer_forward.3} parent=5 // pred_check_branch
        %187 = sbr.rel (%p184) target = $region12
      $region11: #{longnet_transformer_forward.3} parent=5 // pred_region
        %s188 = ssub.s32 %s12, 1
        // Predicated region
        $region13: #{longnet_transformer_forward.3} parent=11 // pred_check
          %p189 = pneg %p59
        $region14: #{longnet_transformer_forward.3} parent=11 // pred_check_branch
          %191 = sbr.rel (%p189) target = $region16
        $region15: #{longnet_transformer_forward.3} parent=11 // pred_region
          _
        $region16: #{longnet_transformer_forward.3} parent=11 // pred_fallthru
          _
        // Predicated region
        $region17: #{longnet_transformer_forward.3} parent=11 // pred_check
          %p192 = pneg %p80
        $region18: #{longnet_transformer_forward.3} parent=11 // pred_check_branch
          %194 = sbr.rel (%p192) target = $region20
        $region19: #{longnet_transformer_forward.3} parent=11 // pred_region
          _
        $region20: #{longnet_transformer_forward.3} parent=11 // pred_fallthru
          _
        // Predicated region
        $region21: #{longnet_transformer_forward.3} parent=11 // pred_check
          %p195 = pneg %p101
        $region22: #{longnet_transformer_forward.3} parent=11 // pred_check_branch
          %197 = sbr.rel (%p195) target = $region24
        $region23: #{longnet_transformer_forward.3} parent=11 // pred_region
          _
        $region24: #{longnet_transformer_forward.3} parent=11 // pred_fallthru
          _
        // Predicated region
        $region25: #{longnet_transformer_forward.3} parent=11 // pred_check
          %p198 = pneg %p122
        $region26: #{longnet_transformer_forward.3} parent=11 // pred_check_branch
          %200 = sbr.rel (%p198) target = $region28
        $region27: #{longnet_transformer_forward.3} parent=11 // pred_region
          _
        $region28: #{longnet_transformer_forward.3} parent=11 // pred_fallthru
          _
      $region12: #{longnet_transformer_forward.3} parent=5 // pred_fallthru
        _
      %p201 = scmp.lt.s32.totalorder %s12, 2
      // Predicated region
      $region29: #{longnet_transformer_forward.3} parent=5 // pred_check
        %p202 = pneg %p201
      $region30: #{longnet_transformer_forward.3} parent=5 // pred_check_branch
        %204 = sbr.rel (%p202) target = $region32
      $region31: #{longnet_transformer_forward.3} parent=5 // pred_region
        // Predicated region
        $region33: #{longnet_transformer_forward.3} parent=31 // pred_check
          %p205 = pneg %p32
        $region34: #{longnet_transformer_forward.3} parent=31 // pred_check_branch
          %207 = sbr.rel (%p205) target = $region36
        $region35: #{longnet_transformer_forward.3} parent=31 // pred_region
          %s208 = sand.u32 %s22, 1
          %s209 = sand.u32 %s22, 1
          %s210 = smul.addr %s209, 8
          %s211 = scalar_lea.vmem [#allocation4], %s210
          %s212 = smul.u32 2, %s12
          %s213 = smul.addr %s212, 2
          %s214 = smul.addr %s213, 4
          %s215 = scalar_lea.vmem %s0, %s214
          // Predicated region
          $region37: #{longnet_transformer_forward.3} parent=35 // pred_check
            _
          $region38: #{longnet_transformer_forward.3} parent=35 // pred_check_branch
            %217 = sbr.rel (0) target = $region40
          $region39: #{longnet_transformer_forward.3} parent=35 // pred_region
            // Predicated region
            $region41: #{longnet_transformer_forward.3} parent=39 // pred_check
              _
            $region42: #{longnet_transformer_forward.3} parent=39 // pred_check_branch
              %219 = sbr.rel target = $region44
            $region43: #{longnet_transformer_forward.3} parent=39 // pred_region
              // Predicated region
              $region56: #{longnet_transformer_forward.3} parent=43 // pred_check
                _
              $region57: #{longnet_transformer_forward.3} parent=43 // pred_check_branch
                %236 = sbr.rel (0) target = $region59
              $region58: #{longnet_transformer_forward.3} parent=43 // pred_region
                loop: start=0, step=1, limit=1
                $region60: #{longnet_transformer_forward.3} parent=58 // loop_pre_header
                  _
                $region61: #{longnet_transformer_forward.3} parent=58 // loop_header
                  %s238 = sphi 0, %s242
                  %p239 = scmp.ge.s32.totalorder %s238, 1
                  %s243 = sphi %s215, %s215
                  %s244 = sphi %s211, %s211
                $region62: #{longnet_transformer_forward.3} parent=58 // loop_header_branch
                  %241 = sbr.rel (%p239) target = $region66
                $region63: #{longnet_transformer_forward.3} parent=58 // loop_body
                  _
                $region64: #{longnet_transformer_forward.3} parent=58 // loop_footer
                  %s242 = sadd.s32 1, %s238
                $region65: #{longnet_transformer_forward.3} parent=58 // loop_footer_branch
                  %237 = sbr.rel target = $region61
                $region66: #{longnet_transformer_forward.3} parent=58 // loop_exit
                  _
                loop: start=0, step=1, limit=1
                $region67: #{longnet_transformer_forward.3} parent=58 // loop_pre_header
                  _
                $region68: #{longnet_transformer_forward.3} parent=58 // loop_header
                  %s247 = sphi 0, %s251
                  %p248 = scmp.ge.s32.totalorder %s247, 1
                  %s252 = sphi %s215, %s215
                  %s253 = sphi %s211, %s211
                $region69: #{longnet_transformer_forward.3} parent=58 // loop_header_branch
                  %250 = sbr.rel (%p248) target = $region73
                $region70: #{longnet_transformer_forward.3} parent=58 // loop_body
                  %v254 = vld [vmem:[%s252] sm:$0xf]
                  %255 = vst [vmem:[%s253] sm:$0xf] %v254
                  %v256 = vld [vmem:[%s252 + $0x8] sm:$0xf]
                  %257 = vst [vmem:[%s253 + $0x4] sm:$0xf] %v256
                $region71: #{longnet_transformer_forward.3} parent=58 // loop_footer
                  %s251 = sadd.s32 1, %s247
                $region72: #{longnet_transformer_forward.3} parent=58 // loop_footer_branch
                  %246 = sbr.rel target = $region68
                $region73: #{longnet_transformer_forward.3} parent=58 // loop_exit
                  _
              $region59: #{longnet_transformer_forward.3} parent=43 // pred_fallthru
                _
            $region44: #{longnet_transformer_forward.3} parent=39 // pred_fallthru
              _
            // Predicated region
            $region45: #{longnet_transformer_forward.3} parent=39 // pred_check
              _
            $region46: #{longnet_transformer_forward.3} parent=39 // pred_check_branch
              %221 = sbr.rel (0) target = $region48
            $region47: #{longnet_transformer_forward.3} parent=39 // pred_region
              loop: start=0, step=1, limit=1
              $region49: #{longnet_transformer_forward.3} parent=47 // loop_pre_header
                _
              $region50: #{longnet_transformer_forward.3} parent=47 // loop_header
                %s224 = sphi 0, %s228
                %p225 = scmp.ge.s32.totalorder %s224, 1
                %s229 = sphi %s215, %s215
                %s230 = sphi %s211, %s211
              $region51: #{longnet_transformer_forward.3} parent=47 // loop_header_branch
                %227 = sbr.rel (%p225) target = $region55
              $region52: #{longnet_transformer_forward.3} parent=47 // loop_body
                %v231 = vld [vmem:[%s229] sm:$0xf]
                %232 = vst [vmem:[%s230] sm:$0xf] %v231
                %v233 = vld [vmem:[%s229 + $0x8] sm:$0xf]
                %234 = vst [vmem:[%s230 + $0x4] sm:$0xf] %v233
              $region53: #{longnet_transformer_forward.3} parent=47 // loop_footer
                %s228 = sadd.s32 1, %s224
              $region54: #{longnet_transformer_forward.3} parent=47 // loop_footer_branch
                %223 = sbr.rel target = $region50
              $region55: #{longnet_transformer_forward.3} parent=47 // loop_exit
                _
            $region48: #{longnet_transformer_forward.3} parent=39 // pred_fallthru
              _
          $region40: #{longnet_transformer_forward.3} parent=35 // pred_fallthru
            _
          %258 = vnop
        $region36: #{longnet_transformer_forward.3} parent=31 // pred_fallthru
          _
        // Predicated region
        $region74: #{longnet_transformer_forward.3} parent=31 // pred_check
          %p259 = pneg %p142
        $region75: #{longnet_transformer_forward.3} parent=31 // pred_check_branch
          %261 = sbr.rel (%p259) target = $region77
        $region76: #{longnet_transformer_forward.3} parent=31 // pred_region
          %s262 = smul.u32 2, %s12
          %p263 = scmp.lt.s32.totalorder %s262, 3
          %s264 = scalar_select %p263, %s262, 3
          %s265 = smul.addr %s264, 8
          %s266 = scalar_lea.vmem %s5, %s265
          %s267 = smul.u32 2, %s12
        $region77: #{longnet_transformer_forward.3} parent=31 // pred_fallthru
          _
      $region32: #{longnet_transformer_forward.3} parent=5 // pred_fallthru
        _
      %p268 = scmp.le.s32.totalorder 1, %s12
      %p269 = scmp.lt.s32.totalorder %s12, 3
      %p270 = pnand %p268, %p269
      %p271 = pneg %p270
      // Predicated region
      $region78: #{longnet_transformer_forward.3} parent=5 // pred_check
        _
      $region79: #{longnet_transformer_forward.3} parent=5 // pred_check_branch
        %273 = sbr.rel (%p270) target = $region81
      $region80: #{longnet_transformer_forward.3} parent=5 // pred_region
        %s274 = ssub.s32 %s12, 1
        %s275 = sand.u32 %s25, 1
        %s276 = sand.u32 %s25, 1
        %s277 = smul.addr %s276, 8
        %s278 = scalar_lea.vmem [#allocation4], %s277
        // Predicated region
        $region82: #{longnet_transformer_forward.3} parent=80 // pred_check
          %p279 = pneg %p38
        $region83: #{longnet_transformer_forward.3} parent=80 // pred_check_branch
          %281 = sbr.rel (%p279) target = $region85
        $region84: #{longnet_transformer_forward.3} parent=80 // pred_region
          _
        $region85: #{longnet_transformer_forward.3} parent=80 // pred_fallthru
          _
        %s282 = sand.u32 %s25, 1
        %s283 = sand.u32 %s25, 1
        %s284 = smul.addr %s283, 8
        %s285 = scalar_lea.vmem [#allocation4], %s284
        %p286 = pneg %p38
        %p287 = pneg %p35
        %p288 = pneg %p59
        %p289 = pneg %p56
        %p290 = pneg %p80
        %p291 = pneg %p77
        %p292 = pneg %p101
        %p293 = pneg %p98
        %p294 = pneg %p122
        %p295 = pneg %p119
        %s296 = smul.u32 2, %s17
        %p297 = scmp.lt.s32.totalorder %s296, 3
        %s298 = scalar_select %p297, %s296, 3
        %s299 = smul.addr %s298, 8
        %s300 = scalar_lea.vmem %s5, %s299
        %p301 = pneg %p148
        %p302 = pneg %p145
        %p303 = pneg %p174
        %p304 = pneg %p171
        %s305 = smul.u32 2, %s17
        %p306 = scmp.lt.s32.totalorder %s305, 3
        %s307 = scalar_select %p306, %s305, 3
        %s308 = smul.addr %s307, 8
        %s309 = scalar_lea.vmem %s6, %s308
        %s310 = smul.u32 2, %s17
        %s311 = smul.u32 2, %s17
        %p312 = scmp.lt.s32.totalorder %s311, 3
        %s313 = scalar_select %p312, %s311, 3
        %s314 = smul.addr %s313, 8
        %s315 = scalar_lea.vmem %s5, %s314
        %s316 = smul.u32 2, %s17
        %s317 = smul.u32 2, %s17
        %p318 = scmp.lt.s32.totalorder %s317, 3
        %s319 = scalar_select %p318, %s317, 3
        %s320 = smul.addr %s319, 8
        %s321 = scalar_lea.vmem %s6, %s320
        %s322 = smul.u32 2, %s17
        %v324 = vld [vmem:[%s278] sm:$0xf]
        %v325 = vld [vmem:[%s278 + $0x4] sm:$0xf]
        %v326 = vld [vmem:[%s1] sm:$0xff]
        %v327 = vld [vmem:[%s1 + $0x8] sm:$0xf]
        %v328 = vld [vmem:[%s1 + $0xc] sm:$0xff]
        %v329 = vld [vmem:[%s1 + $0x14] sm:$0xf]
        %v330 = vld [vmem:[%s1 + $0x18] sm:$0xff]
        %v331 = vld [vmem:[%s1 + $0x20] sm:$0xf]
        %v332 = vld [vmem:[%s1 + $0x24] sm:$0xff]
        %v333 = vld [vmem:[%s1 + $0x2c] sm:$0xf]
        %v334 = vld [vmem:[%s1 + $0x30] sm:$0xff]
        %v335 = vld [vmem:[%s1 + $0x38] sm:$0xf]
        %v336 = vld [vmem:[%s1 + $0x3c] sm:$0xff]
        %v337 = vld [vmem:[%s1 + $0x44] sm:$0xf]
        %v338 = vld [vmem:[%s1 + $0x48] sm:$0xff]
        %v339 = vld [vmem:[%s1 + $0x50] sm:$0xf]
        %v340 = vld [vmem:[%s1 + $0x54] sm:$0xff]
        %v341 = vld [vmem:[%s1 + $0x5c] sm:$0xf]
        %v342 = vld [vmem:[%s1 + $0x60] sm:$0xff]
        %v343 = vld [vmem:[%s1 + $0x68] sm:$0xf]
        %v344 = vld [vmem:[%s1 + $0x6c] sm:$0xff]
        %v345 = vld [vmem:[%s1 + $0x74] sm:$0xf]
        %v346 = vld [vmem:[%s1 + $0x78] sm:$0xff]
        %v347 = vld [vmem:[%s1 + $0x80] sm:$0xf]
        %v348 = vld [vmem:[%s1 + $0x84] sm:$0xff]
        %v349 = vld [vmem:[%s1 + $0x8c] sm:$0xf]
        %v350 = vld [vmem:[%s1 + $0x90] sm:$0xff]
        %v351 = vld [vmem:[%s1 + $0x98] sm:$0xf]
        %v352 = vld [vmem:[%s1 + $0x9c] sm:$0xff]
        %v353 = vld [vmem:[%s1 + $0xa4] sm:$0xf]
        %v354 = vld [vmem:[%s1 + $0xa8] sm:$0xff]
        %v355 = vld [vmem:[%s1 + $0xb0] sm:$0xf]
        %v356 = vld [vmem:[%s1 + $0xb4] sm:$0xff]
        %v357 = vld [vmem:[%s1 + $0xbc] sm:$0xf]
        %v358 = vld [vmem:[%s2] sm:$0x7]
        %v360 = vlaneseq
        %v361 = vshrl.u32 %v360, 7
        %v362 = vsub.s32 0, %v361
        %v363 = vrot.slane %v358, %v362
        %v364 = vlaneseq
        %v365 = vshrl.u32 %v364, 7
        %v366 = vsub.s32 1, %v365
        %v367 = vrot.slane %v358, %v366
        %v368 = vlaneseq
        %v369 = vshrl.u32 %v368, 7
        %v370 = vsub.s32 2, %v369
        %v371 = vrot.slane %v358, %v370
        %v377 = vunpack.c.l.b16 %v324
        %v378 = vunpack.c.l.b16 %v325
        %v379 = vpack.c.b16 %v378, %v377
        %v413 = vunpack.c.l.b16 %v326
        %v414 = vunpack.c.h.b16 %v326
        %v415 = vunpack.c.l.b16 %v327
        %v416 = vunpack.c.l.b16 %v328
        %v417 = vunpack.c.h.b16 %v328
        %v418 = vunpack.c.l.b16 %v329
        %v419 = vunpack.c.l.b16 %v330
        %v420 = vunpack.c.h.b16 %v330
        %v421 = vunpack.c.l.b16 %v331
        %v422 = vunpack.c.l.b16 %v332
        %v423 = vunpack.c.h.b16 %v332
        %v424 = vunpack.c.l.b16 %v333
        %v425 = vunpack.c.l.b16 %v334
        %v426 = vunpack.c.h.b16 %v334
        %v427 = vunpack.c.l.b16 %v335
        %v428 = vunpack.c.l.b16 %v336
        %v429 = vunpack.c.h.b16 %v336
        %v430 = vunpack.c.l.b16 %v337
        %v431 = vunpack.c.l.b16 %v338
        %v432 = vunpack.c.h.b16 %v338
        %v433 = vunpack.c.l.b16 %v339
        %v434 = vunpack.c.l.b16 %v340
        %v435 = vunpack.c.h.b16 %v340
        %v436 = vunpack.c.l.b16 %v341
        %v437 = vunpack.c.l.b16 %v342
        %v438 = vunpack.c.h.b16 %v342
        %v439 = vunpack.c.l.b16 %v343
        %v440 = vunpack.c.l.b16 %v344
        %v441 = vunpack.c.h.b16 %v344
        %v442 = vunpack.c.l.b16 %v345
        %v443 = vunpack.c.l.b16 %v346
        %v444 = vunpack.c.h.b16 %v346
        %v445 = vunpack.c.l.b16 %v347
        %v446 = vunpack.c.l.b16 %v348
        %v447 = vunpack.c.h.b16 %v348
        %v448 = vunpack.c.l.b16 %v349
        %v449 = vunpack.c.l.b16 %v350
        %v450 = vunpack.c.h.b16 %v350
        %v451 = vunpack.c.l.b16 %v351
        %v452 = vunpack.c.l.b16 %v352
        %v453 = vunpack.c.h.b16 %v352
        %v454 = vunpack.c.l.b16 %v353
        %v455 = vunpack.c.l.b16 %v354
        %v456 = vunpack.c.h.b16 %v354
        %v457 = vunpack.c.l.b16 %v355
        %v458 = vunpack.c.l.b16 %v356
        %v459 = vunpack.c.h.b16 %v356
        %v460 = vunpack.c.l.b16 %v357
        %v461 = vpack.c.b16 %v416, %v413
        %v462 = vpack.c.b16 %v417, %v414
        %v463 = vpack.c.b16 %v418, %v415
        %v464 = vpack.c.b16 %v422, %v419
        %v465 = vpack.c.b16 %v423, %v420
        %v466 = vpack.c.b16 %v424, %v421
        %v467 = vpack.c.b16 %v428, %v425
        %v468 = vpack.c.b16 %v429, %v426
        %v469 = vpack.c.b16 %v430, %v427
        %v470 = vpack.c.b16 %v434, %v431
        %v471 = vpack.c.b16 %v435, %v432
        %v472 = vpack.c.b16 %v436, %v433
        %v473 = vpack.c.b16 %v440, %v437
        %v474 = vpack.c.b16 %v441, %v438
        %v475 = vpack.c.b16 %v442, %v439
        %v476 = vpack.c.b16 %v446, %v443
        %v477 = vpack.c.b16 %v447, %v444
        %v478 = vpack.c.b16 %v448, %v445
        %v479 = vpack.c.b16 %v452, %v449
        %v480 = vpack.c.b16 %v453, %v450
        %v481 = vpack.c.b16 %v454, %v451
        %v482 = vpack.c.b16 %v458, %v455
        %v483 = vpack.c.b16 %v459, %v456
        %v484 = vpack.c.b16 %v460, %v457
        %509 = vmatprep.subr.bf16.mxu0 %v462
        %510 = vmatpush1.bf16.msra.mxu0 %v461
        %511 = vmatprep.subr.bf16.mxu0 %v465
        %512 = vmatpush1.bf16.msra.mxu0 %v464
        %513 = vmatprep.subr.bf16.mxu0 %v468
        %514 = vmatpush1.bf16.msra.mxu0 %v467
        %515 = vmatprep.subr.bf16.mxu0 %v471
        %516 = vmatpush1.bf16.msra.mxu0 %v470
        %517 = vmatprep.subr.bf16.mxu0 %v474
        %518 = vmatpush1.bf16.msra.mxu0 %v473
        %519 = vmatprep.subr.bf16.mxu0 %v477
        %520 = vmatpush1.bf16.msra.mxu0 %v476
        %521 = vmatprep.subr.bf16.mxu0 %v480
        %522 = vmatpush1.bf16.msra.mxu0 %v479
        %523 = vmatprep.subr.bf16.mxu0 %v483
        %524 = vmatpush1.bf16.msra.mxu0 %v482
        %525 = vmatprep.subr.bf16.mxu0 0
        %526 = vmatpush1.bf16.msra.mxu0 0
        %527 = vmatprep.subr.bf16.mxu0 0
        %528 = vmatpush1.bf16.msra.mxu0 0
        %529 = vmatprep.subr.bf16.mxu0 0
        %530 = vmatpush1.bf16.msra.mxu0 0
        %531 = vmatprep.subr.bf16.mxu0 0
        %532 = vmatpush1.bf16.msra.mxu0 0
        %533 = vmatprep.subr.bf16.mxu0 0
        %534 = vmatpush1.bf16.msra.mxu0 0
        %535 = vmatprep.subr.bf16.mxu0 0
        %536 = vmatpush1.bf16.msra.mxu0 0
        %537 = vmatprep.subr.bf16.mxu0 0
        %538 = vmatpush1.bf16.msra.mxu0 0
        %539 = vmatprep.subr.bf16.mxu0 0
        %540 = vmatpush1.bf16.msra.mxu0 0
        %541 = vmatprep.mubr.bf16.mxu0 0
        %542 = vmatmul.mubr.bf16.gmra.mrb[0].mxu0 %v379
        %v543 = vpop.f32.mrb[0].mxu0
        %v544 = vadd.f32 %v363, %v543
        %v545 = vpop.f32.mrb[0].mxu0
        %v546 = vadd.f32 %v367, %v545
        %v547 = vpop.f32.mrb[0].mxu0
        %v548 = vadd.f32 %v363, %v547
        %v549 = vpop.f32.mrb[0].mxu0
        %v550 = vadd.f32 %v367, %v549
        %551 = vdwg.mxu0
        %552 = vmatprep.subr.bf16.mxu0 0
        %553 = vmatpush1.bf16.msra.mxu0 %v463
        %554 = vmatprep.subr.bf16.mxu0 0
        %555 = vmatpush1.bf16.msra.mxu0 %v466
        %556 = vmatprep.subr.bf16.mxu0 0
        %557 = vmatpush1.bf16.msra.mxu0 %v469
        %558 = vmatprep.subr.bf16.mxu0 0
        %559 = vmatpush1.bf16.msra.mxu0 %v472
        %560 = vmatprep.subr.bf16.mxu0 0
        %561 = vmatpush1.bf16.msra.mxu0 %v475
        %562 = vmatprep.subr.bf16.mxu0 0
        %563 = vmatpush1.bf16.msra.mxu0 %v478
        %564 = vmatprep.subr.bf16.mxu0 0
        %565 = vmatpush1.bf16.msra.mxu0 %v481
        %566 = vmatprep.subr.bf16.mxu0 0
        %567 = vmatpush1.bf16.msra.mxu0 %v484
        %568 = vmatprep.subr.bf16.mxu0 0
        %569 = vmatpush1.bf16.msra.mxu0 0
        %570 = vmatprep.subr.bf16.mxu0 0
        %571 = vmatpush1.bf16.msra.mxu0 0
        %572 = vmatprep.subr.bf16.mxu0 0
        %573 = vmatpush1.bf16.msra.mxu0 0
        %574 = vmatprep.subr.bf16.mxu0 0
        %575 = vmatpush1.bf16.msra.mxu0 0
        %576 = vmatprep.subr.bf16.mxu0 0
        %577 = vmatpush1.bf16.msra.mxu0 0
        %578 = vmatprep.subr.bf16.mxu0 0
        %579 = vmatpush1.bf16.msra.mxu0 0
        %580 = vmatprep.subr.bf16.mxu0 0
        %581 = vmatpush1.bf16.msra.mxu0 0
        %582 = vmatprep.subr.bf16.mxu0 0
        %583 = vmatpush1.bf16.msra.mxu0 0
        %584 = vmatprep.mubr.bf16.mxu0 0
        %585 = vmatmul.mubr.bf16.gmra.mrb[0].mxu0 %v379
        %v586 = vpop.f32.mrb[0].mxu0
        %v587 = vadd.f32 %v371, %v586
        %v588 = vpop.f32.mrb[0].mxu0
        %v589 = vpop.f32.mrb[0].mxu0
        %v590 = vadd.f32 %v371, %v589
        %v591 = vpop.f32.mrb[0].mxu0
        %592 = vdwg.mxu0
        %v593 = vpack.c.bf16 %v548, %v544
        %v594 = vpack.c.bf16 %v550, %v546
        %v595 = vpack.c.bf16 %v590, %v587
        %596 = vst [vmem:[#allocation2] sm:$0xff] %v593
        %597 = vst [vmem:[#allocation2 + $0x8] sm:$0xff] %v594
        %598 = vst [vmem:[#allocation2 + $0x10] sm:$0xff] %v595
        %v599 = vld [vmem:[#allocation2] sm:$0xff]
        %v600 = vld [vmem:[#allocation2 + $0x8] sm:$0xff]
        %v601 = vld [vmem:[#allocation2 + $0x10] sm:$0xff]
        %vm602 = vcmask 261120
        %v604 = vsel %vm602, %v599, 0
        %v607 = vsel %vm602, %v600, 0
        %609 = vmatprep.subr.bf16.mxu0 0
        %610 = vmatpush1.bf16.xpose.msra.mxu0 %v607
        %611 = vmatprep.subr.bf16.mxu0 0
        %612 = vmatpush1.bf16.xpose.msra.mxu0 0
        %613 = vmatprep.subr.bf16.mxu0 0
        %614 = vmatpush1.bf16.xpose.msra.mxu0 0
        %615 = vmatprep.subr.bf16.mxu0 0
        %616 = vmatpush1.bf16.xpose.msra.mxu0 0
        %617 = vmatprep.subr.bf16.mxu0 0
        %618 = vmatpush1.bf16.xpose.msra.mxu0 0
        %619 = vmatprep.subr.bf16.mxu0 0
        %620 = vmatpush1.bf16.xpose.msra.mxu0 0
        %621 = vmatprep.subr.bf16.mxu0 0
        %622 = vmatpush1.bf16.xpose.msra.mxu0 0
        %623 = vmatprep.subr.bf16.mxu0 0
        %624 = vmatpush1.bf16.xpose.msra.mxu0 0
        %625 = vmatprep.subr.bf16.mxu0 0
        %626 = vmatpush1.bf16.xpose.msra.mxu0 0
        %627 = vmatprep.subr.bf16.mxu0 0
        %628 = vmatpush1.bf16.xpose.msra.mxu0 0
        %629 = vmatprep.subr.bf16.mxu0 0
        %630 = vmatpush1.bf16.xpose.msra.mxu0 0
        %631 = vmatprep.subr.bf16.mxu0 0
        %632 = vmatpush1.bf16.xpose.msra.mxu0 0
        %633 = vmatprep.subr.bf16.mxu0 0
        %634 = vmatpush1.bf16.xpose.msra.mxu0 0
        %635 = vmatprep.subr.bf16.mxu0 0
        %636 = vmatpush1.bf16.xpose.msra.mxu0 0
        %637 = vmatprep.subr.bf16.mxu0 0
        %638 = vmatpush1.bf16.xpose.msra.mxu0 0
        %639 = vmatprep.subr.bf16.mxu0 0
        %640 = vmatpush1.bf16.xpose.msra.mxu0 0
        %641 = vmatprep.mubr.bf16.mxu0 0
        %642 = vmatmul.mubr.bf16.gmra.mrb[0].mxu0 %v604
        %v643 = vpop.f32.mrb[0].mxu0
        %v644 = vadd.f32 0.0, %v643
        %v645 = vpop.f32.mrb[0].mxu0
        %v646 = vpop.f32.mrb[0].mxu0
        %v647 = vadd.f32 0.0, %v646
        %v648 = vpop.f32.mrb[0].mxu0
        %649 = vdwg.mxu0
        %vm650 = vcmask 130048
        %v651 = vsel %vm650, %v644, -inf
        %652 = vmax.xlane.f32.xlu0 %v651
        %v653 = vpop.xlane.xlu0 %652
        %v654 = vsel %vm650, %v647, -inf
        %655 = vmax.xlane.f32.xlu0 %v654
        %v656 = vpop.xlane.xlu0 %655
        %v657 = vsub.f32 %v644, %v653
        %v658 = vsub.f32 %v647, %v656
        %v659 = vmul.f32 %v657, 1.442695
        %v660 = vpow.pop %v659
        %v661 = vmul.f32 %v658, 1.442695
        %v662 = vpow.pop %v661
        %v663 = vsel %vm650, %v660, 0.0
        %664 = vadd.xlane.f32.xlu0 %v663
        %v665 = vpop.xlane.xlu0 %664
        %v666 = vsel %vm650, %v662, 0.0
        %667 = vadd.xlane.f32.xlu0 %v666
        %v668 = vpop.xlane.xlu0 %667
        %v669 = vpack.c.bf16 %v662, %v660
        %v671 = vsel %vm650, %v669, 0
        %673 = vmatprep.subr.bf16.mxu0 0
        %674 = vmatpush1.bf16.msra.mxu0 %v601
        %675 = vmatprep.subr.bf16.mxu0 0
        %676 = vmatpush1.bf16.msra.mxu0 0
        %677 = vmatprep.subr.bf16.mxu0 0
        %678 = vmatpush1.bf16.msra.mxu0 0
        %679 = vmatprep.subr.bf16.mxu0 0
        %680 = vmatpush1.bf16.msra.mxu0 0
        %681 = vmatprep.subr.bf16.mxu0 0
        %682 = vmatpush1.bf16.msra.mxu0 0
        %683 = vmatprep.subr.bf16.mxu0 0
        %684 = vmatpush1.bf16.msra.mxu0 0
        %685 = vmatprep.subr.bf16.mxu0 0
        %686 = vmatpush1.bf16.msra.mxu0 0
        %687 = vmatprep.subr.bf16.mxu0 0
        %688 = vmatpush1.bf16.msra.mxu0 0
        %689 = vmatprep.subr.bf16.mxu0 0
        %690 = vmatpush1.bf16.msra.mxu0 0
        %691 = vmatprep.subr.bf16.mxu0 0
        %692 = vmatpush1.bf16.msra.mxu0 0
        %693 = vmatprep.subr.bf16.mxu0 0
        %694 = vmatpush1.bf16.msra.mxu0 0
        %695 = vmatprep.subr.bf16.mxu0 0
        %696 = vmatpush1.bf16.msra.mxu0 0
        %697 = vmatprep.subr.bf16.mxu0 0
        %698 = vmatpush1.bf16.msra.mxu0 0
        %699 = vmatprep.subr.bf16.mxu0 0
        %700 = vmatpush1.bf16.msra.mxu0 0
        %701 = vmatprep.subr.bf16.mxu0 0
        %702 = vmatpush1.bf16.msra.mxu0 0
        %703 = vmatprep.subr.bf16.mxu0 0
        %704 = vmatpush1.bf16.msra.mxu0 0
        %705 = vmatprep.mubr.bf16.mxu0 0
        %706 = vmatmul.mubr.bf16.gmra.mrb[0].mxu0 %v671
        %v707 = vpop.f32.mrb[0].mxu0
        %v708 = vadd.f32 0.0, %v707
        %v709 = vpop.f32.mrb[0].mxu0
        %v710 = vpop.f32.mrb[0].mxu0
        %v711 = vadd.f32 0.0, %v710
        %v712 = vpop.f32.mrb[0].mxu0
        %713 = vdwg.mxu0
        %v714 = vrcp.pop %v665
        %v715 = vrcp.pop %v668
        %v716 = vmul.f32 %v708, %v714
        %v717 = vmul.f32 %v711, %v715
        %718 = vst.msk [vmem:[#allocation3] sm:$0xff] %vm602, %v716
        %719 = vst.msk [vmem:[#allocation3 + $0x8] sm:$0xff] %vm602, %v717
        %v720 = vld [vmem:[#allocation2] sm:$0xff]
        %v721 = vld [vmem:[#allocation2 + $0x8] sm:$0xff]
        %v722 = vld [vmem:[#allocation2 + $0x10] sm:$0xff]
        %724 = vrot.lane.b32.xlu0 %v720, 96
        %v725 = vpop.permute.xlu0 %724
        %727 = vrot.lane.b32.xlu0 %v721, 96
        %v728 = vpop.permute.xlu0 %727
        %v730 = vsel %vm602, %v725, 0
        %v733 = vsel %vm602, %v728, 0
        %735 = vmatprep.subr.bf16.mxu0 0
        %736 = vmatpush1.bf16.xpose.msra.mxu0 %v733
        %737 = vmatprep.subr.bf16.mxu0 0
        %738 = vmatpush1.bf16.xpose.msra.mxu0 0
        %739 = vmatprep.subr.bf16.mxu0 0
        %740 = vmatpush1.bf16.xpose.msra.mxu0 0
        %741 = vmatprep.subr.bf16.mxu0 0
        %742 = vmatpush1.bf16.xpose.msra.mxu0 0
        %743 = vmatprep.subr.bf16.mxu0 0
        %744 = vmatpush1.bf16.xpose.msra.mxu0 0
        %745 = vmatprep.subr.bf16.mxu0 0
        %746 = vmatpush1.bf16.xpose.msra.mxu0 0
        %747 = vmatprep.subr.bf16.mxu0 0
        %748 = vmatpush1.bf16.xpose.msra.mxu0 0
        %749 = vmatprep.subr.bf16.mxu0 0
        %750 = vmatpush1.bf16.xpose.msra.mxu0 0
        %751 = vmatprep.subr.bf16.mxu0 0
        %752 = vmatpush1.bf16.xpose.msra.mxu0 0
        %753 = vmatprep.subr.bf16.mxu0 0
        %754 = vmatpush1.bf16.xpose.msra.mxu0 0
        %755 = vmatprep.subr.bf16.mxu0 0
        %756 = vmatpush1.bf16.xpose.msra.mxu0 0
        %757 = vmatprep.subr.bf16.mxu0 0
        %758 = vmatpush1.bf16.xpose.msra.mxu0 0
        %759 = vmatprep.subr.bf16.mxu0 0
        %760 = vmatpush1.bf16.xpose.msra.mxu0 0
        %761 = vmatprep.subr.bf16.mxu0 0
        %762 = vmatpush1.bf16.xpose.msra.mxu0 0
        %763 = vmatprep.subr.bf16.mxu0 0
        %764 = vmatpush1.bf16.xpose.msra.mxu0 0
        %765 = vmatprep.subr.bf16.mxu0 0
        %766 = vmatpush1.bf16.xpose.msra.mxu0 0
        %767 = vmatprep.mubr.bf16.mxu0 0
        %768 = vmatmul.mubr.bf16.gmra.mrb[0].mxu0 %v730
        %v769 = vpop.f32.mrb[0].mxu0
        %v770 = vadd.f32 0.0, %v769
        %v771 = vpop.f32.mrb[0].mxu0
        %v772 = vpop.f32.mrb[0].mxu0
        %v773 = vadd.f32 0.0, %v772
        %v774 = vpop.f32.mrb[0].mxu0
        %775 = vdwg.mxu0
        %v776 = vsel %vm650, %v770, -inf
        %777 = vmax.xlane.f32.xlu0 %v776
        %v778 = vpop.xlane.xlu0 %777
        %v779 = vsel %vm650, %v773, -inf
        %780 = vmax.xlane.f32.xlu0 %v779
        %v781 = vpop.xlane.xlu0 %780
        %v782 = vsub.f32 %v770, %v778
        %v783 = vsub.f32 %v773, %v781
        %v784 = vmul.f32 %v782, 1.442695
        %v785 = vpow.pop %v784
        %v786 = vmul.f32 %v783, 1.442695
        %v787 = vpow.pop %v786
        %v788 = vsel %vm650, %v785, 0.0
        %789 = vadd.xlane.f32.xlu0 %v788
        %v790 = vpop.xlane.xlu0 %789
        %v791 = vsel %vm650, %v787, 0.0
        %792 = vadd.xlane.f32.xlu0 %v791
        %v793 = vpop.xlane.xlu0 %792
        %v794 = vpack.c.bf16 %v787, %v785
        %796 = vrot.lane.b32.xlu0 %v722, 96
        %v797 = vpop.permute.xlu0 %796
        %v800 = vsel %vm650, %v794, 0
        %802 = vmatprep.subr.bf16.mxu0 0
        %803 = vmatpush1.bf16.msra.mxu0 %v797
        %804 = vmatprep.subr.bf16.mxu0 0
        %805 = vmatpush1.bf16.msra.mxu0 0
        %806 = vmatprep.subr.bf16.mxu0 0
        %807 = vmatpush1.bf16.msra.mxu0 0
        %808 = vmatprep.subr.bf16.mxu0 0
        %809 = vmatpush1.bf16.msra.mxu0 0
        %810 = vmatprep.subr.bf16.mxu0 0
        %811 = vmatpush1.bf16.msra.mxu0 0
        %812 = vmatprep.subr.bf16.mxu0 0
        %813 = vmatpush1.bf16.msra.mxu0 0
        %814 = vmatprep.subr.bf16.mxu0 0
        %815 = vmatpush1.bf16.msra.mxu0 0
        %816 = vmatprep.subr.bf16.mxu0 0
        %817 = vmatpush1.bf16.msra.mxu0 0
        %818 = vmatprep.subr.bf16.mxu0 0
        %819 = vmatpush1.bf16.msra.mxu0 0
        %820 = vmatprep.subr.bf16.mxu0 0
        %821 = vmatpush1.bf16.msra.mxu0 0
        %822 = vmatprep.subr.bf16.mxu0 0
        %823 = vmatpush1.bf16.msra.mxu0 0
        %824 = vmatprep.subr.bf16.mxu0 0
        %825 = vmatpush1.bf16.msra.mxu0 0
        %826 = vmatprep.subr.bf16.mxu0 0
        %827 = vmatpush1.bf16.msra.mxu0 0
        %828 = vmatprep.subr.bf16.mxu0 0
        %829 = vmatpush1.bf16.msra.mxu0 0
        %830 = vmatprep.subr.bf16.mxu0 0
        %831 = vmatpush1.bf16.msra.mxu0 0
        %832 = vmatprep.subr.bf16.mxu0 0
        %833 = vmatpush1.bf16.msra.mxu0 0
        %834 = vmatprep.mubr.bf16.mxu0 0
        %835 = vmatmul.mubr.bf16.gmra.mrb[0].mxu0 %v800
        %v836 = vpop.f32.mrb[0].mxu0
        %v837 = vadd.f32 0.0, %v836
        %v838 = vpop.f32.mrb[0].mxu0
        %v839 = vpop.f32.mrb[0].mxu0
        %v840 = vadd.f32 0.0, %v839
        %v841 = vpop.f32.mrb[0].mxu0
        %842 = vdwg.mxu0
        %v843 = vrcp.pop %v790
        %v844 = vrcp.pop %v793
        %v845 = vmul.f32 %v837, %v843
        %v846 = vmul.f32 %v840, %v844
        %849 = vrot.lane.b32.xlu0 %v845, 32
        %v850 = vpop.permute.xlu0 %849
        %851 = vrot.lane.b32.xlu0 %v846, 32
        %v852 = vpop.permute.xlu0 %851
        %vm855 = vcmask 523520
        %856 = vst.msk [vmem:[#allocation3] sm:$0xff] %vm855, %v850
        %857 = vst.msk [vmem:[#allocation3 + $0x8] sm:$0xff] %vm855, %v852
        %v858 = vld [vmem:[#allocation2] sm:$0xff]
        %v859 = vld [vmem:[#allocation2 + $0x8] sm:$0xff]
        %v860 = vld [vmem:[#allocation2 + $0x10] sm:$0xff]
        %862 = vrot.lane.b32.xlu0 %v858, 64
        %v863 = vpop.permute.xlu0 %862
        %865 = vrot.lane.b32.xlu0 %v859, 64
        %v866 = vpop.permute.xlu0 %865
        %v868 = vsel %vm602, %v863, 0
        %v871 = vsel %vm602, %v866, 0
        %873 = vmatprep.subr.bf16.mxu0 0
        %874 = vmatpush1.bf16.xpose.msra.mxu0 %v871
        %875 = vmatprep.subr.bf16.mxu0 0
        %876 = vmatpush1.bf16.xpose.msra.mxu0 0
        %877 = vmatprep.subr.bf16.mxu0 0
        %878 = vmatpush1.bf16.xpose.msra.mxu0 0
        %879 = vmatprep.subr.bf16.mxu0 0
        %880 = vmatpush1.bf16.xpose.msra.mxu0 0
        %881 = vmatprep.subr.bf16.mxu0 0
        %882 = vmatpush1.bf16.xpose.msra.mxu0 0
        %883 = vmatprep.subr.bf16.mxu0 0
        %884 = vmatpush1.bf16.xpose.msra.mxu0 0
        %885 = vmatprep.subr.bf16.mxu0 0
        %886 = vmatpush1.bf16.xpose.msra.mxu0 0
        %887 = vmatprep.subr.bf16.mxu0 0
        %888 = vmatpush1.bf16.xpose.msra.mxu0 0
        %889 = vmatprep.subr.bf16.mxu0 0
        %890 = vmatpush1.bf16.xpose.msra.mxu0 0
        %891 = vmatprep.subr.bf16.mxu0 0
        %892 = vmatpush1.bf16.xpose.msra.mxu0 0
        %893 = vmatprep.subr.bf16.mxu0 0
        %894 = vmatpush1.bf16.xpose.msra.mxu0 0
        %895 = vmatprep.subr.bf16.mxu0 0
        %896 = vmatpush1.bf16.xpose.msra.mxu0 0
        %897 = vmatprep.subr.bf16.mxu0 0
        %898 = vmatpush1.bf16.xpose.msra.mxu0 0
        %899 = vmatprep.subr.bf16.mxu0 0
        %900 = vmatpush1.bf16.xpose.msra.mxu0 0
        %901 = vmatprep.subr.bf16.mxu0 0
        %902 = vmatpush1.bf16.xpose.msra.mxu0 0
        %903 = vmatprep.subr.bf16.mxu0 0
        %904 = vmatpush1.bf16.xpose.msra.mxu0 0
        %905 = vmatprep.mubr.bf16.mxu0 0
        %906 = vmatmul.mubr.bf16.gmra.mrb[0].mxu0 %v868
        %v907 = vpop.f32.mrb[0].mxu0
        %v908 = vadd.f32 0.0, %v907
        %v909 = vpop.f32.mrb[0].mxu0
        %v910 = vpop.f32.mrb[0].mxu0
        %v911 = vadd.f32 0.0, %v910
        %v912 = vpop.f32.mrb[0].mxu0
        %913 = vdwg.mxu0
        %v914 = vsel %vm650, %v908, -inf
        %915 = vmax.xlane.f32.xlu0 %v914
        %v916 = vpop.xlane.xlu0 %915
        %v917 = vsel %vm650, %v911, -inf
        %918 = vmax.xlane.f32.xlu0 %v917
        %v919 = vpop.xlane.xlu0 %918
        %v920 = vsub.f32 %v908, %v916
        %v921 = vsub.f32 %v911, %v919
        %v922 = vmul.f32 %v920, 1.442695
        %v923 = vpow.pop %v922
        %v924 = vmul.f32 %v921, 1.442695
        %v925 = vpow.pop %v924
        %v926 = vsel %vm650, %v923, 0.0
        %927 = vadd.xlane.f32.xlu0 %v926
        %v928 = vpop.xlane.xlu0 %927
        %v929 = vsel %vm650, %v925, 0.0
        %930 = vadd.xlane.f32.xlu0 %v929
        %v931 = vpop.xlane.xlu0 %930
        %v932 = vpack.c.bf16 %v925, %v923
        %934 = vrot.lane.b32.xlu0 %v860, 64
        %v935 = vpop.permute.xlu0 %934
        %v938 = vsel %vm650, %v932, 0
        %940 = vmatprep.subr.bf16.mxu0 0
        %941 = vmatpush1.bf16.msra.mxu0 %v935
        %942 = vmatprep.subr.bf16.mxu0 0
        %943 = vmatpush1.bf16.msra.mxu0 0
        %944 = vmatprep.subr.bf16.mxu0 0
        %945 = vmatpush1.bf16.msra.mxu0 0
        %946 = vmatprep.subr.bf16.mxu0 0
        %947 = vmatpush1.bf16.msra.mxu0 0
        %948 = vmatprep.subr.bf16.mxu0 0
        %949 = vmatpush1.bf16.msra.mxu0 0
        %950 = vmatprep.subr.bf16.mxu0 0
        %951 = vmatpush1.bf16.msra.mxu0 0
        %952 = vmatprep.subr.bf16.mxu0 0
        %953 = vmatpush1.bf16.msra.mxu0 0
        %954 = vmatprep.subr.bf16.mxu0 0
        %955 = vmatpush1.bf16.msra.mxu0 0
        %956 = vmatprep.subr.bf16.mxu0 0
        %957 = vmatpush1.bf16.msra.mxu0 0
        %958 = vmatprep.subr.bf16.mxu0 0
        %959 = vmatpush1.bf16.msra.mxu0 0
        %960 = vmatprep.subr.bf16.mxu0 0
        %961 = vmatpush1.bf16.msra.mxu0 0
        %962 = vmatprep.subr.bf16.mxu0 0
        %963 = vmatpush1.bf16.msra.mxu0 0
        %964 = vmatprep.subr.bf16.mxu0 0
        %965 = vmatpush1.bf16.msra.mxu0 0
        %966 = vmatprep.subr.bf16.mxu0 0
        %967 = vmatpush1.bf16.msra.mxu0 0
        %968 = vmatprep.subr.bf16.mxu0 0
        %969 = vmatpush1.bf16.msra.mxu0 0
        %970 = vmatprep.subr.bf16.mxu0 0
        %971 = vmatpush1.bf16.msra.mxu0 0
        %972 = vmatprep.mubr.bf16.mxu0 0
        %973 = vmatmul.mubr.bf16.gmra.mrb[0].mxu0 %v938
        %v974 = vpop.f32.mrb[0].mxu0
        %v975 = vadd.f32 0.0, %v974
        %v976 = vpop.f32.mrb[0].mxu0
        %v977 = vpop.f32.mrb[0].mxu0
        %v978 = vadd.f32 0.0, %v977
        %v979 = vpop.f32.mrb[0].mxu0
        %980 = vdwg.mxu0
        %v981 = vrcp.pop %v928
        %v982 = vrcp.pop %v931
        %v983 = vmul.f32 %v975, %v981
        %v984 = vmul.f32 %v978, %v982
        %987 = vrot.lane.b32.xlu0 %v983, 64
        %v988 = vpop.permute.xlu0 %987
        %989 = vrot.lane.b32.xlu0 %v984, 64
        %v990 = vpop.permute.xlu0 %989
        %vm993 = vcmask 785920
        %994 = vst.msk [vmem:[#allocation3] sm:$0xff] %vm993, %v988
        %995 = vst.msk [vmem:[#allocation3 + $0x8] sm:$0xff] %vm993, %v990
        %v996 = vld [vmem:[#allocation2] sm:$0xff]
        %v997 = vld [vmem:[#allocation2 + $0x8] sm:$0xff]
        %v998 = vld [vmem:[#allocation2 + $0x10] sm:$0xff]
        %1000 = vrot.lane.b32.xlu0 %v996, 32
        %v1001 = vpop.permute.xlu0 %1000
        %1003 = vrot.lane.b32.xlu0 %v997, 32
        %v1004 = vpop.permute.xlu0 %1003
        %v1006 = vsel %vm602, %v1001, 0
        %v1009 = vsel %vm602, %v1004, 0
        %1011 = vmatprep.subr.bf16.mxu0 0
        %1012 = vmatpush1.bf16.xpose.msra.mxu0 %v1009
        %1013 = vmatprep.subr.bf16.mxu0 0
        %1014 = vmatpush1.bf16.xpose.msra.mxu0 0
        %1015 = vmatprep.subr.bf16.mxu0 0
        %1016 = vmatpush1.bf16.xpose.msra.mxu0 0
        %1017 = vmatprep.subr.bf16.mxu0 0
        %1018 = vmatpush1.bf16.xpose.msra.mxu0 0
        %1019 = vmatprep.subr.bf16.mxu0 0
        %1020 = vmatpush1.bf16.xpose.msra.mxu0 0
        %1021 = vmatprep.subr.bf16.mxu0 0
        %1022 = vmatpush1.bf16.xpose.msra.mxu0 0
        %1023 = vmatprep.subr.bf16.mxu0 0
        %1024 = vmatpush1.bf16.xpose.msra.mxu0 0
        %1025 = vmatprep.subr.bf16.mxu0 0
        %1026 = vmatpush1.bf16.xpose.msra.mxu0 0
        %1027 = vmatprep.subr.bf16.mxu0 0
        %1028 = vmatpush1.bf16.xpose.msra.mxu0 0
        %1029 = vmatprep.subr.bf16.mxu0 0
        %1030 = vmatpush1.bf16.xpose.msra.mxu0 0
        %1031 = vmatprep.subr.bf16.mxu0 0
        %1032 = vmatpush1.bf16.xpose.msra.mxu0 0
        %1033 = vmatprep.subr.bf16.mxu0 0
        %1034 = vmatpush1.bf16.xpose.msra.mxu0 0
        %1035 = vmatprep.subr.bf16.mxu0 0
        %1036 = vmatpush1.bf16.xpose.msra.mxu0 0
        %1037 = vmatprep.subr.bf16.mxu0 0
        %1038 = vmatpush1.bf16.xpose.msra.mxu0 0
        %1039 = vmatprep.subr.bf16.mxu0 0
        %1040 = vmatpush1.bf16.xpose.msra.mxu0 0
        %1041 = vmatprep.subr.bf16.mxu0 0
        %1042 = vmatpush1.bf16.xpose.msra.mxu0 0
        %1043 = vmatprep.mubr.bf16.mxu0 0
        %1044 = vmatmul.mubr.bf16.gmra.mrb[0].mxu0 %v1006
        %v1045 = vpop.f32.mrb[0].mxu0
        %v1046 = vadd.f32 0.0, %v1045
        %v1047 = vpop.f32.mrb[0].mxu0
        %v1048 = vpop.f32.mrb[0].mxu0
        %v1049 = vadd.f32 0.0, %v1048
        %v1050 = vpop.f32.mrb[0].mxu0
        %1051 = vdwg.mxu0
        %v1052 = vsel %vm650, %v1046, -inf
        %1053 = vmax.xlane.f32.xlu0 %v1052
        %v1054 = vpop.xlane.xlu0 %1053
        %v1055 = vsel %vm650, %v1049, -inf
        %1056 = vmax.xlane.f32.xlu0 %v1055
        %v1057 = vpop.xlane.xlu0 %1056
        %v1058 = vsub.f32 %v1046, %v1054
        %v1059 = vsub.f32 %v1049, %v1057
        %v1060 = vmul.f32 %v1058, 1.442695
        %v1061 = vpow.pop %v1060
        %v1062 = vmul.f32 %v1059, 1.442695
        %v1063 = vpow.pop %v1062
        %v1064 = vsel %vm650, %v1061, 0.0
        %1065 = vadd.xlane.f32.xlu0 %v1064
        %v1066 = vpop.xlane.xlu0 %1065
        %v1067 = vsel %vm650, %v1063, 0.0
        %1068 = vadd.xlane.f32.xlu0 %v1067
        %v1069 = vpop.xlane.xlu0 %1068
        %v1070 = vpack.c.bf16 %v1063, %v1061
        %1072 = vrot.lane.b32.xlu0 %v998, 32
        %v1073 = vpop.permute.xlu0 %1072
        %v1076 = vsel %vm650, %v1070, 0
        %1078 = vmatprep.subr.bf16.mxu0 0
        %1079 = vmatpush1.bf16.msra.mxu0 %v1073
        %1080 = vmatprep.subr.bf16.mxu0 0
        %1081 = vmatpush1.bf16.msra.mxu0 0
        %1082 = vmatprep.subr.bf16.mxu0 0
        %1083 = vmatpush1.bf16.msra.mxu0 0
        %1084 = vmatprep.subr.bf16.mxu0 0
        %1085 = vmatpush1.bf16.msra.mxu0 0
        %1086 = vmatprep.subr.bf16.mxu0 0
        %1087 = vmatpush1.bf16.msra.mxu0 0
        %1088 = vmatprep.subr.bf16.mxu0 0
        %1089 = vmatpush1.bf16.msra.mxu0 0
        %1090 = vmatprep.subr.bf16.mxu0 0
        %1091 = vmatpush1.bf16.msra.mxu0 0
        %1092 = vmatprep.subr.bf16.mxu0 0
        %1093 = vmatpush1.bf16.msra.mxu0 0
        %1094 = vmatprep.subr.bf16.mxu0 0
        %1095 = vmatpush1.bf16.msra.mxu0 0
        %1096 = vmatprep.subr.bf16.mxu0 0
        %1097 = vmatpush1.bf16.msra.mxu0 0
        %1098 = vmatprep.subr.bf16.mxu0 0
        %1099 = vmatpush1.bf16.msra.mxu0 0
        %1100 = vmatprep.subr.bf16.mxu0 0
        %1101 = vmatpush1.bf16.msra.mxu0 0
        %1102 = vmatprep.subr.bf16.mxu0 0
        %1103 = vmatpush1.bf16.msra.mxu0 0
        %1104 = vmatprep.subr.bf16.mxu0 0
        %1105 = vmatpush1.bf16.msra.mxu0 0
        %1106 = vmatprep.subr.bf16.mxu0 0
        %1107 = vmatpush1.bf16.msra.mxu0 0
        %1108 = vmatprep.subr.bf16.mxu0 0
        %1109 = vmatpush1.bf16.msra.mxu0 0
        %1110 = vmatprep.mubr.bf16.mxu0 0
        %1111 = vmatmul.mubr.bf16.gmra.mrb[0].mxu0 %v1076
        %v1112 = vpop.f32.mrb[0].mxu0
        %v1113 = vadd.f32 0.0, %v1112
        %v1114 = vpop.f32.mrb[0].mxu0
        %v1115 = vpop.f32.mrb[0].mxu0
        %v1116 = vadd.f32 0.0, %v1115
        %v1117 = vpop.f32.mrb[0].mxu0
        %1118 = vdwg.mxu0
        %v1119 = vrcp.pop %v1066
        %v1120 = vrcp.pop %v1069
        %v1121 = vmul.f32 %v1113, %v1119
        %v1122 = vmul.f32 %v1116, %v1120
        %1125 = vrot.lane.b32.xlu0 %v1121, 96
        %v1126 = vpop.permute.xlu0 %1125
        %1127 = vrot.lane.b32.xlu0 %v1122, 96
        %v1128 = vpop.permute.xlu0 %1127
        %vm1131 = vcmask 1048320
        %1132 = vst.msk [vmem:[#allocation3] sm:$0xff] %vm1131, %v1126
        %1133 = vst.msk [vmem:[#allocation3 + $0x8] sm:$0xff] %vm1131, %v1128
        %v1134 = vld [vmem:[#allocation3] sm:$0xff]
        %v1135 = vld [vmem:[#allocation3 + $0x8] sm:$0xff]
        %v1136 = vpack.c.bf16 %v1135, %v1134
        %v1137 = vld [vmem:[%s3] sm:$0xf]
        %v1138 = vld [vmem:[%s3 + $0x4] sm:$0xf]
        %v1139 = vld [vmem:[%s3 + $0x8] sm:$0xf]
        %v1140 = vld [vmem:[%s3 + $0xc] sm:$0xf]
        %v1141 = vld [vmem:[%s3 + $0x10] sm:$0xf]
        %v1142 = vld [vmem:[%s3 + $0x14] sm:$0xf]
        %v1143 = vld [vmem:[%s3 + $0x18] sm:$0xf]
        %v1144 = vld [vmem:[%s3 + $0x1c] sm:$0xf]
        %v1145 = vld [vmem:[%s3 + $0x20] sm:$0xf]
        %v1146 = vld [vmem:[%s3 + $0x24] sm:$0xf]
        %v1147 = vld [vmem:[%s3 + $0x28] sm:$0xf]
        %v1148 = vld [vmem:[%s3 + $0x2c] sm:$0xf]
        %v1149 = vld [vmem:[%s3 + $0x30] sm:$0xf]
        %v1150 = vld [vmem:[%s3 + $0x34] sm:$0xf]
        %v1151 = vld [vmem:[%s3 + $0x38] sm:$0xf]
        %v1152 = vld [vmem:[%s3 + $0x3c] sm:$0xf]
        %v1153 = vld [vmem:[%s4] sm:$0x1]
        %v1155 = vlaneseq
        %v1156 = vshrl.u32 %v1155, 7
        %v1157 = vsub.s32 0, %v1156
        %v1158 = vrot.slane %v1153, %v1157
        %v1176 = vunpack.c.l.b16 %v1137
        %v1177 = vunpack.c.l.b16 %v1138
        %v1178 = vunpack.c.l.b16 %v1139
        %v1179 = vunpack.c.l.b16 %v1140
        %v1180 = vunpack.c.l.b16 %v1141
        %v1181 = vunpack.c.l.b16 %v1142
        %v1182 = vunpack.c.l.b16 %v1143
        %v1183 = vunpack.c.l.b16 %v1144
        %v1184 = vunpack.c.l.b16 %v1145
        %v1185 = vunpack.c.l.b16 %v1146
        %v1186 = vunpack.c.l.b16 %v1147
        %v1187 = vunpack.c.l.b16 %v1148
        %v1188 = vunpack.c.l.b16 %v1149
        %v1189 = vunpack.c.l.b16 %v1150
        %v1190 = vunpack.c.l.b16 %v1151
        %v1191 = vunpack.c.l.b16 %v1152
        %v1192 = vpack.c.b16 %v1177, %v1176
        %v1193 = vpack.c.b16 %v1179, %v1178
        %v1194 = vpack.c.b16 %v1181, %v1180
        %v1195 = vpack.c.b16 %v1183, %v1182
        %v1196 = vpack.c.b16 %v1185, %v1184
        %v1197 = vpack.c.b16 %v1187, %v1186
        %v1198 = vpack.c.b16 %v1189, %v1188
        %v1199 = vpack.c.b16 %v1191, %v1190
        %1208 = vmatprep.subr.bf16.mxu0 0
        %1209 = vmatpush1.bf16.msra.mxu0 %v1192
        %1210 = vmatprep.subr.bf16.mxu0 0
        %1211 = vmatpush1.bf16.msra.mxu0 %v1193
        %1212 = vmatprep.subr.bf16.mxu0 0
        %1213 = vmatpush1.bf16.msra.mxu0 %v1194
        %1214 = vmatprep.subr.bf16.mxu0 0
        %1215 = vmatpush1.bf16.msra.mxu0 %v1195
        %1216 = vmatprep.subr.bf16.mxu0 0
        %1217 = vmatpush1.bf16.msra.mxu0 %v1196
        %1218 = vmatprep.subr.bf16.mxu0 0
        %1219 = vmatpush1.bf16.msra.mxu0 %v1197
        %1220 = vmatprep.subr.bf16.mxu0 0
        %1221 = vmatpush1.bf16.msra.mxu0 %v1198
        %1222 = vmatprep.subr.bf16.mxu0 0
        %1223 = vmatpush1.bf16.msra.mxu0 %v1199
        %1224 = vmatprep.subr.bf16.mxu0 0
        %1225 = vmatpush1.bf16.msra.mxu0 0
        %1226 = vmatprep.subr.bf16.mxu0 0
        %1227 = vmatpush1.bf16.msra.mxu0 0
        %1228 = vmatprep.subr.bf16.mxu0 0
        %1229 = vmatpush1.bf16.msra.mxu0 0
        %1230 = vmatprep.subr.bf16.mxu0 0
        %1231 = vmatpush1.bf16.msra.mxu0 0
        %1232 = vmatprep.subr.bf16.mxu0 0
        %1233 = vmatpush1.bf16.msra.mxu0 0
        %1234 = vmatprep.subr.bf16.mxu0 0
        %1235 = vmatpush1.bf16.msra.mxu0 0
        %1236 = vmatprep.subr.bf16.mxu0 0
        %1237 = vmatpush1.bf16.msra.mxu0 0
        %1238 = vmatprep.subr.bf16.mxu0 0
        %1239 = vmatpush1.bf16.msra.mxu0 0
        %1240 = vmatprep.mubr.bf16.mxu0 0
        %1241 = vmatmul.mubr.bf16.gmra.mrb[0].mxu0 %v1136
        %v1242 = vpop.f32.mrb[0].mxu0
        %v1243 = vadd.f32 %v1158, %v1242
        %v1244 = vpop.f32.mrb[0].mxu0
        %v1245 = vpop.f32.mrb[0].mxu0
        %v1246 = vadd.f32 %v1158, %v1245
        %v1247 = vpop.f32.mrb[0].mxu0
        %1248 = vdwg.mxu0
        %v1249 = vld [vmem:[%s315] sm:$0xff]
        %v1250 = vld [vmem:[%s315 + $0x8] sm:$0xff]
        %v1251 = vadd.f32 %v1243, %v1249
        %v1252 = vadd.f32 %v1246, %v1250
        %1253 = vst [vmem:[%s321] sm:$0xff] %v1251
        %1254 = vst [vmem:[%s321 + $0x8] sm:$0xff] %v1252
        %s1255 = smul.u32 2, %s17
        %p1256 = scmp.lt.s32.totalorder %s1255, 3
        %s1257 = scalar_select %p1256, %s1255, 3
        %s1258 = smul.addr %s1257, 8
        %s1259 = scalar_lea.vmem %s6, %s1258
        // Predicated region
        $region86: #{longnet_transformer_forward.3} parent=80 // pred_check
          %p1260 = pneg %p171
        $region87: #{longnet_transformer_forward.3} parent=80 // pred_check_branch
          %1262 = sbr.rel (%p1260) target = $region89
        $region88: #{longnet_transformer_forward.3} parent=80 // pred_region
          %s1263 = smul.u32 2, %s17
        $region89: #{longnet_transformer_forward.3} parent=80 // pred_fallthru
          _
      $region81: #{longnet_transformer_forward.3} parent=5 // pred_fallthru
        _
      %p1264 = scmp.le.s32.totalorder 2, %s12
      // Predicated region
      $region90: #{longnet_transformer_forward.3} parent=5 // pred_check
        %p1265 = pneg %p1264
      $region91: #{longnet_transformer_forward.3} parent=5 // pred_check_branch
        %1267 = sbr.rel (%p1265) target = $region93
      $region92: #{longnet_transformer_forward.3} parent=5 // pred_region
        %s1268 = ssub.s32 %s12, 2
        // Predicated region
        $region94: #{longnet_transformer_forward.3} parent=92 // pred_check
          %p1269 = pneg %p177
        $region95: #{longnet_transformer_forward.3} parent=92 // pred_check_branch
          %1271 = sbr.rel (%p1269) target = $region97
        $region96: #{longnet_transformer_forward.3} parent=92 // pred_region
          %s1272 = smul.u32 2, %s18
          %p1273 = scmp.lt.s32.totalorder %s1272, 3
          %s1274 = scalar_select %p1273, %s1272, 3
          %s1275 = smul.addr %s1274, 8
          %s1276 = scalar_lea.vmem %s6, %s1275
        $region97: #{longnet_transformer_forward.3} parent=92 // pred_fallthru
          _
      $region93: #{longnet_transformer_forward.3} parent=5 // pred_fallthru
        _
    $region6: #{longnet_transformer_forward.3} parent=1 // loop_footer
      %s16 = sadd.s32 1, %s12
    $region7: #{longnet_transformer_forward.3} parent=1 // loop_footer_branch
      %11 = sbr.rel target = $region3
    $region8: #{longnet_transformer_forward.3} parent=1 // loop_exit
      _

// kernel: longnet_transformer_forward.2
$region0: #{longnet_transformer_forward.2}
  #allocation0 [shape = 'u32[]', space=smem, size = 0x4, offset = 0x4, fixed_abs, tag = 'smem constant byte address 0x4 - core index']
  #allocation1 [shape = 'u32[144,128]{1,0:T(1,128)}', space=vmem, size = 0x12000, scoped, tag = 'internal scratch']
  #allocation2 [shape = 'bf16[16,384]{1,0:T(16,128)(2,1)}', space=vmem, size = 0x3000, scoped, tag = 'scratch operand']
  #allocation3 [shape = 'f32[16,128]{1,0:T(8,128)}', space=vmem, size = 0x2000, scoped, tag = 'scratch operand']
  %s0 = inlined_call_operand.vmem [shape: bf16[32,256], index: 0, kind: input, shape index: {}]
  %s1 = inlined_call_operand.vmem [shape: bf16[128,384], index: 1, kind: input, shape index: {}]
  %s2 = inlined_call_operand.vmem [shape: f32[1,384], index: 2, kind: input, shape index: {}]
  %s3 = inlined_call_operand.vmem [shape: bf16[128,128], index: 3, kind: input, shape index: {}]
  %s4 = inlined_call_operand.vmem [shape: f32[1,128], index: 4, kind: input, shape index: {}]
  %s5 = inlined_call_operand.vmem [shape: f32[32,128], index: 5, kind: output, shape index: {}]
  %s6 = sld [smem:[#allocation0]]
  $region94: #{longnet_transformer_forward.2} parent=0
    _
  %s8 = ssub.s32 1, %s6
  %s9 = scalar_select 0, %s8, %s6
  $region1: #{longnet_transformer_forward.2} parent=0
    #allocation4 [shape = 'u8[8192]{0}', space=vmem, size = 0x2000, scoped, tag = 'input window, operand 0']
    loop: start=0, step=1, limit=4
    $region2: #{longnet_transformer_forward.2} parent=1 // loop_pre_header
      _
    $region3: #{longnet_transformer_forward.2} parent=1 // loop_header
      %s11 = sphi 0, %s15
      %p12 = scmp.ge.s32.totalorder %s11, 4
      %s21 = sphi 0, %s23
      %s24 = sphi 0, %s21
      %s25 = sphi 0, %s24
      %s41 = sphi 0, %s25
      %s45 = sphi 0, %s45
      %s47 = sphi 0, %s45
      %s48 = sphi 0, %s47
      %s62 = sphi 0, %s48
      %s66 = sphi 0, %s66
      %s68 = sphi 0, %s66
      %s69 = sphi 0, %s68
      %s83 = sphi 0, %s69
      %s87 = sphi 0, %s87
      %s89 = sphi 0, %s87
      %s90 = sphi 0, %s89
      %s104 = sphi 0, %s90
      %s108 = sphi 0, %s108
      %s110 = sphi 0, %s108
      %s111 = sphi 0, %s110
      %s125 = sphi 0, %s111
      %s131 = sphi 0, %s133
      %s134 = sphi 0, %s131
      %s135 = sphi 0, %s134
      %s151 = sphi 0, %s135
    $region4: #{longnet_transformer_forward.2} parent=1 // loop_header_branch
      %14 = sbr.rel (%p12) target = $region8
    $region5: #{longnet_transformer_forward.2} parent=1 // loop_body
      %s16 = ssub.s32 %s11, 1
      %s17 = ssub.s32 %s11, 2
      %s18 = sadd.s32 %s11, 1
      %s19 = ssub.s32 %s11, %s18
      %p20 = scmp.eq.s32.totalorder %s19, 0
      %s22 = sadd.s32 %s21, 1
      %s23 = scalar_select %p20, %s21, %s22
      %p26 = pneg %p20
      %p27 = scmp.eq.s32.totalorder %s11, 1
      %p28 = por %p26, %p27
      %p29 = scmp.ne.s32.totalorder %s21, %s24
      %p30 = scmp.eq.s32.totalorder %s11, 0
      %p31 = por %p29, %p30
      %p32 = scmp.ne.s32.totalorder %s21, %s24
      %p33 = scmp.eq.s32.totalorder %s16, 1
      %p34 = por %p32, %p33
      %p35 = scmp.ne.s32.totalorder %s24, %s25
      %p36 = scmp.eq.s32.totalorder %s16, 0
      %p37 = por %p35, %p36
      %p38 = scmp.ne.s32.totalorder %s24, %s25
      %p39 = scmp.eq.s32.totalorder %s17, 1
      %p40 = por %p38, %p39
      %p42 = scmp.ne.s32.totalorder %s25, %s41
      %p43 = scmp.eq.s32.totalorder %s17, 0
      %p44 = por %p42, %p43
      %s46 = sadd.s32 %s45, 1
      %p49 = scmp.eq.s32.totalorder %s11, 1
      %p50 = scmp.ne.s32.totalorder %s45, %s47
      %p51 = scmp.eq.s32.totalorder %s11, 0
      %p52 = por %p50, %p51
      %p53 = scmp.ne.s32.totalorder %s45, %s47
      %p54 = scmp.eq.s32.totalorder %s16, 1
      %p55 = por %p53, %p54
      %p56 = scmp.ne.s32.totalorder %s47, %s48
      %p57 = scmp.eq.s32.totalorder %s16, 0
      %p58 = por %p56, %p57
      %p59 = scmp.ne.s32.totalorder %s47, %s48
      %p60 = scmp.eq.s32.totalorder %s17, 1
      %p61 = por %p59, %p60
      %p63 = scmp.ne.s32.totalorder %s48, %s62
      %p64 = scmp.eq.s32.totalorder %s17, 0
      %p65 = por %p63, %p64
      %s67 = sadd.s32 %s66, 1
      %p70 = scmp.eq.s32.totalorder %s11, 1
      %p71 = scmp.ne.s32.totalorder %s66, %s68
      %p72 = scmp.eq.s32.totalorder %s11, 0
      %p73 = por %p71, %p72
      %p74 = scmp.ne.s32.totalorder %s66, %s68
      %p75 = scmp.eq.s32.totalorder %s16, 1
      %p76 = por %p74, %p75
      %p77 = scmp.ne.s32.totalorder %s68, %s69
      %p78 = scmp.eq.s32.totalorder %s16, 0
      %p79 = por %p77, %p78
      %p80 = scmp.ne.s32.totalorder %s68, %s69
      %p81 = scmp.eq.s32.totalorder %s17, 1
      %p82 = por %p80, %p81
      %p84 = scmp.ne.s32.totalorder %s69, %s83
      %p85 = scmp.eq.s32.totalorder %s17, 0
      %p86 = por %p84, %p85
      %s88 = sadd.s32 %s87, 1
      %p91 = scmp.eq.s32.totalorder %s11, 1
      %p92 = scmp.ne.s32.totalorder %s87, %s89
      %p93 = scmp.eq.s32.totalorder %s11, 0
      %p94 = por %p92, %p93
      %p95 = scmp.ne.s32.totalorder %s87, %s89
      %p96 = scmp.eq.s32.totalorder %s16, 1
      %p97 = por %p95, %p96
      %p98 = scmp.ne.s32.totalorder %s89, %s90
      %p99 = scmp.eq.s32.totalorder %s16, 0
      %p100 = por %p98, %p99
      %p101 = scmp.ne.s32.totalorder %s89, %s90
      %p102 = scmp.eq.s32.totalorder %s17, 1
      %p103 = por %p101, %p102
      %p105 = scmp.ne.s32.totalorder %s90, %s104
      %p106 = scmp.eq.s32.totalorder %s17, 0
      %p107 = por %p105, %p106
      %s109 = sadd.s32 %s108, 1
      %p112 = scmp.eq.s32.totalorder %s11, 1
      %p113 = scmp.ne.s32.totalorder %s108, %s110
      %p114 = scmp.eq.s32.totalorder %s11, 0
      %p115 = por %p113, %p114
      %p116 = scmp.ne.s32.totalorder %s108, %s110
      %p117 = scmp.eq.s32.totalorder %s16, 1
      %p118 = por %p116, %p117
      %p119 = scmp.ne.s32.totalorder %s110, %s111
      %p120 = scmp.eq.s32.totalorder %s16, 0
      %p121 = por %p119, %p120
      %p122 = scmp.ne.s32.totalorder %s110, %s111
      %p123 = scmp.eq.s32.totalorder %s17, 1
      %p124 = por %p122, %p123
      %p126 = scmp.ne.s32.totalorder %s111, %s125
      %p127 = scmp.eq.s32.totalorder %s17, 0
      %p128 = por %p126, %p127
      %s129 = ssub.s32 %s11, %s18
      %p130 = scmp.eq.s32.totalorder %s129, 0
      %s132 = sadd.s32 %s131, 1
      %s133 = scalar_select %p130, %s131, %s132
      %p136 = pneg %p130
      %p137 = scmp.eq.s32.totalorder %s11, 1
      %p138 = por %p136, %p137
      %p139 = scmp.ne.s32.totalorder %s131, %s134
      %p140 = scmp.eq.s32.totalorder %s11, 0
      %p141 = por %p139, %p140
      %p142 = scmp.ne.s32.totalorder %s131, %s134
      %p143 = scmp.eq.s32.totalorder %s16, 1
      %p144 = por %p142, %p143
      %p145 = scmp.ne.s32.totalorder %s134, %s135
      %p146 = scmp.eq.s32.totalorder %s16, 0
      %p147 = por %p145, %p146
      %p148 = scmp.ne.s32.totalorder %s134, %s135
      %p149 = scmp.eq.s32.totalorder %s17, 1
      %p150 = por %p148, %p149
      %p152 = scmp.ne.s32.totalorder %s135, %s151
      %p153 = scmp.eq.s32.totalorder %s17, 0
      %p154 = por %p152, %p153
      %p155 = scmp.le.s32.totalorder 1, %s11
      %p156 = scmp.lt.s32.totalorder %s11, 3
      %p157 = pnand %p155, %p156
      %p158 = pneg %p157
      // Predicated region
      $region9: #{longnet_transformer_forward.2} parent=5 // pred_check
        _
      $region10: #{longnet_transformer_forward.2} parent=5 // pred_check_branch
        %160 = sbr.rel (%p157) target = $region12
      $region11: #{longnet_transformer_forward.2} parent=5 // pred_region
        %s161 = ssub.s32 %s11, 1
        // Predicated region
        $region13: #{longnet_transformer_forward.2} parent=11 // pred_check
          %p162 = pneg %p58
        $region14: #{longnet_transformer_forward.2} parent=11 // pred_check_branch
          %164 = sbr.rel (%p162) target = $region16
        $region15: #{longnet_transformer_forward.2} parent=11 // pred_region
          _
        $region16: #{longnet_transformer_forward.2} parent=11 // pred_fallthru
          _
        // Predicated region
        $region17: #{longnet_transformer_forward.2} parent=11 // pred_check
          %p165 = pneg %p79
        $region18: #{longnet_transformer_forward.2} parent=11 // pred_check_branch
          %167 = sbr.rel (%p165) target = $region20
        $region19: #{longnet_transformer_forward.2} parent=11 // pred_region
          _
        $region20: #{longnet_transformer_forward.2} parent=11 // pred_fallthru
          _
        // Predicated region
        $region21: #{longnet_transformer_forward.2} parent=11 // pred_check
          %p168 = pneg %p100
        $region22: #{longnet_transformer_forward.2} parent=11 // pred_check_branch
          %170 = sbr.rel (%p168) target = $region24
        $region23: #{longnet_transformer_forward.2} parent=11 // pred_region
          _
        $region24: #{longnet_transformer_forward.2} parent=11 // pred_fallthru
          _
        // Predicated region
        $region25: #{longnet_transformer_forward.2} parent=11 // pred_check
          %p171 = pneg %p121
        $region26: #{longnet_transformer_forward.2} parent=11 // pred_check_branch
          %173 = sbr.rel (%p171) target = $region28
        $region27: #{longnet_transformer_forward.2} parent=11 // pred_region
          _
        $region28: #{longnet_transformer_forward.2} parent=11 // pred_fallthru
          _
      $region12: #{longnet_transformer_forward.2} parent=5 // pred_fallthru
        _
      %p174 = scmp.lt.s32.totalorder %s11, 2
      // Predicated region
      $region29: #{longnet_transformer_forward.2} parent=5 // pred_check
        %p175 = pneg %p174
      $region30: #{longnet_transformer_forward.2} parent=5 // pred_check_branch
        %177 = sbr.rel (%p175) target = $region32
      $region31: #{longnet_transformer_forward.2} parent=5 // pred_region
        // Predicated region
        $region33: #{longnet_transformer_forward.2} parent=31 // pred_check
          %p178 = pneg %p31
        $region34: #{longnet_transformer_forward.2} parent=31 // pred_check_branch
          %180 = sbr.rel (%p178) target = $region36
        $region35: #{longnet_transformer_forward.2} parent=31 // pred_region
          %s181 = sand.u32 %s21, 1
          %s182 = sand.u32 %s21, 1
          %s183 = smul.addr %s182, 8
          %s184 = scalar_lea.vmem [#allocation4], %s183
          %s185 = smul.u32 2, %s11
          %s186 = smul.addr %s185, 2
          %s187 = smul.addr %s186, 4
          %s188 = scalar_lea.vmem %s0, %s187
          // Predicated region
          $region37: #{longnet_transformer_forward.2} parent=35 // pred_check
            _
          $region38: #{longnet_transformer_forward.2} parent=35 // pred_check_branch
            %190 = sbr.rel (0) target = $region40
          $region39: #{longnet_transformer_forward.2} parent=35 // pred_region
            // Predicated region
            $region41: #{longnet_transformer_forward.2} parent=39 // pred_check
              _
            $region42: #{longnet_transformer_forward.2} parent=39 // pred_check_branch
              %192 = sbr.rel target = $region44
            $region43: #{longnet_transformer_forward.2} parent=39 // pred_region
              // Predicated region
              $region56: #{longnet_transformer_forward.2} parent=43 // pred_check
                _
              $region57: #{longnet_transformer_forward.2} parent=43 // pred_check_branch
                %209 = sbr.rel (0) target = $region59
              $region58: #{longnet_transformer_forward.2} parent=43 // pred_region
                loop: start=0, step=1, limit=1
                $region60: #{longnet_transformer_forward.2} parent=58 // loop_pre_header
                  _
                $region61: #{longnet_transformer_forward.2} parent=58 // loop_header
                  %s211 = sphi 0, %s215
                  %p212 = scmp.ge.s32.totalorder %s211, 1
                  %s216 = sphi %s188, %s188
                  %s217 = sphi %s184, %s184
                $region62: #{longnet_transformer_forward.2} parent=58 // loop_header_branch
                  %214 = sbr.rel (%p212) target = $region66
                $region63: #{longnet_transformer_forward.2} parent=58 // loop_body
                  _
                $region64: #{longnet_transformer_forward.2} parent=58 // loop_footer
                  %s215 = sadd.s32 1, %s211
                $region65: #{longnet_transformer_forward.2} parent=58 // loop_footer_branch
                  %210 = sbr.rel target = $region61
                $region66: #{longnet_transformer_forward.2} parent=58 // loop_exit
                  _
                loop: start=0, step=1, limit=1
                $region67: #{longnet_transformer_forward.2} parent=58 // loop_pre_header
                  _
                $region68: #{longnet_transformer_forward.2} parent=58 // loop_header
                  %s220 = sphi 0, %s224
                  %p221 = scmp.ge.s32.totalorder %s220, 1
                  %s225 = sphi %s188, %s188
                  %s226 = sphi %s184, %s184
                $region69: #{longnet_transformer_forward.2} parent=58 // loop_header_branch
                  %223 = sbr.rel (%p221) target = $region73
                $region70: #{longnet_transformer_forward.2} parent=58 // loop_body
                  %v227 = vld [vmem:[%s225] sm:$0xf]
                  %228 = vst [vmem:[%s226] sm:$0xf] %v227
                  %v229 = vld [vmem:[%s225 + $0x8] sm:$0xf]
                  %230 = vst [vmem:[%s226 + $0x4] sm:$0xf] %v229
                $region71: #{longnet_transformer_forward.2} parent=58 // loop_footer
                  %s224 = sadd.s32 1, %s220
                $region72: #{longnet_transformer_forward.2} parent=58 // loop_footer_branch
                  %219 = sbr.rel target = $region68
                $region73: #{longnet_transformer_forward.2} parent=58 // loop_exit
                  _
              $region59: #{longnet_transformer_forward.2} parent=43 // pred_fallthru
                _
            $region44: #{longnet_transformer_forward.2} parent=39 // pred_fallthru
              _
            // Predicated region
            $region45: #{longnet_transformer_forward.2} parent=39 // pred_check
              _
            $region46: #{longnet_transformer_forward.2} parent=39 // pred_check_branch
              %194 = sbr.rel (0) target = $region48
            $region47: #{longnet_transformer_forward.2} parent=39 // pred_region
              loop: start=0, step=1, limit=1
              $region49: #{longnet_transformer_forward.2} parent=47 // loop_pre_header
                _
              $region50: #{longnet_transformer_forward.2} parent=47 // loop_header
                %s197 = sphi 0, %s201
                %p198 = scmp.ge.s32.totalorder %s197, 1
                %s202 = sphi %s188, %s188
                %s203 = sphi %s184, %s184
              $region51: #{longnet_transformer_forward.2} parent=47 // loop_header_branch
                %200 = sbr.rel (%p198) target = $region55
              $region52: #{longnet_transformer_forward.2} parent=47 // loop_body
                %v204 = vld [vmem:[%s202] sm:$0xf]
                %205 = vst [vmem:[%s203] sm:$0xf] %v204
                %v206 = vld [vmem:[%s202 + $0x8] sm:$0xf]
                %207 = vst [vmem:[%s203 + $0x4] sm:$0xf] %v206
              $region53: #{longnet_transformer_forward.2} parent=47 // loop_footer
                %s201 = sadd.s32 1, %s197
              $region54: #{longnet_transformer_forward.2} parent=47 // loop_footer_branch
                %196 = sbr.rel target = $region50
              $region55: #{longnet_transformer_forward.2} parent=47 // loop_exit
                _
            $region48: #{longnet_transformer_forward.2} parent=39 // pred_fallthru
              _
          $region40: #{longnet_transformer_forward.2} parent=35 // pred_fallthru
            _
          %231 = vnop
        $region36: #{longnet_transformer_forward.2} parent=31 // pred_fallthru
          _
      $region32: #{longnet_transformer_forward.2} parent=5 // pred_fallthru
        _
      %p232 = scmp.le.s32.totalorder 1, %s11
      %p233 = scmp.lt.s32.totalorder %s11, 3
      %p234 = pnand %p232, %p233
      %p235 = pneg %p234
      // Predicated region
      $region74: #{longnet_transformer_forward.2} parent=5 // pred_check
        _
      $region75: #{longnet_transformer_forward.2} parent=5 // pred_check_branch
        %237 = sbr.rel (%p234) target = $region77
      $region76: #{longnet_transformer_forward.2} parent=5 // pred_region
        %s238 = ssub.s32 %s11, 1
        %s239 = sand.u32 %s24, 1
        %s240 = sand.u32 %s24, 1
        %s241 = smul.addr %s240, 8
        %s242 = scalar_lea.vmem [#allocation4], %s241
        // Predicated region
        $region78: #{longnet_transformer_forward.2} parent=76 // pred_check
          %p243 = pneg %p37
        $region79: #{longnet_transformer_forward.2} parent=76 // pred_check_branch
          %245 = sbr.rel (%p243) target = $region81
        $region80: #{longnet_transformer_forward.2} parent=76 // pred_region
          _
        $region81: #{longnet_transformer_forward.2} parent=76 // pred_fallthru
          _
        %s246 = sand.u32 %s24, 1
        %s247 = sand.u32 %s24, 1
        %s248 = smul.addr %s247, 8
        %s249 = scalar_lea.vmem [#allocation4], %s248
        %p250 = pneg %p37
        %p251 = pneg %p34
        %p252 = pneg %p58
        %p253 = pneg %p55
        %p254 = pneg %p79
        %p255 = pneg %p76
        %p256 = pneg %p100
        %p257 = pneg %p97
        %p258 = pneg %p121
        %p259 = pneg %p118
        %p260 = pneg %p147
        %p261 = pneg %p144
        %s262 = smul.u32 2, %s16
        %p263 = scmp.lt.s32.totalorder %s262, 3
        %s264 = scalar_select %p263, %s262, 3
        %s265 = smul.addr %s264, 8
        %s266 = scalar_lea.vmem %s5, %s265
        %s267 = smul.u32 2, %s16
        %s268 = smul.u32 2, %s16
        %p269 = scmp.lt.s32.totalorder %s268, 3
        %s270 = scalar_select %p269, %s268, 3
        %s271 = smul.addr %s270, 8
        %s272 = scalar_lea.vmem %s5, %s271
        %s273 = smul.u32 2, %s16
        %v275 = vld [vmem:[%s242] sm:$0xf]
        %v276 = vld [vmem:[%s242 + $0x4] sm:$0xf]
        %v277 = vld [vmem:[%s1] sm:$0xff]
        %v278 = vld [vmem:[%s1 + $0x8] sm:$0xf]
        %v279 = vld [vmem:[%s1 + $0xc] sm:$0xff]
        %v280 = vld [vmem:[%s1 + $0x14] sm:$0xf]
        %v281 = vld [vmem:[%s1 + $0x18] sm:$0xff]
        %v282 = vld [vmem:[%s1 + $0x20] sm:$0xf]
        %v283 = vld [vmem:[%s1 + $0x24] sm:$0xff]
        %v284 = vld [vmem:[%s1 + $0x2c] sm:$0xf]
        %v285 = vld [vmem:[%s1 + $0x30] sm:$0xff]
        %v286 = vld [vmem:[%s1 + $0x38] sm:$0xf]
        %v287 = vld [vmem:[%s1 + $0x3c] sm:$0xff]
        %v288 = vld [vmem:[%s1 + $0x44] sm:$0xf]
        %v289 = vld [vmem:[%s1 + $0x48] sm:$0xff]
        %v290 = vld [vmem:[%s1 + $0x50] sm:$0xf]
        %v291 = vld [vmem:[%s1 + $0x54] sm:$0xff]
        %v292 = vld [vmem:[%s1 + $0x5c] sm:$0xf]
        %v293 = vld [vmem:[%s1 + $0x60] sm:$0xff]
        %v294 = vld [vmem:[%s1 + $0x68] sm:$0xf]
        %v295 = vld [vmem:[%s1 + $0x6c] sm:$0xff]
        %v296 = vld [vmem:[%s1 + $0x74] sm:$0xf]
        %v297 = vld [vmem:[%s1 + $0x78] sm:$0xff]
        %v298 = vld [vmem:[%s1 + $0x80] sm:$0xf]
        %v299 = vld [vmem:[%s1 + $0x84] sm:$0xff]
        %v300 = vld [vmem:[%s1 + $0x8c] sm:$0xf]
        %v301 = vld [vmem:[%s1 + $0x90] sm:$0xff]
        %v302 = vld [vmem:[%s1 + $0x98] sm:$0xf]
        %v303 = vld [vmem:[%s1 + $0x9c] sm:$0xff]
        %v304 = vld [vmem:[%s1 + $0xa4] sm:$0xf]
        %v305 = vld [vmem:[%s1 + $0xa8] sm:$0xff]
        %v306 = vld [vmem:[%s1 + $0xb0] sm:$0xf]
        %v307 = vld [vmem:[%s1 + $0xb4] sm:$0xff]
        %v308 = vld [vmem:[%s1 + $0xbc] sm:$0xf]
        %v309 = vld [vmem:[%s2] sm:$0x7]
        %v311 = vlaneseq
        %v312 = vshrl.u32 %v311, 7
        %v313 = vsub.s32 0, %v312
        %v314 = vrot.slane %v309, %v313
        %v315 = vlaneseq
        %v316 = vshrl.u32 %v315, 7
        %v317 = vsub.s32 1, %v316
        %v318 = vrot.slane %v309, %v317
        %v319 = vlaneseq
        %v320 = vshrl.u32 %v319, 7
        %v321 = vsub.s32 2, %v320
        %v322 = vrot.slane %v309, %v321
        %v328 = vunpack.c.l.b16 %v275
        %v329 = vunpack.c.l.b16 %v276
        %v330 = vpack.c.b16 %v329, %v328
        %v364 = vunpack.c.l.b16 %v277
        %v365 = vunpack.c.h.b16 %v277
        %v366 = vunpack.c.l.b16 %v278
        %v367 = vunpack.c.l.b16 %v279
        %v368 = vunpack.c.h.b16 %v279
        %v369 = vunpack.c.l.b16 %v280
        %v370 = vunpack.c.l.b16 %v281
        %v371 = vunpack.c.h.b16 %v281
        %v372 = vunpack.c.l.b16 %v282
        %v373 = vunpack.c.l.b16 %v283
        %v374 = vunpack.c.h.b16 %v283
        %v375 = vunpack.c.l.b16 %v284
        %v376 = vunpack.c.l.b16 %v285
        %v377 = vunpack.c.h.b16 %v285
        %v378 = vunpack.c.l.b16 %v286
        %v379 = vunpack.c.l.b16 %v287
        %v380 = vunpack.c.h.b16 %v287
        %v381 = vunpack.c.l.b16 %v288
        %v382 = vunpack.c.l.b16 %v289
        %v383 = vunpack.c.h.b16 %v289
        %v384 = vunpack.c.l.b16 %v290
        %v385 = vunpack.c.l.b16 %v291
        %v386 = vunpack.c.h.b16 %v291
        %v387 = vunpack.c.l.b16 %v292
        %v388 = vunpack.c.l.b16 %v293
        %v389 = vunpack.c.h.b16 %v293
        %v390 = vunpack.c.l.b16 %v294
        %v391 = vunpack.c.l.b16 %v295
        %v392 = vunpack.c.h.b16 %v295
        %v393 = vunpack.c.l.b16 %v296
        %v394 = vunpack.c.l.b16 %v297
        %v395 = vunpack.c.h.b16 %v297
        %v396 = vunpack.c.l.b16 %v298
        %v397 = vunpack.c.l.b16 %v299
        %v398 = vunpack.c.h.b16 %v299
        %v399 = vunpack.c.l.b16 %v300
        %v400 = vunpack.c.l.b16 %v301
        %v401 = vunpack.c.h.b16 %v301
        %v402 = vunpack.c.l.b16 %v302
        %v403 = vunpack.c.l.b16 %v303
        %v404 = vunpack.c.h.b16 %v303
        %v405 = vunpack.c.l.b16 %v304
        %v406 = vunpack.c.l.b16 %v305
        %v407 = vunpack.c.h.b16 %v305
        %v408 = vunpack.c.l.b16 %v306
        %v409 = vunpack.c.l.b16 %v307
        %v410 = vunpack.c.h.b16 %v307
        %v411 = vunpack.c.l.b16 %v308
        %v412 = vpack.c.b16 %v367, %v364
        %v413 = vpack.c.b16 %v368, %v365
        %v414 = vpack.c.b16 %v369, %v366
        %v415 = vpack.c.b16 %v373, %v370
        %v416 = vpack.c.b16 %v374, %v371
        %v417 = vpack.c.b16 %v375, %v372
        %v418 = vpack.c.b16 %v379, %v376
        %v419 = vpack.c.b16 %v380, %v377
        %v420 = vpack.c.b16 %v381, %v378
        %v421 = vpack.c.b16 %v385, %v382
        %v422 = vpack.c.b16 %v386, %v383
        %v423 = vpack.c.b16 %v387, %v384
        %v424 = vpack.c.b16 %v391, %v388
        %v425 = vpack.c.b16 %v392, %v389
        %v426 = vpack.c.b16 %v393, %v390
        %v427 = vpack.c.b16 %v397, %v394
        %v428 = vpack.c.b16 %v398, %v395
        %v429 = vpack.c.b16 %v399, %v396
        %v430 = vpack.c.b16 %v403, %v400
        %v431 = vpack.c.b16 %v404, %v401
        %v432 = vpack.c.b16 %v405, %v402
        %v433 = vpack.c.b16 %v409, %v406
        %v434 = vpack.c.b16 %v410, %v407
        %v435 = vpack.c.b16 %v411, %v408
        %460 = vmatprep.subr.bf16.mxu0 %v413
        %461 = vmatpush1.bf16.msra.mxu0 %v412
        %462 = vmatprep.subr.bf16.mxu0 %v416
        %463 = vmatpush1.bf16.msra.mxu0 %v415
        %464 = vmatprep.subr.bf16.mxu0 %v419
        %465 = vmatpush1.bf16.msra.mxu0 %v418
        %466 = vmatprep.subr.bf16.mxu0 %v422
        %467 = vmatpush1.bf16.msra.mxu0 %v421
        %468 = vmatprep.subr.bf16.mxu0 %v425
        %469 = vmatpush1.bf16.msra.mxu0 %v424
        %470 = vmatprep.subr.bf16.mxu0 %v428
        %471 = vmatpush1.bf16.msra.mxu0 %v427
        %472 = vmatprep.subr.bf16.mxu0 %v431
        %473 = vmatpush1.bf16.msra.mxu0 %v430
        %474 = vmatprep.subr.bf16.mxu0 %v434
        %475 = vmatpush1.bf16.msra.mxu0 %v433
        %476 = vmatprep.subr.bf16.mxu0 0
        %477 = vmatpush1.bf16.msra.mxu0 0
        %478 = vmatprep.subr.bf16.mxu0 0
        %479 = vmatpush1.bf16.msra.mxu0 0
        %480 = vmatprep.subr.bf16.mxu0 0
        %481 = vmatpush1.bf16.msra.mxu0 0
        %482 = vmatprep.subr.bf16.mxu0 0
        %483 = vmatpush1.bf16.msra.mxu0 0
        %484 = vmatprep.subr.bf16.mxu0 0
        %485 = vmatpush1.bf16.msra.mxu0 0
        %486 = vmatprep.subr.bf16.mxu0 0
        %487 = vmatpush1.bf16.msra.mxu0 0
        %488 = vmatprep.subr.bf16.mxu0 0
        %489 = vmatpush1.bf16.msra.mxu0 0
        %490 = vmatprep.subr.bf16.mxu0 0
        %491 = vmatpush1.bf16.msra.mxu0 0
        %492 = vmatprep.mubr.bf16.mxu0 0
        %493 = vmatmul.mubr.bf16.gmra.mrb[0].mxu0 %v330
        %v494 = vpop.f32.mrb[0].mxu0
        %v495 = vadd.f32 %v314, %v494
        %v496 = vpop.f32.mrb[0].mxu0
        %v497 = vadd.f32 %v318, %v496
        %v498 = vpop.f32.mrb[0].mxu0
        %v499 = vadd.f32 %v314, %v498
        %v500 = vpop.f32.mrb[0].mxu0
        %v501 = vadd.f32 %v318, %v500
        %502 = vdwg.mxu0
        %503 = vmatprep.subr.bf16.mxu0 0
        %504 = vmatpush1.bf16.msra.mxu0 %v414
        %505 = vmatprep.subr.bf16.mxu0 0
        %506 = vmatpush1.bf16.msra.mxu0 %v417
        %507 = vmatprep.subr.bf16.mxu0 0
        %508 = vmatpush1.bf16.msra.mxu0 %v420
        %509 = vmatprep.subr.bf16.mxu0 0
        %510 = vmatpush1.bf16.msra.mxu0 %v423
        %511 = vmatprep.subr.bf16.mxu0 0
        %512 = vmatpush1.bf16.msra.mxu0 %v426
        %513 = vmatprep.subr.bf16.mxu0 0
        %514 = vmatpush1.bf16.msra.mxu0 %v429
        %515 = vmatprep.subr.bf16.mxu0 0
        %516 = vmatpush1.bf16.msra.mxu0 %v432
        %517 = vmatprep.subr.bf16.mxu0 0
        %518 = vmatpush1.bf16.msra.mxu0 %v435
        %519 = vmatprep.subr.bf16.mxu0 0
        %520 = vmatpush1.bf16.msra.mxu0 0
        %521 = vmatprep.subr.bf16.mxu0 0
        %522 = vmatpush1.bf16.msra.mxu0 0
        %523 = vmatprep.subr.bf16.mxu0 0
        %524 = vmatpush1.bf16.msra.mxu0 0
        %525 = vmatprep.subr.bf16.mxu0 0
        %526 = vmatpush1.bf16.msra.mxu0 0
        %527 = vmatprep.subr.bf16.mxu0 0
        %528 = vmatpush1.bf16.msra.mxu0 0
        %529 = vmatprep.subr.bf16.mxu0 0
        %530 = vmatpush1.bf16.msra.mxu0 0
        %531 = vmatprep.subr.bf16.mxu0 0
        %532 = vmatpush1.bf16.msra.mxu0 0
        %533 = vmatprep.subr.bf16.mxu0 0
        %534 = vmatpush1.bf16.msra.mxu0 0
        %535 = vmatprep.mubr.bf16.mxu0 0
        %536 = vmatmul.mubr.bf16.gmra.mrb[0].mxu0 %v330
        %v537 = vpop.f32.mrb[0].mxu0
        %v538 = vadd.f32 %v322, %v537
        %v539 = vpop.f32.mrb[0].mxu0
        %v540 = vpop.f32.mrb[0].mxu0
        %v541 = vadd.f32 %v322, %v540
        %v542 = vpop.f32.mrb[0].mxu0
        %543 = vdwg.mxu0
        %v544 = vpack.c.bf16 %v499, %v495
        %v545 = vpack.c.bf16 %v501, %v497
        %v546 = vpack.c.bf16 %v541, %v538
        %547 = vst [vmem:[#allocation2] sm:$0xff] %v544
        %548 = vst [vmem:[#allocation2 + $0x8] sm:$0xff] %v545
        %549 = vst [vmem:[#allocation2 + $0x10] sm:$0xff] %v546
        %v550 = vld [vmem:[#allocation2] sm:$0xf]
        %v551 = vld [vmem:[#allocation2 + $0x8] sm:$0xf]
        %v552 = vld [vmem:[#allocation2 + $0x10] sm:$0xf]
        %vm553 = vcmask 261120
        %v555 = vsel %vm553, %v550, 0
        %v558 = vsel %vm553, %v551, 0
        %560 = vmatprep.subr.bf16.mxu0 0
        %561 = vmatpush1.bf16.xpose.msra.mxu0 %v558
        %562 = vmatprep.subr.bf16.mxu0 0
        %563 = vmatpush1.bf16.xpose.msra.mxu0 0
        %564 = vmatprep.subr.bf16.mxu0 0
        %565 = vmatpush1.bf16.xpose.msra.mxu0 0
        %566 = vmatprep.subr.bf16.mxu0 0
        %567 = vmatpush1.bf16.xpose.msra.mxu0 0
        %568 = vmatprep.subr.bf16.mxu0 0
        %569 = vmatpush1.bf16.xpose.msra.mxu0 0
        %570 = vmatprep.subr.bf16.mxu0 0
        %571 = vmatpush1.bf16.xpose.msra.mxu0 0
        %572 = vmatprep.subr.bf16.mxu0 0
        %573 = vmatpush1.bf16.xpose.msra.mxu0 0
        %574 = vmatprep.subr.bf16.mxu0 0
        %575 = vmatpush1.bf16.xpose.msra.mxu0 0
        %576 = vmatprep.subr.bf16.mxu0 0
        %577 = vmatpush1.bf16.xpose.msra.mxu0 0
        %578 = vmatprep.subr.bf16.mxu0 0
        %579 = vmatpush1.bf16.xpose.msra.mxu0 0
        %580 = vmatprep.subr.bf16.mxu0 0
        %581 = vmatpush1.bf16.xpose.msra.mxu0 0
        %582 = vmatprep.subr.bf16.mxu0 0
        %583 = vmatpush1.bf16.xpose.msra.mxu0 0
        %584 = vmatprep.subr.bf16.mxu0 0
        %585 = vmatpush1.bf16.xpose.msra.mxu0 0
        %586 = vmatprep.subr.bf16.mxu0 0
        %587 = vmatpush1.bf16.xpose.msra.mxu0 0
        %588 = vmatprep.subr.bf16.mxu0 0
        %589 = vmatpush1.bf16.xpose.msra.mxu0 0
        %590 = vmatprep.subr.bf16.mxu0 0
        %591 = vmatpush1.bf16.xpose.msra.mxu0 0
        %592 = vmatprep.mubr.bf16.mxu0 0
        %593 = vmatmul.mubr.bf16.gmra.mrb[0].mxu0 %v555
        %v594 = vpop.f32.mrb[0].mxu0
        %v595 = vadd.f32 0.0, %v594
        %v596 = vpop.f32.mrb[0].mxu0
        %v597 = vpop.f32.mrb[0].mxu0
        %v598 = vpop.f32.mrb[0].mxu0
        %599 = vdwg.mxu0
        %vm600 = vcmask 64512
        %v601 = vsel %vm600, %v595, -inf
        %602 = vmax.xlane.f32.xlu0 %v601
        %v603 = vpop.xlane.xlu0 %602
        %v604 = vsub.f32 %v595, %v603
        %v605 = vmul.f32 %v604, 1.442695
        %v606 = vpow.pop %v605
        %v607 = vsel %vm600, %v606, 0.0
        %608 = vadd.xlane.f32.xlu0 %v607
        %v609 = vpop.xlane.xlu0 %608
        %v610 = vpack.c.bf16 %v606, %v606
        %v612 = vsel %vm600, %v610, 0
        %vm614 = vcmask 1043456
        %v616 = vsel %vm614, %v552, 0
        %618 = vmatprep.subr.bf16.mxu0 0
        %619 = vmatpush1.bf16.msra.mxu0 %v616
        %620 = vmatprep.subr.bf16.mxu0 0
        %621 = vmatpush1.bf16.msra.mxu0 0
        %622 = vmatprep.subr.bf16.mxu0 0
        %623 = vmatpush1.bf16.msra.mxu0 0
        %624 = vmatprep.subr.bf16.mxu0 0
        %625 = vmatpush1.bf16.msra.mxu0 0
        %626 = vmatprep.subr.bf16.mxu0 0
        %627 = vmatpush1.bf16.msra.mxu0 0
        %628 = vmatprep.subr.bf16.mxu0 0
        %629 = vmatpush1.bf16.msra.mxu0 0
        %630 = vmatprep.subr.bf16.mxu0 0
        %631 = vmatpush1.bf16.msra.mxu0 0
        %632 = vmatprep.subr.bf16.mxu0 0
        %633 = vmatpush1.bf16.msra.mxu0 0
        %634 = vmatprep.subr.bf16.mxu0 0
        %635 = vmatpush1.bf16.msra.mxu0 0
        %636 = vmatprep.subr.bf16.mxu0 0
        %637 = vmatpush1.bf16.msra.mxu0 0
        %638 = vmatprep.subr.bf16.mxu0 0
        %639 = vmatpush1.bf16.msra.mxu0 0
        %640 = vmatprep.subr.bf16.mxu0 0
        %641 = vmatpush1.bf16.msra.mxu0 0
        %642 = vmatprep.subr.bf16.mxu0 0
        %643 = vmatpush1.bf16.msra.mxu0 0
        %644 = vmatprep.subr.bf16.mxu0 0
        %645 = vmatpush1.bf16.msra.mxu0 0
        %646 = vmatprep.subr.bf16.mxu0 0
        %647 = vmatpush1.bf16.msra.mxu0 0
        %648 = vmatprep.subr.bf16.mxu0 0
        %649 = vmatpush1.bf16.msra.mxu0 0
        %650 = vmatprep.mubr.bf16.mxu0 0
        %651 = vmatmul.mubr.bf16.gmra.mrb[0].mxu0 %v612
        %v652 = vpop.f32.mrb[0].mxu0
        %v653 = vadd.f32 0.0, %v652
        %v654 = vpop.f32.mrb[0].mxu0
        %v655 = vpop.f32.mrb[0].mxu0
        %v656 = vpop.f32.mrb[0].mxu0
        %657 = vdwg.mxu0
        %v658 = vrcp.pop %v609
        %v659 = vmul.f32 %v653, %v658
        %660 = vst.msk [vmem:[#allocation3] sm:$0xff] %vm553, %v659
        %v661 = vld [vmem:[#allocation2] sm:$0xf0]
        %v662 = vld [vmem:[#allocation2 + $0x8] sm:$0xf0]
        %v663 = vld [vmem:[#allocation2 + $0x10] sm:$0xf0]
        %v665 = vrot.slane %v661, 4
        %v667 = vrot.slane %v662, 4
        %v669 = vsel %vm553, %v665, 0
        %v672 = vsel %vm553, %v667, 0
        %674 = vmatprep.subr.bf16.mxu0 0
        %675 = vmatpush1.bf16.xpose.msra.mxu0 %v672
        %676 = vmatprep.subr.bf16.mxu0 0
        %677 = vmatpush1.bf16.xpose.msra.mxu0 0
        %678 = vmatprep.subr.bf16.mxu0 0
        %679 = vmatpush1.bf16.xpose.msra.mxu0 0
        %680 = vmatprep.subr.bf16.mxu0 0
        %681 = vmatpush1.bf16.xpose.msra.mxu0 0
        %682 = vmatprep.subr.bf16.mxu0 0
        %683 = vmatpush1.bf16.xpose.msra.mxu0 0
        %684 = vmatprep.subr.bf16.mxu0 0
        %685 = vmatpush1.bf16.xpose.msra.mxu0 0
        %686 = vmatprep.subr.bf16.mxu0 0
        %687 = vmatpush1.bf16.xpose.msra.mxu0 0
        %688 = vmatprep.subr.bf16.mxu0 0
        %689 = vmatpush1.bf16.xpose.msra.mxu0 0
        %690 = vmatprep.subr.bf16.mxu0 0
        %691 = vmatpush1.bf16.xpose.msra.mxu0 0
        %692 = vmatprep.subr.bf16.mxu0 0
        %693 = vmatpush1.bf16.xpose.msra.mxu0 0
        %694 = vmatprep.subr.bf16.mxu0 0
        %695 = vmatpush1.bf16.xpose.msra.mxu0 0
        %696 = vmatprep.subr.bf16.mxu0 0
        %697 = vmatpush1.bf16.xpose.msra.mxu0 0
        %698 = vmatprep.subr.bf16.mxu0 0
        %699 = vmatpush1.bf16.xpose.msra.mxu0 0
        %700 = vmatprep.subr.bf16.mxu0 0
        %701 = vmatpush1.bf16.xpose.msra.mxu0 0
        %702 = vmatprep.subr.bf16.mxu0 0
        %703 = vmatpush1.bf16.xpose.msra.mxu0 0
        %704 = vmatprep.subr.bf16.mxu0 0
        %705 = vmatpush1.bf16.xpose.msra.mxu0 0
        %706 = vmatprep.mubr.bf16.mxu0 0
        %707 = vmatmul.mubr.bf16.gmra.mrb[0].mxu0 %v669
        %v708 = vpop.f32.mrb[0].mxu0
        %v709 = vadd.f32 0.0, %v708
        %v710 = vpop.f32.mrb[0].mxu0
        %v711 = vpop.f32.mrb[0].mxu0
        %v712 = vpop.f32.mrb[0].mxu0
        %713 = vdwg.mxu0
        %v714 = vsel %vm600, %v709, -inf
        %715 = vmax.xlane.f32.xlu0 %v714
        %v716 = vpop.xlane.xlu0 %715
        %v717 = vsub.f32 %v709, %v716
        %v718 = vmul.f32 %v717, 1.442695
        %v719 = vpow.pop %v718
        %v720 = vsel %vm600, %v719, 0.0
        %721 = vadd.xlane.f32.xlu0 %v720
        %v722 = vpop.xlane.xlu0 %721
        %v723 = vpack.c.bf16 %v719, %v719
        %v725 = vrot.slane %v663, 4
        %v727 = vsel %vm600, %v723, 0
        %v730 = vsel %vm614, %v725, 0
        %732 = vmatprep.subr.bf16.mxu0 0
        %733 = vmatpush1.bf16.msra.mxu0 %v730
        %734 = vmatprep.subr.bf16.mxu0 0
        %735 = vmatpush1.bf16.msra.mxu0 0
        %736 = vmatprep.subr.bf16.mxu0 0
        %737 = vmatpush1.bf16.msra.mxu0 0
        %738 = vmatprep.subr.bf16.mxu0 0
        %739 = vmatpush1.bf16.msra.mxu0 0
        %740 = vmatprep.subr.bf16.mxu0 0
        %741 = vmatpush1.bf16.msra.mxu0 0
        %742 = vmatprep.subr.bf16.mxu0 0
        %743 = vmatpush1.bf16.msra.mxu0 0
        %744 = vmatprep.subr.bf16.mxu0 0
        %745 = vmatpush1.bf16.msra.mxu0 0
        %746 = vmatprep.subr.bf16.mxu0 0
        %747 = vmatpush1.bf16.msra.mxu0 0
        %748 = vmatprep.subr.bf16.mxu0 0
        %749 = vmatpush1.bf16.msra.mxu0 0
        %750 = vmatprep.subr.bf16.mxu0 0
        %751 = vmatpush1.bf16.msra.mxu0 0
        %752 = vmatprep.subr.bf16.mxu0 0
        %753 = vmatpush1.bf16.msra.mxu0 0
        %754 = vmatprep.subr.bf16.mxu0 0
        %755 = vmatpush1.bf16.msra.mxu0 0
        %756 = vmatprep.subr.bf16.mxu0 0
        %757 = vmatpush1.bf16.msra.mxu0 0
        %758 = vmatprep.subr.bf16.mxu0 0
        %759 = vmatpush1.bf16.msra.mxu0 0
        %760 = vmatprep.subr.bf16.mxu0 0
        %761 = vmatpush1.bf16.msra.mxu0 0
        %762 = vmatprep.subr.bf16.mxu0 0
        %763 = vmatpush1.bf16.msra.mxu0 0
        %764 = vmatprep.mubr.bf16.mxu0 0
        %765 = vmatmul.mubr.bf16.gmra.mrb[0].mxu0 %v727
        %v766 = vpop.f32.mrb[0].mxu0
        %v767 = vadd.f32 0.0, %v766
        %v768 = vpop.f32.mrb[0].mxu0
        %v769 = vpop.f32.mrb[0].mxu0
        %v770 = vpop.f32.mrb[0].mxu0
        %771 = vdwg.mxu0
        %v772 = vrcp.pop %v722
        %v773 = vmul.f32 %v767, %v772
        %774 = vst.msk [vmem:[#allocation3 + $0x8] sm:$0xff] %vm553, %v773
        %v775 = vld [vmem:[#allocation2] sm:$0xf]
        %v776 = vld [vmem:[#allocation2 + $0x8] sm:$0xf]
        %v777 = vld [vmem:[#allocation2 + $0x10] sm:$0xf]
        %779 = vrot.lane.b32.xlu0 %v775, 96
        %v780 = vpop.permute.xlu0 %779
        %782 = vrot.lane.b32.xlu0 %v776, 96
        %v783 = vpop.permute.xlu0 %782
        %v785 = vsel %vm553, %v780, 0
        %v788 = vsel %vm553, %v783, 0
        %790 = vmatprep.subr.bf16.mxu0 0
        %791 = vmatpush1.bf16.xpose.msra.mxu0 %v788
        %792 = vmatprep.subr.bf16.mxu0 0
        %793 = vmatpush1.bf16.xpose.msra.mxu0 0
        %794 = vmatprep.subr.bf16.mxu0 0
        %795 = vmatpush1.bf16.xpose.msra.mxu0 0
        %796 = vmatprep.subr.bf16.mxu0 0
        %797 = vmatpush1.bf16.xpose.msra.mxu0 0
        %798 = vmatprep.subr.bf16.mxu0 0
        %799 = vmatpush1.bf16.xpose.msra.mxu0 0
        %800 = vmatprep.subr.bf16.mxu0 0
        %801 = vmatpush1.bf16.xpose.msra.mxu0 0
        %802 = vmatprep.subr.bf16.mxu0 0
        %803 = vmatpush1.bf16.xpose.msra.mxu0 0
        %804 = vmatprep.subr.bf16.mxu0 0
        %805 = vmatpush1.bf16.xpose.msra.mxu0 0
        %806 = vmatprep.subr.bf16.mxu0 0
        %807 = vmatpush1.bf16.xpose.msra.mxu0 0
        %808 = vmatprep.subr.bf16.mxu0 0
        %809 = vmatpush1.bf16.xpose.msra.mxu0 0
        %810 = vmatprep.subr.bf16.mxu0 0
        %811 = vmatpush1.bf16.xpose.msra.mxu0 0
        %812 = vmatprep.subr.bf16.mxu0 0
        %813 = vmatpush1.bf16.xpose.msra.mxu0 0
        %814 = vmatprep.subr.bf16.mxu0 0
        %815 = vmatpush1.bf16.xpose.msra.mxu0 0
        %816 = vmatprep.subr.bf16.mxu0 0
        %817 = vmatpush1.bf16.xpose.msra.mxu0 0
        %818 = vmatprep.subr.bf16.mxu0 0
        %819 = vmatpush1.bf16.xpose.msra.mxu0 0
        %820 = vmatprep.subr.bf16.mxu0 0
        %821 = vmatpush1.bf16.xpose.msra.mxu0 0
        %822 = vmatprep.mubr.bf16.mxu0 0
        %823 = vmatmul.mubr.bf16.gmra.mrb[0].mxu0 %v785
        %v824 = vpop.f32.mrb[0].mxu0
        %v825 = vadd.f32 0.0, %v824
        %v826 = vpop.f32.mrb[0].mxu0
        %v827 = vpop.f32.mrb[0].mxu0
        %v828 = vpop.f32.mrb[0].mxu0
        %829 = vdwg.mxu0
        %v830 = vsel %vm600, %v825, -inf
        %831 = vmax.xlane.f32.xlu0 %v830
        %v832 = vpop.xlane.xlu0 %831
        %v833 = vsub.f32 %v825, %v832
        %v834 = vmul.f32 %v833, 1.442695
        %v835 = vpow.pop %v834
        %v836 = vsel %vm600, %v835, 0.0
        %837 = vadd.xlane.f32.xlu0 %v836
        %v838 = vpop.xlane.xlu0 %837
        %v839 = vpack.c.bf16 %v835, %v835
        %841 = vrot.lane.b32.xlu0 %v777, 96
        %v842 = vpop.permute.xlu0 %841
        %v844 = vsel %vm600, %v839, 0
        %v847 = vsel %vm614, %v842, 0
        %849 = vmatprep.subr.bf16.mxu0 0
        %850 = vmatpush1.bf16.msra.mxu0 %v847
        %851 = vmatprep.subr.bf16.mxu0 0
        %852 = vmatpush1.bf16.msra.mxu0 0
        %853 = vmatprep.subr.bf16.mxu0 0
        %854 = vmatpush1.bf16.msra.mxu0 0
        %855 = vmatprep.subr.bf16.mxu0 0
        %856 = vmatpush1.bf16.msra.mxu0 0
        %857 = vmatprep.subr.bf16.mxu0 0
        %858 = vmatpush1.bf16.msra.mxu0 0
        %859 = vmatprep.subr.bf16.mxu0 0
        %860 = vmatpush1.bf16.msra.mxu0 0
        %861 = vmatprep.subr.bf16.mxu0 0
        %862 = vmatpush1.bf16.msra.mxu0 0
        %863 = vmatprep.subr.bf16.mxu0 0
        %864 = vmatpush1.bf16.msra.mxu0 0
        %865 = vmatprep.subr.bf16.mxu0 0
        %866 = vmatpush1.bf16.msra.mxu0 0
        %867 = vmatprep.subr.bf16.mxu0 0
        %868 = vmatpush1.bf16.msra.mxu0 0
        %869 = vmatprep.subr.bf16.mxu0 0
        %870 = vmatpush1.bf16.msra.mxu0 0
        %871 = vmatprep.subr.bf16.mxu0 0
        %872 = vmatpush1.bf16.msra.mxu0 0
        %873 = vmatprep.subr.bf16.mxu0 0
        %874 = vmatpush1.bf16.msra.mxu0 0
        %875 = vmatprep.subr.bf16.mxu0 0
        %876 = vmatpush1.bf16.msra.mxu0 0
        %877 = vmatprep.subr.bf16.mxu0 0
        %878 = vmatpush1.bf16.msra.mxu0 0
        %879 = vmatprep.subr.bf16.mxu0 0
        %880 = vmatpush1.bf16.msra.mxu0 0
        %881 = vmatprep.mubr.bf16.mxu0 0
        %882 = vmatmul.mubr.bf16.gmra.mrb[0].mxu0 %v844
        %v883 = vpop.f32.mrb[0].mxu0
        %v884 = vadd.f32 0.0, %v883
        %v885 = vpop.f32.mrb[0].mxu0
        %v886 = vpop.f32.mrb[0].mxu0
        %v887 = vpop.f32.mrb[0].mxu0
        %888 = vdwg.mxu0
        %v889 = vrcp.pop %v838
        %v890 = vmul.f32 %v884, %v889
        %892 = vrot.lane.b32.xlu0 %v890, 32
        %v893 = vpop.permute.xlu0 %892
        %vm895 = vcmask 523520
        %896 = vst.msk [vmem:[#allocation3] sm:$0xff] %vm895, %v893
        %v897 = vld [vmem:[#allocation2] sm:$0xf0]
        %v898 = vld [vmem:[#allocation2 + $0x8] sm:$0xf0]
        %v899 = vld [vmem:[#allocation2 + $0x10] sm:$0xf0]
        %v901 = vrot.slane %v897, 4
        %902 = vrot.lane.b32.xlu0 %v901, 96
        %v903 = vpop.permute.xlu0 %902
        %v905 = vrot.slane %v898, 4
        %906 = vrot.lane.b32.xlu0 %v905, 96
        %v907 = vpop.permute.xlu0 %906
        %v909 = vsel %vm553, %v903, 0
        %v912 = vsel %vm553, %v907, 0
        %914 = vmatprep.subr.bf16.mxu0 0
        %915 = vmatpush1.bf16.xpose.msra.mxu0 %v912
        %916 = vmatprep.subr.bf16.mxu0 0
        %917 = vmatpush1.bf16.xpose.msra.mxu0 0
        %918 = vmatprep.subr.bf16.mxu0 0
        %919 = vmatpush1.bf16.xpose.msra.mxu0 0
        %920 = vmatprep.subr.bf16.mxu0 0
        %921 = vmatpush1.bf16.xpose.msra.mxu0 0
        %922 = vmatprep.subr.bf16.mxu0 0
        %923 = vmatpush1.bf16.xpose.msra.mxu0 0
        %924 = vmatprep.subr.bf16.mxu0 0
        %925 = vmatpush1.bf16.xpose.msra.mxu0 0
        %926 = vmatprep.subr.bf16.mxu0 0
        %927 = vmatpush1.bf16.xpose.msra.mxu0 0
        %928 = vmatprep.subr.bf16.mxu0 0
        %929 = vmatpush1.bf16.xpose.msra.mxu0 0
        %930 = vmatprep.subr.bf16.mxu0 0
        %931 = vmatpush1.bf16.xpose.msra.mxu0 0
        %932 = vmatprep.subr.bf16.mxu0 0
        %933 = vmatpush1.bf16.xpose.msra.mxu0 0
        %934 = vmatprep.subr.bf16.mxu0 0
        %935 = vmatpush1.bf16.xpose.msra.mxu0 0
        %936 = vmatprep.subr.bf16.mxu0 0
        %937 = vmatpush1.bf16.xpose.msra.mxu0 0
        %938 = vmatprep.subr.bf16.mxu0 0
        %939 = vmatpush1.bf16.xpose.msra.mxu0 0
        %940 = vmatprep.subr.bf16.mxu0 0
        %941 = vmatpush1.bf16.xpose.msra.mxu0 0
        %942 = vmatprep.subr.bf16.mxu0 0
        %943 = vmatpush1.bf16.xpose.msra.mxu0 0
        %944 = vmatprep.subr.bf16.mxu0 0
        %945 = vmatpush1.bf16.xpose.msra.mxu0 0
        %946 = vmatprep.mubr.bf16.mxu0 0
        %947 = vmatmul.mubr.bf16.gmra.mrb[0].mxu0 %v909
        %v948 = vpop.f32.mrb[0].mxu0
        %v949 = vadd.f32 0.0, %v948
        %v950 = vpop.f32.mrb[0].mxu0
        %v951 = vpop.f32.mrb[0].mxu0
        %v952 = vpop.f32.mrb[0].mxu0
        %953 = vdwg.mxu0
        %v954 = vsel %vm600, %v949, -inf
        %955 = vmax.xlane.f32.xlu0 %v954
        %v956 = vpop.xlane.xlu0 %955
        %v957 = vsub.f32 %v949, %v956
        %v958 = vmul.f32 %v957, 1.442695
        %v959 = vpow.pop %v958
        %v960 = vsel %vm600, %v959, 0.0
        %961 = vadd.xlane.f32.xlu0 %v960
        %v962 = vpop.xlane.xlu0 %961
        %v963 = vpack.c.bf16 %v959, %v959
        %v965 = vrot.slane %v899, 4
        %966 = vrot.lane.b32.xlu0 %v965, 96
        %v967 = vpop.permute.xlu0 %966
        %v969 = vsel %vm600, %v963, 0
        %v972 = vsel %vm614, %v967, 0
        %974 = vmatprep.subr.bf16.mxu0 0
        %975 = vmatpush1.bf16.msra.mxu0 %v972
        %976 = vmatprep.subr.bf16.mxu0 0
        %977 = vmatpush1.bf16.msra.mxu0 0
        %978 = vmatprep.subr.bf16.mxu0 0
        %979 = vmatpush1.bf16.msra.mxu0 0
        %980 = vmatprep.subr.bf16.mxu0 0
        %981 = vmatpush1.bf16.msra.mxu0 0
        %982 = vmatprep.subr.bf16.mxu0 0
        %983 = vmatpush1.bf16.msra.mxu0 0
        %984 = vmatprep.subr.bf16.mxu0 0
        %985 = vmatpush1.bf16.msra.mxu0 0
        %986 = vmatprep.subr.bf16.mxu0 0
        %987 = vmatpush1.bf16.msra.mxu0 0
        %988 = vmatprep.subr.bf16.mxu0 0
        %989 = vmatpush1.bf16.msra.mxu0 0
        %990 = vmatprep.subr.bf16.mxu0 0
        %991 = vmatpush1.bf16.msra.mxu0 0
        %992 = vmatprep.subr.bf16.mxu0 0
        %993 = vmatpush1.bf16.msra.mxu0 0
        %994 = vmatprep.subr.bf16.mxu0 0
        %995 = vmatpush1.bf16.msra.mxu0 0
        %996 = vmatprep.subr.bf16.mxu0 0
        %997 = vmatpush1.bf16.msra.mxu0 0
        %998 = vmatprep.subr.bf16.mxu0 0
        %999 = vmatpush1.bf16.msra.mxu0 0
        %1000 = vmatprep.subr.bf16.mxu0 0
        %1001 = vmatpush1.bf16.msra.mxu0 0
        %1002 = vmatprep.subr.bf16.mxu0 0
        %1003 = vmatpush1.bf16.msra.mxu0 0
        %1004 = vmatprep.subr.bf16.mxu0 0
        %1005 = vmatpush1.bf16.msra.mxu0 0
        %1006 = vmatprep.mubr.bf16.mxu0 0
        %1007 = vmatmul.mubr.bf16.gmra.mrb[0].mxu0 %v969
        %v1008 = vpop.f32.mrb[0].mxu0
        %v1009 = vadd.f32 0.0, %v1008
        %v1010 = vpop.f32.mrb[0].mxu0
        %v1011 = vpop.f32.mrb[0].mxu0
        %v1012 = vpop.f32.mrb[0].mxu0
        %1013 = vdwg.mxu0
        %v1014 = vrcp.pop %v962
        %v1015 = vmul.f32 %v1009, %v1014
        %1017 = vrot.lane.b32.xlu0 %v1015, 32
        %v1018 = vpop.permute.xlu0 %1017
        %1020 = vst.msk [vmem:[#allocation3 + $0x8] sm:$0xff] %vm895, %v1018
        %v1021 = vld [vmem:[#allocation2] sm:$0xf]
        %v1022 = vld [vmem:[#allocation2 + $0x8] sm:$0xf]
        %v1023 = vld [vmem:[#allocation2 + $0x10] sm:$0xf]
        %1025 = vrot.lane.b32.xlu0 %v1021, 64
        %v1026 = vpop.permute.xlu0 %1025
        %1028 = vrot.lane.b32.xlu0 %v1022, 64
        %v1029 = vpop.permute.xlu0 %1028
        %v1031 = vsel %vm553, %v1026, 0
        %v1034 = vsel %vm553, %v1029, 0
        %1036 = vmatprep.subr.bf16.mxu0 0
        %1037 = vmatpush1.bf16.xpose.msra.mxu0 %v1034
        %1038 = vmatprep.subr.bf16.mxu0 0
        %1039 = vmatpush1.bf16.xpose.msra.mxu0 0
        %1040 = vmatprep.subr.bf16.mxu0 0
        %1041 = vmatpush1.bf16.xpose.msra.mxu0 0
        %1042 = vmatprep.subr.bf16.mxu0 0
        %1043 = vmatpush1.bf16.xpose.msra.mxu0 0
        %1044 = vmatprep.subr.bf16.mxu0 0
        %1045 = vmatpush1.bf16.xpose.msra.mxu0 0
        %1046 = vmatprep.subr.bf16.mxu0 0
        %1047 = vmatpush1.bf16.xpose.msra.mxu0 0
        %1048 = vmatprep.subr.bf16.mxu0 0
        %1049 = vmatpush1.bf16.xpose.msra.mxu0 0
        %1050 = vmatprep.subr.bf16.mxu0 0
        %1051 = vmatpush1.bf16.xpose.msra.mxu0 0
        %1052 = vmatprep.subr.bf16.mxu0 0
        %1053 = vmatpush1.bf16.xpose.msra.mxu0 0
        %1054 = vmatprep.subr.bf16.mxu0 0
        %1055 = vmatpush1.bf16.xpose.msra.mxu0 0
        %1056 = vmatprep.subr.bf16.mxu0 0
        %1057 = vmatpush1.bf16.xpose.msra.mxu0 0
        %1058 = vmatprep.subr.bf16.mxu0 0
        %1059 = vmatpush1.bf16.xpose.msra.mxu0 0
        %1060 = vmatprep.subr.bf16.mxu0 0
        %1061 = vmatpush1.bf16.xpose.msra.mxu0 0
        %1062 = vmatprep.subr.bf16.mxu0 0
        %1063 = vmatpush1.bf16.xpose.msra.mxu0 0
        %1064 = vmatprep.subr.bf16.mxu0 0
        %1065 = vmatpush1.bf16.xpose.msra.mxu0 0
        %1066 = vmatprep.subr.bf16.mxu0 0
        %1067 = vmatpush1.bf16.xpose.msra.mxu0 0
        %1068 = vmatprep.mubr.bf16.mxu0 0
        %1069 = vmatmul.mubr.bf16.gmra.mrb[0].mxu0 %v1031
        %v1070 = vpop.f32.mrb[0].mxu0
        %v1071 = vadd.f32 0.0, %v1070
        %v1072 = vpop.f32.mrb[0].mxu0
        %v1073 = vpop.f32.mrb[0].mxu0
        %v1074 = vpop.f32.mrb[0].mxu0
        %1075 = vdwg.mxu0
        %v1076 = vsel %vm600, %v1071, -inf
        %1077 = vmax.xlane.f32.xlu0 %v1076
        %v1078 = vpop.xlane.xlu0 %1077
        %v1079 = vsub.f32 %v1071, %v1078
        %v1080 = vmul.f32 %v1079, 1.442695
        %v1081 = vpow.pop %v1080
        %v1082 = vsel %vm600, %v1081, 0.0
        %1083 = vadd.xlane.f32.xlu0 %v1082
        %v1084 = vpop.xlane.xlu0 %1083
        %v1085 = vpack.c.bf16 %v1081, %v1081
        %1087 = vrot.lane.b32.xlu0 %v1023, 64
        %v1088 = vpop.permute.xlu0 %1087
        %v1090 = vsel %vm600, %v1085, 0
        %v1093 = vsel %vm614, %v1088, 0
        %1095 = vmatprep.subr.bf16.mxu0 0
        %1096 = vmatpush1.bf16.msra.mxu0 %v1093
        %1097 = vmatprep.subr.bf16.mxu0 0
        %1098 = vmatpush1.bf16.msra.mxu0 0
        %1099 = vmatprep.subr.bf16.mxu0 0
        %1100 = vmatpush1.bf16.msra.mxu0 0
        %1101 = vmatprep.subr.bf16.mxu0 0
        %1102 = vmatpush1.bf16.msra.mxu0 0
        %1103 = vmatprep.subr.bf16.mxu0 0
        %1104 = vmatpush1.bf16.msra.mxu0 0
        %1105 = vmatprep.subr.bf16.mxu0 0
        %1106 = vmatpush1.bf16.msra.mxu0 0
        %1107 = vmatprep.subr.bf16.mxu0 0
        %1108 = vmatpush1.bf16.msra.mxu0 0
        %1109 = vmatprep.subr.bf16.mxu0 0
        %1110 = vmatpush1.bf16.msra.mxu0 0
        %1111 = vmatprep.subr.bf16.mxu0 0
        %1112 = vmatpush1.bf16.msra.mxu0 0
        %1113 = vmatprep.subr.bf16.mxu0 0
        %1114 = vmatpush1.bf16.msra.mxu0 0
        %1115 = vmatprep.subr.bf16.mxu0 0
        %1116 = vmatpush1.bf16.msra.mxu0 0
        %1117 = vmatprep.subr.bf16.mxu0 0
        %1118 = vmatpush1.bf16.msra.mxu0 0
        %1119 = vmatprep.subr.bf16.mxu0 0
        %1120 = vmatpush1.bf16.msra.mxu0 0
        %1121 = vmatprep.subr.bf16.mxu0 0
        %1122 = vmatpush1.bf16.msra.mxu0 0
        %1123 = vmatprep.subr.bf16.mxu0 0
        %1124 = vmatpush1.bf16.msra.mxu0 0
        %1125 = vmatprep.subr.bf16.mxu0 0
        %1126 = vmatpush1.bf16.msra.mxu0 0
        %1127 = vmatprep.mubr.bf16.mxu0 0
        %1128 = vmatmul.mubr.bf16.gmra.mrb[0].mxu0 %v1090
        %v1129 = vpop.f32.mrb[0].mxu0
        %v1130 = vadd.f32 0.0, %v1129
        %v1131 = vpop.f32.mrb[0].mxu0
        %v1132 = vpop.f32.mrb[0].mxu0
        %v1133 = vpop.f32.mrb[0].mxu0
        %1134 = vdwg.mxu0
        %v1135 = vrcp.pop %v1084
        %v1136 = vmul.f32 %v1130, %v1135
        %1138 = vrot.lane.b32.xlu0 %v1136, 64
        %v1139 = vpop.permute.xlu0 %1138
        %vm1141 = vcmask 785920
        %1142 = vst.msk [vmem:[#allocation3] sm:$0xff] %vm1141, %v1139
        %v1143 = vld [vmem:[#allocation2] sm:$0xf0]
        %v1144 = vld [vmem:[#allocation2 + $0x8] sm:$0xf0]
        %v1145 = vld [vmem:[#allocation2 + $0x10] sm:$0xf0]
        %v1147 = vrot.slane %v1143, 4
        %1148 = vrot.lane.b32.xlu0 %v1147, 64
        %v1149 = vpop.permute.xlu0 %1148
        %v1151 = vrot.slane %v1144, 4
        %1152 = vrot.lane.b32.xlu0 %v1151, 64
        %v1153 = vpop.permute.xlu0 %1152
        %v1155 = vsel %vm553, %v1149, 0
        %v1158 = vsel %vm553, %v1153, 0
        %1160 = vmatprep.subr.bf16.mxu0 0
        %1161 = vmatpush1.bf16.xpose.msra.mxu0 %v1158
        %1162 = vmatprep.subr.bf16.mxu0 0
        %1163 = vmatpush1.bf16.xpose.msra.mxu0 0
        %1164 = vmatprep.subr.bf16.mxu0 0
        %1165 = vmatpush1.bf16.xpose.msra.mxu0 0
        %1166 = vmatprep.subr.bf16.mxu0 0
        %1167 = vmatpush1.bf16.xpose.msra.mxu0 0
        %1168 = vmatprep.subr.bf16.mxu0 0
        %1169 = vmatpush1.bf16.xpose.msra.mxu0 0
        %1170 = vmatprep.subr.bf16.mxu0 0
        %1171 = vmatpush1.bf16.xpose.msra.mxu0 0
        %1172 = vmatprep.subr.bf16.mxu0 0
        %1173 = vmatpush1.bf16.xpose.msra.mxu0 0
        %1174 = vmatprep.subr.bf16.mxu0 0
        %1175 = vmatpush1.bf16.xpose.msra.mxu0 0
        %1176 = vmatprep.subr.bf16.mxu0 0
        %1177 = vmatpush1.bf16.xpose.msra.mxu0 0
        %1178 = vmatprep.subr.bf16.mxu0 0
        %1179 = vmatpush1.bf16.xpose.msra.mxu0 0
        %1180 = vmatprep.subr.bf16.mxu0 0
        %1181 = vmatpush1.bf16.xpose.msra.mxu0 0
        %1182 = vmatprep.subr.bf16.mxu0 0
        %1183 = vmatpush1.bf16.xpose.msra.mxu0 0
        %1184 = vmatprep.subr.bf16.mxu0 0
        %1185 = vmatpush1.bf16.xpose.msra.mxu0 0
        %1186 = vmatprep.subr.bf16.mxu0 0
        %1187 = vmatpush1.bf16.xpose.msra.mxu0 0
        %1188 = vmatprep.subr.bf16.mxu0 0
        %1189 = vmatpush1.bf16.xpose.msra.mxu0 0
        %1190 = vmatprep.subr.bf16.mxu0 0
        %1191 = vmatpush1.bf16.xpose.msra.mxu0 0
        %1192 = vmatprep.mubr.bf16.mxu0 0
        %1193 = vmatmul.mubr.bf16.gmra.mrb[0].mxu0 %v1155
        %v1194 = vpop.f32.mrb[0].mxu0
        %v1195 = vadd.f32 0.0, %v1194
        %v1196 = vpop.f32.mrb[0].mxu0
        %v1197 = vpop.f32.mrb[0].mxu0
        %v1198 = vpop.f32.mrb[0].mxu0
        %1199 = vdwg.mxu0
        %v1200 = vsel %vm600, %v1195, -inf
        %1201 = vmax.xlane.f32.xlu0 %v1200
        %v1202 = vpop.xlane.xlu0 %1201
        %v1203 = vsub.f32 %v1195, %v1202
        %v1204 = vmul.f32 %v1203, 1.442695
        %v1205 = vpow.pop %v1204
        %v1206 = vsel %vm600, %v1205, 0.0
        %1207 = vadd.xlane.f32.xlu0 %v1206
        %v1208 = vpop.xlane.xlu0 %1207
        %v1209 = vpack.c.bf16 %v1205, %v1205
        %v1211 = vrot.slane %v1145, 4
        %1212 = vrot.lane.b32.xlu0 %v1211, 64
        %v1213 = vpop.permute.xlu0 %1212
        %v1215 = vsel %vm600, %v1209, 0
        %v1218 = vsel %vm614, %v1213, 0
        %1220 = vmatprep.subr.bf16.mxu0 0
        %1221 = vmatpush1.bf16.msra.mxu0 %v1218
        %1222 = vmatprep.subr.bf16.mxu0 0
        %1223 = vmatpush1.bf16.msra.mxu0 0
        %1224 = vmatprep.subr.bf16.mxu0 0
        %1225 = vmatpush1.bf16.msra.mxu0 0
        %1226 = vmatprep.subr.bf16.mxu0 0
        %1227 = vmatpush1.bf16.msra.mxu0 0
        %1228 = vmatprep.subr.bf16.mxu0 0
        %1229 = vmatpush1.bf16.msra.mxu0 0
        %1230 = vmatprep.subr.bf16.mxu0 0
        %1231 = vmatpush1.bf16.msra.mxu0 0
        %1232 = vmatprep.subr.bf16.mxu0 0
        %1233 = vmatpush1.bf16.msra.mxu0 0
        %1234 = vmatprep.subr.bf16.mxu0 0
        %1235 = vmatpush1.bf16.msra.mxu0 0
        %1236 = vmatprep.subr.bf16.mxu0 0
        %1237 = vmatpush1.bf16.msra.mxu0 0
        %1238 = vmatprep.subr.bf16.mxu0 0
        %1239 = vmatpush1.bf16.msra.mxu0 0
        %1240 = vmatprep.subr.bf16.mxu0 0
        %1241 = vmatpush1.bf16.msra.mxu0 0
        %1242 = vmatprep.subr.bf16.mxu0 0
        %1243 = vmatpush1.bf16.msra.mxu0 0
        %1244 = vmatprep.subr.bf16.mxu0 0
        %1245 = vmatpush1.bf16.msra.mxu0 0
        %1246 = vmatprep.subr.bf16.mxu0 0
        %1247 = vmatpush1.bf16.msra.mxu0 0
        %1248 = vmatprep.subr.bf16.mxu0 0
        %1249 = vmatpush1.bf16.msra.mxu0 0
        %1250 = vmatprep.subr.bf16.mxu0 0
        %1251 = vmatpush1.bf16.msra.mxu0 0
        %1252 = vmatprep.mubr.bf16.mxu0 0
        %1253 = vmatmul.mubr.bf16.gmra.mrb[0].mxu0 %v1215
        %v1254 = vpop.f32.mrb[0].mxu0
        %v1255 = vadd.f32 0.0, %v1254
        %v1256 = vpop.f32.mrb[0].mxu0
        %v1257 = vpop.f32.mrb[0].mxu0
        %v1258 = vpop.f32.mrb[0].mxu0
        %1259 = vdwg.mxu0
        %v1260 = vrcp.pop %v1208
        %v1261 = vmul.f32 %v1255, %v1260
        %1263 = vrot.lane.b32.xlu0 %v1261, 64
        %v1264 = vpop.permute.xlu0 %1263
        %1266 = vst.msk [vmem:[#allocation3 + $0x8] sm:$0xff] %vm1141, %v1264
        %v1267 = vld [vmem:[#allocation2] sm:$0xf]
        %v1268 = vld [vmem:[#allocation2 + $0x8] sm:$0xf]
        %v1269 = vld [vmem:[#allocation2 + $0x10] sm:$0xf]
        %1271 = vrot.lane.b32.xlu0 %v1267, 32
        %v1272 = vpop.permute.xlu0 %1271
        %1274 = vrot.lane.b32.xlu0 %v1268, 32
        %v1275 = vpop.permute.xlu0 %1274
        %v1277 = vsel %vm553, %v1272, 0
        %v1280 = vsel %vm553, %v1275, 0
        %1282 = vmatprep.subr.bf16.mxu0 0
        %1283 = vmatpush1.bf16.xpose.msra.mxu0 %v1280
        %1284 = vmatprep.subr.bf16.mxu0 0
        %1285 = vmatpush1.bf16.xpose.msra.mxu0 0
        %1286 = vmatprep.subr.bf16.mxu0 0
        %1287 = vmatpush1.bf16.xpose.msra.mxu0 0
        %1288 = vmatprep.subr.bf16.mxu0 0
        %1289 = vmatpush1.bf16.xpose.msra.mxu0 0
        %1290 = vmatprep.subr.bf16.mxu0 0
        %1291 = vmatpush1.bf16.xpose.msra.mxu0 0
        %1292 = vmatprep.subr.bf16.mxu0 0
        %1293 = vmatpush1.bf16.xpose.msra.mxu0 0
        %1294 = vmatprep.subr.bf16.mxu0 0
        %1295 = vmatpush1.bf16.xpose.msra.mxu0 0
        %1296 = vmatprep.subr.bf16.mxu0 0
        %1297 = vmatpush1.bf16.xpose.msra.mxu0 0
        %1298 = vmatprep.subr.bf16.mxu0 0
        %1299 = vmatpush1.bf16.xpose.msra.mxu0 0
        %1300 = vmatprep.subr.bf16.mxu0 0
        %1301 = vmatpush1.bf16.xpose.msra.mxu0 0
        %1302 = vmatprep.subr.bf16.mxu0 0
        %1303 = vmatpush1.bf16.xpose.msra.mxu0 0
        %1304 = vmatprep.subr.bf16.mxu0 0
        %1305 = vmatpush1.bf16.xpose.msra.mxu0 0
        %1306 = vmatprep.subr.bf16.mxu0 0
        %1307 = vmatpush1.bf16.xpose.msra.mxu0 0
        %1308 = vmatprep.subr.bf16.mxu0 0
        %1309 = vmatpush1.bf16.xpose.msra.mxu0 0
        %1310 = vmatprep.subr.bf16.mxu0 0
        %1311 = vmatpush1.bf16.xpose.msra.mxu0 0
        %1312 = vmatprep.subr.bf16.mxu0 0
        %1313 = vmatpush1.bf16.xpose.msra.mxu0 0
        %1314 = vmatprep.mubr.bf16.mxu0 0
        %1315 = vmatmul.mubr.bf16.gmra.mrb[0].mxu0 %v1277
        %v1316 = vpop.f32.mrb[0].mxu0
        %v1317 = vadd.f32 0.0, %v1316
        %v1318 = vpop.f32.mrb[0].mxu0
        %v1319 = vpop.f32.mrb[0].mxu0
        %v1320 = vpop.f32.mrb[0].mxu0
        %1321 = vdwg.mxu0
        %v1322 = vsel %vm600, %v1317, -inf
        %1323 = vmax.xlane.f32.xlu0 %v1322
        %v1324 = vpop.xlane.xlu0 %1323
        %v1325 = vsub.f32 %v1317, %v1324
        %v1326 = vmul.f32 %v1325, 1.442695
        %v1327 = vpow.pop %v1326
        %v1328 = vsel %vm600, %v1327, 0.0
        %1329 = vadd.xlane.f32.xlu0 %v1328
        %v1330 = vpop.xlane.xlu0 %1329
        %v1331 = vpack.c.bf16 %v1327, %v1327
        %1333 = vrot.lane.b32.xlu0 %v1269, 32
        %v1334 = vpop.permute.xlu0 %1333
        %v1336 = vsel %vm600, %v1331, 0
        %v1339 = vsel %vm614, %v1334, 0
        %1341 = vmatprep.subr.bf16.mxu0 0
        %1342 = vmatpush1.bf16.msra.mxu0 %v1339
        %1343 = vmatprep.subr.bf16.mxu0 0
        %1344 = vmatpush1.bf16.msra.mxu0 0
        %1345 = vmatprep.subr.bf16.mxu0 0
        %1346 = vmatpush1.bf16.msra.mxu0 0
        %1347 = vmatprep.subr.bf16.mxu0 0
        %1348 = vmatpush1.bf16.msra.mxu0 0
        %1349 = vmatprep.subr.bf16.mxu0 0
        %1350 = vmatpush1.bf16.msra.mxu0 0
        %1351 = vmatprep.subr.bf16.mxu0 0
        %1352 = vmatpush1.bf16.msra.mxu0 0
        %1353 = vmatprep.subr.bf16.mxu0 0
        %1354 = vmatpush1.bf16.msra.mxu0 0
        %1355 = vmatprep.subr.bf16.mxu0 0
        %1356 = vmatpush1.bf16.msra.mxu0 0
        %1357 = vmatprep.subr.bf16.mxu0 0
        %1358 = vmatpush1.bf16.msra.mxu0 0
        %1359 = vmatprep.subr.bf16.mxu0 0
        %1360 = vmatpush1.bf16.msra.mxu0 0
        %1361 = vmatprep.subr.bf16.mxu0 0
        %1362 = vmatpush1.bf16.msra.mxu0 0
        %1363 = vmatprep.subr.bf16.mxu0 0
        %1364 = vmatpush1.bf16.msra.mxu0 0
        %1365 = vmatprep.subr.bf16.mxu0 0
        %1366 = vmatpush1.bf16.msra.mxu0 0
        %1367 = vmatprep.subr.bf16.mxu0 0
        %1368 = vmatpush1.bf16.msra.mxu0 0
        %1369 = vmatprep.subr.bf16.mxu0 0
        %1370 = vmatpush1.bf16.msra.mxu0 0
        %1371 = vmatprep.subr.bf16.mxu0 0
        %1372 = vmatpush1.bf16.msra.mxu0 0
        %1373 = vmatprep.mubr.bf16.mxu0 0
        %1374 = vmatmul.mubr.bf16.gmra.mrb[0].mxu0 %v1336
        %v1375 = vpop.f32.mrb[0].mxu0
        %v1376 = vadd.f32 0.0, %v1375
        %v1377 = vpop.f32.mrb[0].mxu0
        %v1378 = vpop.f32.mrb[0].mxu0
        %v1379 = vpop.f32.mrb[0].mxu0
        %1380 = vdwg.mxu0
        %v1381 = vrcp.pop %v1330
        %v1382 = vmul.f32 %v1376, %v1381
        %1384 = vrot.lane.b32.xlu0 %v1382, 96
        %v1385 = vpop.permute.xlu0 %1384
        %vm1387 = vcmask 1048320
        %1388 = vst.msk [vmem:[#allocation3] sm:$0xff] %vm1387, %v1385
        %v1389 = vld [vmem:[#allocation2] sm:$0xf0]
        %v1390 = vld [vmem:[#allocation2 + $0x8] sm:$0xf0]
        %v1391 = vld [vmem:[#allocation2 + $0x10] sm:$0xf0]
        %v1393 = vrot.slane %v1389, 4
        %1394 = vrot.lane.b32.xlu0 %v1393, 32
        %v1395 = vpop.permute.xlu0 %1394
        %v1397 = vrot.slane %v1390, 4
        %1398 = vrot.lane.b32.xlu0 %v1397, 32
        %v1399 = vpop.permute.xlu0 %1398
        %v1401 = vsel %vm553, %v1395, 0
        %v1404 = vsel %vm553, %v1399, 0
        %1406 = vmatprep.subr.bf16.mxu0 0
        %1407 = vmatpush1.bf16.xpose.msra.mxu0 %v1404
        %1408 = vmatprep.subr.bf16.mxu0 0
        %1409 = vmatpush1.bf16.xpose.msra.mxu0 0
        %1410 = vmatprep.subr.bf16.mxu0 0
        %1411 = vmatpush1.bf16.xpose.msra.mxu0 0
        %1412 = vmatprep.subr.bf16.mxu0 0
        %1413 = vmatpush1.bf16.xpose.msra.mxu0 0
        %1414 = vmatprep.subr.bf16.mxu0 0
        %1415 = vmatpush1.bf16.xpose.msra.mxu0 0
        %1416 = vmatprep.subr.bf16.mxu0 0
        %1417 = vmatpush1.bf16.xpose.msra.mxu0 0
        %1418 = vmatprep.subr.bf16.mxu0 0
        %1419 = vmatpush1.bf16.xpose.msra.mxu0 0
        %1420 = vmatprep.subr.bf16.mxu0 0
        %1421 = vmatpush1.bf16.xpose.msra.mxu0 0
        %1422 = vmatprep.subr.bf16.mxu0 0
        %1423 = vmatpush1.bf16.xpose.msra.mxu0 0
        %1424 = vmatprep.subr.bf16.mxu0 0
        %1425 = vmatpush1.bf16.xpose.msra.mxu0 0
        %1426 = vmatprep.subr.bf16.mxu0 0
        %1427 = vmatpush1.bf16.xpose.msra.mxu0 0
        %1428 = vmatprep.subr.bf16.mxu0 0
        %1429 = vmatpush1.bf16.xpose.msra.mxu0 0
        %1430 = vmatprep.subr.bf16.mxu0 0
        %1431 = vmatpush1.bf16.xpose.msra.mxu0 0
        %1432 = vmatprep.subr.bf16.mxu0 0
        %1433 = vmatpush1.bf16.xpose.msra.mxu0 0
        %1434 = vmatprep.subr.bf16.mxu0 0
        %1435 = vmatpush1.bf16.xpose.msra.mxu0 0
        %1436 = vmatprep.subr.bf16.mxu0 0
        %1437 = vmatpush1.bf16.xpose.msra.mxu0 0
        %1438 = vmatprep.mubr.bf16.mxu0 0
        %1439 = vmatmul.mubr.bf16.gmra.mrb[0].mxu0 %v1401
        %v1440 = vpop.f32.mrb[0].mxu0
        %v1441 = vadd.f32 0.0, %v1440
        %v1442 = vpop.f32.mrb[0].mxu0
        %v1443 = vpop.f32.mrb[0].mxu0
        %v1444 = vpop.f32.mrb[0].mxu0
        %1445 = vdwg.mxu0
        %v1446 = vsel %vm600, %v1441, -inf
        %1447 = vmax.xlane.f32.xlu0 %v1446
        %v1448 = vpop.xlane.xlu0 %1447
        %v1449 = vsub.f32 %v1441, %v1448
        %v1450 = vmul.f32 %v1449, 1.442695
        %v1451 = vpow.pop %v1450
        %v1452 = vsel %vm600, %v1451, 0.0
        %1453 = vadd.xlane.f32.xlu0 %v1452
        %v1454 = vpop.xlane.xlu0 %1453
        %v1455 = vpack.c.bf16 %v1451, %v1451
        %v1457 = vrot.slane %v1391, 4
        %1458 = vrot.lane.b32.xlu0 %v1457, 32
        %v1459 = vpop.permute.xlu0 %1458
        %v1461 = vsel %vm600, %v1455, 0
        %v1464 = vsel %vm614, %v1459, 0
        %1466 = vmatprep.subr.bf16.mxu0 0
        %1467 = vmatpush1.bf16.msra.mxu0 %v1464
        %1468 = vmatprep.subr.bf16.mxu0 0
        %1469 = vmatpush1.bf16.msra.mxu0 0
        %1470 = vmatprep.subr.bf16.mxu0 0
        %1471 = vmatpush1.bf16.msra.mxu0 0
        %1472 = vmatprep.subr.bf16.mxu0 0
        %1473 = vmatpush1.bf16.msra.mxu0 0
        %1474 = vmatprep.subr.bf16.mxu0 0
        %1475 = vmatpush1.bf16.msra.mxu0 0
        %1476 = vmatprep.subr.bf16.mxu0 0
        %1477 = vmatpush1.bf16.msra.mxu0 0
        %1478 = vmatprep.subr.bf16.mxu0 0
        %1479 = vmatpush1.bf16.msra.mxu0 0
        %1480 = vmatprep.subr.bf16.mxu0 0
        %1481 = vmatpush1.bf16.msra.mxu0 0
        %1482 = vmatprep.subr.bf16.mxu0 0
        %1483 = vmatpush1.bf16.msra.mxu0 0
        %1484 = vmatprep.subr.bf16.mxu0 0
        %1485 = vmatpush1.bf16.msra.mxu0 0
        %1486 = vmatprep.subr.bf16.mxu0 0
        %1487 = vmatpush1.bf16.msra.mxu0 0
        %1488 = vmatprep.subr.bf16.mxu0 0
        %1489 = vmatpush1.bf16.msra.mxu0 0
        %1490 = vmatprep.subr.bf16.mxu0 0
        %1491 = vmatpush1.bf16.msra.mxu0 0
        %1492 = vmatprep.subr.bf16.mxu0 0
        %1493 = vmatpush1.bf16.msra.mxu0 0
        %1494 = vmatprep.subr.bf16.mxu0 0
        %1495 = vmatpush1.bf16.msra.mxu0 0
        %1496 = vmatprep.subr.bf16.mxu0 0
        %1497 = vmatpush1.bf16.msra.mxu0 0
        %1498 = vmatprep.mubr.bf16.mxu0 0
        %1499 = vmatmul.mubr.bf16.gmra.mrb[0].mxu0 %v1461
        %v1500 = vpop.f32.mrb[0].mxu0
        %v1501 = vadd.f32 0.0, %v1500
        %v1502 = vpop.f32.mrb[0].mxu0
        %v1503 = vpop.f32.mrb[0].mxu0
        %v1504 = vpop.f32.mrb[0].mxu0
        %1505 = vdwg.mxu0
        %v1506 = vrcp.pop %v1454
        %v1507 = vmul.f32 %v1501, %v1506
        %1509 = vrot.lane.b32.xlu0 %v1507, 96
        %v1510 = vpop.permute.xlu0 %1509
        %1512 = vst.msk [vmem:[#allocation3 + $0x8] sm:$0xff] %vm1387, %v1510
        %v1513 = vld [vmem:[#allocation3] sm:$0xff]
        %v1514 = vld [vmem:[#allocation3 + $0x8] sm:$0xff]
        %v1515 = vpack.c.bf16 %v1514, %v1513
        %v1516 = vld [vmem:[%s3] sm:$0xf]
        %v1517 = vld [vmem:[%s3 + $0x4] sm:$0xf]
        %v1518 = vld [vmem:[%s3 + $0x8] sm:$0xf]
        %v1519 = vld [vmem:[%s3 + $0xc] sm:$0xf]
        %v1520 = vld [vmem:[%s3 + $0x10] sm:$0xf]
        %v1521 = vld [vmem:[%s3 + $0x14] sm:$0xf]
        %v1522 = vld [vmem:[%s3 + $0x18] sm:$0xf]
        %v1523 = vld [vmem:[%s3 + $0x1c] sm:$0xf]
        %v1524 = vld [vmem:[%s3 + $0x20] sm:$0xf]
        %v1525 = vld [vmem:[%s3 + $0x24] sm:$0xf]
        %v1526 = vld [vmem:[%s3 + $0x28] sm:$0xf]
        %v1527 = vld [vmem:[%s3 + $0x2c] sm:$0xf]
        %v1528 = vld [vmem:[%s3 + $0x30] sm:$0xf]
        %v1529 = vld [vmem:[%s3 + $0x34] sm:$0xf]
        %v1530 = vld [vmem:[%s3 + $0x38] sm:$0xf]
        %v1531 = vld [vmem:[%s3 + $0x3c] sm:$0xf]
        %v1532 = vld [vmem:[%s4] sm:$0x1]
        %v1534 = vlaneseq
        %v1535 = vshrl.u32 %v1534, 7
        %v1536 = vsub.s32 0, %v1535
        %v1537 = vrot.slane %v1532, %v1536
        %v1555 = vunpack.c.l.b16 %v1516
        %v1556 = vunpack.c.l.b16 %v1517
        %v1557 = vunpack.c.l.b16 %v1518
        %v1558 = vunpack.c.l.b16 %v1519
        %v1559 = vunpack.c.l.b16 %v1520
        %v1560 = vunpack.c.l.b16 %v1521
        %v1561 = vunpack.c.l.b16 %v1522
        %v1562 = vunpack.c.l.b16 %v1523
        %v1563 = vunpack.c.l.b16 %v1524
        %v1564 = vunpack.c.l.b16 %v1525
        %v1565 = vunpack.c.l.b16 %v1526
        %v1566 = vunpack.c.l.b16 %v1527
        %v1567 = vunpack.c.l.b16 %v1528
        %v1568 = vunpack.c.l.b16 %v1529
        %v1569 = vunpack.c.l.b16 %v1530
        %v1570 = vunpack.c.l.b16 %v1531
        %v1571 = vpack.c.b16 %v1556, %v1555
        %v1572 = vpack.c.b16 %v1558, %v1557
        %v1573 = vpack.c.b16 %v1560, %v1559
        %v1574 = vpack.c.b16 %v1562, %v1561
        %v1575 = vpack.c.b16 %v1564, %v1563
        %v1576 = vpack.c.b16 %v1566, %v1565
        %v1577 = vpack.c.b16 %v1568, %v1567
        %v1578 = vpack.c.b16 %v1570, %v1569
        %1587 = vmatprep.subr.bf16.mxu0 0
        %1588 = vmatpush1.bf16.msra.mxu0 %v1571
        %1589 = vmatprep.subr.bf16.mxu0 0
        %1590 = vmatpush1.bf16.msra.mxu0 %v1572
        %1591 = vmatprep.subr.bf16.mxu0 0
        %1592 = vmatpush1.bf16.msra.mxu0 %v1573
        %1593 = vmatprep.subr.bf16.mxu0 0
        %1594 = vmatpush1.bf16.msra.mxu0 %v1574
        %1595 = vmatprep.subr.bf16.mxu0 0
        %1596 = vmatpush1.bf16.msra.mxu0 %v1575
        %1597 = vmatprep.subr.bf16.mxu0 0
        %1598 = vmatpush1.bf16.msra.mxu0 %v1576
        %1599 = vmatprep.subr.bf16.mxu0 0
        %1600 = vmatpush1.bf16.msra.mxu0 %v1577
        %1601 = vmatprep.subr.bf16.mxu0 0
        %1602 = vmatpush1.bf16.msra.mxu0 %v1578
        %1603 = vmatprep.subr.bf16.mxu0 0
        %1604 = vmatpush1.bf16.msra.mxu0 0
        %1605 = vmatprep.subr.bf16.mxu0 0
        %1606 = vmatpush1.bf16.msra.mxu0 0
        %1607 = vmatprep.subr.bf16.mxu0 0
        %1608 = vmatpush1.bf16.msra.mxu0 0
        %1609 = vmatprep.subr.bf16.mxu0 0
        %1610 = vmatpush1.bf16.msra.mxu0 0
        %1611 = vmatprep.subr.bf16.mxu0 0
        %1612 = vmatpush1.bf16.msra.mxu0 0
        %1613 = vmatprep.subr.bf16.mxu0 0
        %1614 = vmatpush1.bf16.msra.mxu0 0
        %1615 = vmatprep.subr.bf16.mxu0 0
        %1616 = vmatpush1.bf16.msra.mxu0 0
        %1617 = vmatprep.subr.bf16.mxu0 0
        %1618 = vmatpush1.bf16.msra.mxu0 0
        %1619 = vmatprep.mubr.bf16.mxu0 0
        %1620 = vmatmul.mubr.bf16.gmra.mrb[0].mxu0 %v1515
        %v1621 = vpop.f32.mrb[0].mxu0
        %v1622 = vadd.f32 %v1537, %v1621
        %v1623 = vpop.f32.mrb[0].mxu0
        %v1624 = vpop.f32.mrb[0].mxu0
        %v1625 = vadd.f32 %v1537, %v1624
        %v1626 = vpop.f32.mrb[0].mxu0
        %1627 = vdwg.mxu0
        %1628 = vst [vmem:[%s272] sm:$0xff] %v1622
        %1629 = vst [vmem:[%s272 + $0x8] sm:$0xff] %v1625
        %s1630 = smul.u32 2, %s16
        %p1631 = scmp.lt.s32.totalorder %s1630, 3
        %s1632 = scalar_select %p1631, %s1630, 3
        %s1633 = smul.addr %s1632, 8
        %s1634 = scalar_lea.vmem %s5, %s1633
        // Predicated region
        $region82: #{longnet_transformer_forward.2} parent=76 // pred_check
          %p1635 = pneg %p144
        $region83: #{longnet_transformer_forward.2} parent=76 // pred_check_branch
          %1637 = sbr.rel (%p1635) target = $region85
        $region84: #{longnet_transformer_forward.2} parent=76 // pred_region
          %s1638 = smul.u32 2, %s16
        $region85: #{longnet_transformer_forward.2} parent=76 // pred_fallthru
          _
      $region77: #{longnet_transformer_forward.2} parent=5 // pred_fallthru
        _
      %p1639 = scmp.le.s32.totalorder 2, %s11
      // Predicated region
      $region86: #{longnet_transformer_forward.2} parent=5 // pred_check
        %p1640 = pneg %p1639
      $region87: #{longnet_transformer_forward.2} parent=5 // pred_check_branch
        %1642 = sbr.rel (%p1640) target = $region89
      $region88: #{longnet_transformer_forward.2} parent=5 // pred_region
        %s1643 = ssub.s32 %s11, 2
        // Predicated region
        $region90: #{longnet_transformer_forward.2} parent=88 // pred_check
          %p1644 = pneg %p150
        $region91: #{longnet_transformer_forward.2} parent=88 // pred_check_branch
          %1646 = sbr.rel (%p1644) target = $region93
        $region92: #{longnet_transformer_forward.2} parent=88 // pred_region
          %s1647 = smul.u32 2, %s17
          %p1648 = scmp.lt.s32.totalorder %s1647, 3
          %s1649 = scalar_select %p1648, %s1647, 3
          %s1650 = smul.addr %s1649, 8
          %s1651 = scalar_lea.vmem %s5, %s1650
        $region93: #{longnet_transformer_forward.2} parent=88 // pred_fallthru
          _
      $region89: #{longnet_transformer_forward.2} parent=5 // pred_fallthru
        _
    $region6: #{longnet_transformer_forward.2} parent=1 // loop_footer
      %s15 = sadd.s32 1, %s11
    $region7: #{longnet_transformer_forward.2} parent=1 // loop_footer_branch
      %10 = sbr.rel target = $region3
    $region8: #{longnet_transformer_forward.2} parent=1 // loop_exit
      _

</llo_original>
